<compile_context>
chip_gen: v7x
topology: tpu7x:2x2x1
jax: 0.10.0
libtpu: 0.0.40
codegen_flags: <defaults>
</compile_context>

<pallas_src>
import numpy as np

import jax
import jax.numpy as jnp
from jax import lax
from jax.experimental import pallas as pl
from jax.experimental.pallas import tpu as pltpu


# ------------------------------- kernel -------------------------------------

def make_adaptor_kernel(Bblk, T, E, F, K, PAD1, PAD2, NBPAD):
    rows = Bblk * T

    def kernel(len_ref, x_ref, pcw_ref, prow_ref, ecw_ref, erow_ref,
               bins_ref, emb_ref, xo_ref, pp_ref, ep_ref):
        base = pl.program_id(0) * Bblk

        # Per-frame time index and validity columns, flat over the folded batch.
        t_base = lax.broadcasted_iota(jnp.int32, (T, 1), 0)
        tcol = jnp.concatenate([t_base] * Bblk, axis=0)                      # (rows, 1)
        lencol = jnp.concatenate(
            [jnp.full((T, 1), len_ref[base + j], jnp.int32) for j in range(Bblk)],
            axis=0)                                                          # (rows, 1)
        valid = tcol < lencol                                                # True == real frame

        x = x_ref[...].reshape(rows, E)                                      # (rows, E) f32
        emb_tbl = emb_ref[...]                                               # (NBPAD, E) bf16

        def layer_norm(h, g, b):
            mu = jnp.mean(h, axis=-1, keepdims=True)
            var = jnp.mean(jnp.square(h - mu), axis=-1, keepdims=True)
            return (h - mu) * lax.rsqrt(var + 1e-5) * g + b

        def shifted_stack(h, pad):
            # Conv tap k needs h[t + k - pad]; build all K shifted copies with XLU
            # rolls + a static time-window mask (== zero conv padding), then
            # concatenate along lanes for a single merged-tap matmul.
            pieces = []
            for k in range(K):
                d = k - pad
                if d == 0:
                    pieces.append(h)
                else:
                    rolled = pltpu.roll(h, shift=(-d) % rows, axis=0)
                    ok = jnp.logical_and(tcol + d >= 0, tcol + d < T)
                    pieces.append(jnp.where(ok, rolled, 0.0))
            return jnp.concatenate(pieces, axis=1).astype(jnp.bfloat16)      # (rows, K*Cin)

        def predictor(h, cw_ref, row_ref, cin):
            prm = row_ref[...]                       # (8, F) f32 parameter rows
            w1 = cw_ref[0:K * cin, :]                # (K*cin, F) bf16
            w2 = cw_ref[K * cin:K * (cin + F), :]    # (K*F,  F) bf16
            h1 = jnp.dot(shifted_stack(h, PAD1), w1,
                         preferred_element_type=jnp.float32) + prm[0:1, :]
            h1 = layer_norm(jnp.maximum(h1, 0.0), prm[1:2, :], prm[2:3, :])
            h2 = jnp.dot(shifted_stack(h1, PAD2), w2,
                         preferred_element_type=jnp.float32) + prm[3:4, :]
            h2 = layer_norm(jnp.maximum(h2, 0.0), prm[4:5, :], prm[5:6, :])
            # Linear(F, 1) as multiply + lane reduction (avoids a 1-lane MXU op).
            pred = jnp.sum(h2 * prm[6:7, :], axis=-1, keepdims=True) + prm[7:8, 0:1]
            return jnp.where(valid, pred, 0.0)       # masked_fill(mel_mask, 0.0)

        def bucketize_embed(pred, bins_row):
            # torch.bucketize(v, bins) == number of boundaries strictly below v.
            idx = jnp.sum((bins_row < pred).astype(jnp.int32), axis=-1, keepdims=True)
            col = lax.broadcasted_iota(jnp.int32, (rows, NBPAD), 1)
            onehot = (col == idx).astype(jnp.bfloat16)                       # (rows, NBPAD)
            return jnp.dot(onehot, emb_tbl, preferred_element_type=jnp.float32)

        pitch_pred = predictor(x, pcw_ref, prow_ref, E)
        x = x + bucketize_embed(pitch_pred, bins_ref[0:1, :])

        energy_pred = predictor(x, ecw_ref, erow_ref, E)
        # NOTE: the reference module uses self.pitch_embedding for the energy branch
        # as well; emb_tbl is the pitch embedding table on purpose.
        x = x + bucketize_embed(energy_pred, bins_ref[1:2, :])

        xo_ref[...] = x.reshape(Bblk, T, E)
        pp_ref[...] = pitch_pred.reshape(Bblk, T, 1)
        ep_ref[...] = energy_pred.reshape(Bblk, T, 1)

    return kernel


# ------------------------------- wrapper -------------------------------------

def variance_adaptor(x, lengths, params, *, block_b=8):
    """params = (pitch_cw, pitch_rows, energy_cw, energy_rows, bins, emb_pad)."""
    pitch_cw, pitch_rows, energy_cw, energy_rows, bins, emb_pad = params
    B, T, E = x.shape
    F = pitch_rows.shape[1]
    K = pitch_cw.shape[0] // (E + F)
    NBPAD = emb_pad.shape[0]
    pad1 = (K - 1) // 2          # conv1d_1 padding
    pad2 = 1                     # conv1d_2 padding is hard-coded to 1 in the module
    # TODO(synk): the reference module changes the time length when kernel_size != 3
    # (conv2 pad is fixed at 1); only the length-preserving configuration is supported.
    assert T + 2 * pad1 - K + 1 == T and T + 2 * pad2 - K + 1 == T

    Bblk = min(block_b, B)
    assert B % Bblk == 0, "batch must be divisible by the folded block size"

    kernel = make_adaptor_kernel(Bblk, T, E, F, K, pad1, pad2, NBPAD)
    weights = [pitch_cw, pitch_rows, energy_cw, energy_rows, bins, emb_pad]

    def const_spec(arr):
        # Constant across the grid; tiny here, so default double-buffering is fine.
        # TODO(synk): pipeline_mode=pl.Buffered(1) would single-buffer these on v7x
        # (64 MiB VMEM) at production sizes.
        return pl.BlockSpec(arr.shape, lambda b, lens: (0, 0))

    grid_spec = pltpu.PrefetchScalarGridSpec(
        num_scalar_prefetch=1,
        grid=(B // Bblk,),
        in_specs=[pl.BlockSpec((Bblk, T, E), lambda b, lens: (b, 0, 0))]
                 + [const_spec(w) for w in weights],
        out_specs=[pl.BlockSpec((Bblk, T, E), lambda b, lens: (b, 0, 0)),
                   pl.BlockSpec((Bblk, T, 1), lambda b, lens: (b, 0, 0)),
                   pl.BlockSpec((Bblk, T, 1), lambda b, lens: (b, 0, 0))],
    )

    x_out, pp, ep = pl.pallas_call(
        kernel,
        grid_spec=grid_spec,
        out_shape=(jax.ShapeDtypeStruct((B, T, E), jnp.float32),
                   jax.ShapeDtypeStruct((B, T, 1), jnp.float32),
                   jax.ShapeDtypeStruct((B, T, 1), jnp.float32)),
        compiler_params=pltpu.CompilerParams(dimension_semantics=("parallel",)),
    )(lengths, x, *weights)
    return x_out, pp[:, :, 0], ep[:, :, 0]


# --------------------------- parameter construction --------------------------

def init_variance_adaptor_params(key, E, F, K, n_bins,
                                 energy_min, energy_max, pitch_min, pitch_max,
                                 nb_pad=128):
    """Random module weights, packed for the kernel.

    PyTorch -> packed mapping:
      Conv1d.weight (Cout, Cin, K) -> tap-major (K, Cin, Cout) = w.permute(2, 1, 0),
        reshaped to (K*Cin, Cout); conv1 and conv2 stacked row-wise -> (K*(Cin+F), F) bf16.
      Per-predictor (8, F) f32 rows: [conv1.b, ln1.g, ln1.b, conv2.b, ln2.g, ln2.b,
        linear.weight[0], [linear.bias, 0, ...]].
      bins (2, nb_pad) f32: [pitch_bins, energy_bins] padded with huge sentinels.
      pitch_embedding.weight (n_bins, E) zero-padded to (nb_pad, E) bf16.
    """
    assert n_bins <= nb_pad
    k_p, k_e, k_emb = jax.random.split(key, 3)

    def nrm(k, shape):
        return 0.05 * jax.random.normal(k, shape, jnp.float32)

    def make_predictor(k, cin):
        k1, k2, k3, k4, k5, k6 = jax.random.split(k, 6)
        conv1_w = nrm(k1, (K, cin, F))          # == torch conv1.weight.permute(2,1,0)
        conv1_b = nrm(k2, (F,))
        conv2_w = nrm(k3, (K, F, F))
        conv2_b = nrm(k4, (F,))
        lin_w = nrm(k5, (F,))                   # == torch linear.weight[0]
        lin_b = nrm(k6, ())
        cw = jnp.concatenate([conv1_w.reshape(K * cin, F),
                              conv2_w.reshape(K * F, F)],
                             axis=0).astype(jnp.bfloat16)
        rows = jnp.stack([conv1_b,
                          jnp.ones((F,), jnp.float32),    # LayerNorm1 gamma
                          jnp.zeros((F,), jnp.float32),   # LayerNorm1 beta
                          conv2_b,
                          jnp.ones((F,), jnp.float32),    # LayerNorm2 gamma
                          jnp.zeros((F,), jnp.float32),   # LayerNorm2 beta
                          lin_w,
                          jnp.zeros((F,), jnp.float32).at[0].set(lin_b)],
                         axis=0)                           # (8, F) f32
        return cw, rows

    pitch_cw, pitch_rows = make_predictor(k_p, E)
    energy_cw, energy_rows = make_predictor(k_e, E)

    pitch_emb = nrm(k_emb, (n_bins, E))          # nn.Embedding(n_bins, E).weight
    emb_pad = jnp.zeros((nb_pad, E), jnp.float32).at[:n_bins].set(pitch_emb)
    emb_pad = emb_pad.astype(jnp.bfloat16)
    # energy_embedding exists in the module but is never used by forward(); omitted.

    def pad_bins(vals):
        out = np.full((nb_pad,), 1e30, np.float32)   # sentinels never counted by bucketize
        out[: n_bins - 1] = vals
        return out

    pitch_bins = np.exp(np.linspace(np.log(pitch_min), np.log(pitch_max), n_bins - 1))
    energy_bins = np.linspace(energy_min, energy_max, n_bins - 1)
    bins = jnp.asarray(np.stack([pad_bins(pitch_bins), pad_bins(energy_bins)], 0),
                       dtype=jnp.float32)            # (2, nb_pad)

    return pitch_cw, pitch_rows, energy_cw, energy_rows, bins, emb_pad


# ---------------------------------- main --------------------------------------

if __name__ == "__main__":
    # VarianceAdaptor(input_size=32, filter_size=32, kernel_size=3, n_bins=64, ...)
    B, T = 16, 16                      # folded as 2 parallel grid steps of 8*16 = 128 rows
    input_size, filter_size, kernel_size = 32, 32, 3
    n_bins = 64
    pitch_min, pitch_max = 0.05, 5.0
    energy_min, energy_max = -2.0, 2.0

    key = jax.random.PRNGKey(0)
    kx, kp = jax.random.split(key)
    x = jax.random.normal(kx, (B, T, input_size), jnp.float32)
    lengths = (T - (jnp.arange(B) * 3) % 7).astype(jnp.int32)   # mel_mask == (t >= length)

    params = init_variance_adaptor_params(kp, input_size, filter_size, kernel_size,
                                          n_bins, energy_min, energy_max,
                                          pitch_min, pitch_max)

    # TODO(synk): teacher-forced path (pitch_target / energy_target given) would reuse
    # the same bucketize + embedding machinery with the target substituted for the
    # prediction; only the inference path (targets=None) is wired up here.
    x_out, pitch_pred, energy_pred = variance_adaptor(x, lengths, params, block_b=8)
    x_out, pitch_pred, energy_pred = jax.block_until_ready(
        (x_out, pitch_pred, energy_pred))

    assert x_out.shape == (B, T, input_size)
    assert pitch_pred.shape == (B, T) and energy_pred.shape == (B, T)
    assert bool(jnp.all(jnp.isfinite(x_out)))
    assert bool(jnp.all(jnp.isfinite(pitch_pred)))
    assert bool(jnp.all(jnp.isfinite(energy_pred)))
    # masked_fill: padded frames of both predictions must be exactly zero
    pad_mask = jnp.arange(T)[None, :] >= lengths[:, None]
    assert float(jnp.max(jnp.abs(jnp.where(pad_mask, pitch_pred, 0.0)))) == 0.0
    assert float(jnp.max(jnp.abs(jnp.where(pad_mask, energy_pred, 0.0)))) == 0.0
    print("KERNEL_OK")
</pallas_src>

<mosaic_0001>
module attributes {stable_mosaic.version = 11 : i64} {
  func.func @kernel(%arg0: i32, %arg1: memref<16xi32, #tpu.memory_space<smem>>, %arg2: memref<8x16x32xf32, #tpu.memory_space<vmem>>, %arg3: memref<192x32xbf16, #tpu.memory_space<vmem>>, %arg4: memref<8x32xf32, #tpu.memory_space<vmem>>, %arg5: memref<192x32xbf16, #tpu.memory_space<vmem>>, %arg6: memref<8x32xf32, #tpu.memory_space<vmem>>, %arg7: memref<2x128xf32, #tpu.memory_space<vmem>>, %arg8: memref<128x32xbf16, #tpu.memory_space<vmem>>, %arg9: memref<8x16x32xf32, #tpu.memory_space<vmem>>, %arg10: memref<8x16x1xf32, #tpu.memory_space<vmem>>, %arg11: memref<8x16x1xf32, #tpu.memory_space<vmem>>) attributes {dimension_semantics = [#tpu.dimension_semantics<parallel>], iteration_bounds = array<i64: 2>, scalar_prefetch = 1 : i64, scratch_operands = 0 : i64, tpu.core_type = #tpu.core_type<tc>, window_params = [{transform_indices = @transform_0, window_bounds = array<i64: 8, 16, 32>}, {pipeline_mode = #tpu.pipeline_mode<synchronous>, transform_indices = @transform_1, window_bounds = array<i64: 192, 32>}, {pipeline_mode = #tpu.pipeline_mode<synchronous>, transform_indices = @transform_2, window_bounds = array<i64: 8, 32>}, {pipeline_mode = #tpu.pipeline_mode<synchronous>, transform_indices = @transform_3, window_bounds = array<i64: 192, 32>}, {pipeline_mode = #tpu.pipeline_mode<synchronous>, transform_indices = @transform_4, window_bounds = array<i64: 8, 32>}, {pipeline_mode = #tpu.pipeline_mode<synchronous>, transform_indices = @transform_5, window_bounds = array<i64: 2, 128>}, {pipeline_mode = #tpu.pipeline_mode<synchronous>, transform_indices = @transform_6, window_bounds = array<i64: 128, 32>}, {transform_indices = @transform_7, window_bounds = array<i64: 8, 16, 32>}, {transform_indices = @transform_8, window_bounds = array<i64: 8, 16, 1>}, {transform_indices = @transform_9, window_bounds = array<i64: 8, 16, 1>}]} {
    %c8_i32 = arith.constant 8 : i32
    %0 = arith.muli %arg0, %c8_i32 : i32
    %1 = tpu.iota {dimensions = array<i32: 0>} : vector<16x1xi32>
    %2 = tpu.concatenate %1, %1, %1, %1, %1, %1, %1, %1 in 0 : vector<16x1xi32>, vector<16x1xi32>, vector<16x1xi32>, vector<16x1xi32>, vector<16x1xi32>, vector<16x1xi32>, vector<16x1xi32>, vector<16x1xi32> -> vector<128x1xi32>
    %c0_i32 = arith.constant 0 : i32
    %3 = arith.addi %0, %c0_i32 : i32
    %4 = arith.index_cast %3 : i32 to index
    %5 = memref.load %arg1[%4] : memref<16xi32, #tpu.memory_space<smem>>
    %6 = vector.broadcast %5 : i32 to vector<16x1xi32>
    %c1_i32 = arith.constant 1 : i32
    %7 = arith.addi %0, %c1_i32 : i32
    %8 = arith.index_cast %7 : i32 to index
    %9 = memref.load %arg1[%8] : memref<16xi32, #tpu.memory_space<smem>>
    %10 = vector.broadcast %9 : i32 to vector<16x1xi32>
    %c2_i32 = arith.constant 2 : i32
    %11 = arith.addi %0, %c2_i32 : i32
    %12 = arith.index_cast %11 : i32 to index
    %13 = memref.load %arg1[%12] : memref<16xi32, #tpu.memory_space<smem>>
    %14 = vector.broadcast %13 : i32 to vector<16x1xi32>
    %c3_i32 = arith.constant 3 : i32
    %15 = arith.addi %0, %c3_i32 : i32
    %16 = arith.index_cast %15 : i32 to index
    %17 = memref.load %arg1[%16] : memref<16xi32, #tpu.memory_space<smem>>
    %18 = vector.broadcast %17 : i32 to vector<16x1xi32>
    %c4_i32 = arith.constant 4 : i32
    %19 = arith.addi %0, %c4_i32 : i32
    %20 = arith.index_cast %19 : i32 to index
    %21 = memref.load %arg1[%20] : memref<16xi32, #tpu.memory_space<smem>>
    %22 = vector.broadcast %21 : i32 to vector<16x1xi32>
    %c5_i32 = arith.constant 5 : i32
    %23 = arith.addi %0, %c5_i32 : i32
    %24 = arith.index_cast %23 : i32 to index
    %25 = memref.load %arg1[%24] : memref<16xi32, #tpu.memory_space<smem>>
    %26 = vector.broadcast %25 : i32 to vector<16x1xi32>
    %c6_i32 = arith.constant 6 : i32
    %27 = arith.addi %0, %c6_i32 : i32
    %28 = arith.index_cast %27 : i32 to index
    %29 = memref.load %arg1[%28] : memref<16xi32, #tpu.memory_space<smem>>
    %30 = vector.broadcast %29 : i32 to vector<16x1xi32>
    %c7_i32 = arith.constant 7 : i32
    %31 = arith.addi %0, %c7_i32 : i32
    %32 = arith.index_cast %31 : i32 to index
    %33 = memref.load %arg1[%32] : memref<16xi32, #tpu.memory_space<smem>>
    %34 = vector.broadcast %33 : i32 to vector<16x1xi32>
    %35 = tpu.concatenate %6, %10, %14, %18, %22, %26, %30, %34 in 0 : vector<16x1xi32>, vector<16x1xi32>, vector<16x1xi32>, vector<16x1xi32>, vector<16x1xi32>, vector<16x1xi32>, vector<16x1xi32>, vector<16x1xi32> -> vector<128x1xi32>
    %36 = arith.cmpi slt, %2, %35 : vector<128x1xi32>
    %c0 = arith.constant 0 : index
    %c0_0 = arith.constant 0 : index
    %c0_1 = arith.constant 0 : index
    %37 = vector.load %arg2[%c0, %c0_0, %c0_1] : memref<8x16x32xf32, #tpu.memory_space<vmem>>, vector<8x16x32xf32>
    %38 = vector.shape_cast %37 : vector<8x16x32xf32> to vector<128x32xf32>
    %c0_2 = arith.constant 0 : index
    %c0_3 = arith.constant 0 : index
    %39 = vector.load %arg8[%c0_2, %c0_3] : memref<128x32xbf16, #tpu.memory_space<vmem>>, vector<128x32xbf16>
    %c0_4 = arith.constant 0 : index
    %c0_5 = arith.constant 0 : index
    %40 = vector.load %arg4[%c0_4, %c0_5] : memref<8x32xf32, #tpu.memory_space<vmem>>, vector<8x32xf32>
    %c0_6 = arith.constant 0 : index
    %c0_7 = arith.constant 0 : index
    %41 = vector.load %arg3[%c0_6, %c0_7] : memref<192x32xbf16, #tpu.memory_space<vmem>>, vector<96x32xbf16>
    %c96 = arith.constant 96 : index
    %c0_8 = arith.constant 0 : index
    %42 = vector.load %arg3[%c96, %c0_8] : memref<192x32xbf16, #tpu.memory_space<vmem>>, vector<96x32xbf16>
    %c1_i32_9 = arith.constant 1 : i32
    %43 = tpu.dynamic_rotate %38 by %c1_i32_9 dim 0 : vector<128x32xf32>, i32 -> vector<128x32xf32>
    %c-1_i32 = arith.constant -1 : i32
    %44 = vector.broadcast %c-1_i32 : i32 to vector<128x1xi32>
    %45 = arith.addi %2, %44 : vector<128x1xi32>
    %c0_i32_10 = arith.constant 0 : i32
    %46 = vector.broadcast %c0_i32_10 : i32 to vector<128x1xi32>
    %47 = arith.cmpi sge, %45, %46 : vector<128x1xi32>
    %c-1_i32_11 = arith.constant -1 : i32
    %48 = vector.broadcast %c-1_i32_11 : i32 to vector<128x1xi32>
    %49 = arith.addi %2, %48 : vector<128x1xi32>
    %c16_i32 = arith.constant 16 : i32
    %50 = vector.broadcast %c16_i32 : i32 to vector<128x1xi32>
    %51 = arith.cmpi slt, %49, %50 : vector<128x1xi32>
    %52 = arith.andi %47, %51 : vector<128x1xi1>
    %cst = arith.constant 0.000000e+00 : f32
    %53 = vector.shape_cast %52 : vector<128x1xi1> to vector<128x1xi1>
    %54 = vector.broadcast %53 : vector<128x1xi1> to vector<128x32xi1>
    %55 = vector.broadcast %cst : f32 to vector<128x32xf32>
    %56 = arith.select %54, %43, %55 : vector<128x32xi1>, vector<128x32xf32>
    %c127_i32 = arith.constant 127 : i32
    %57 = tpu.dynamic_rotate %38 by %c127_i32 dim 0 : vector<128x32xf32>, i32 -> vector<128x32xf32>
    %c1_i32_12 = arith.constant 1 : i32
    %58 = vector.broadcast %c1_i32_12 : i32 to vector<128x1xi32>
    %59 = arith.addi %2, %58 : vector<128x1xi32>
    %c0_i32_13 = arith.constant 0 : i32
    %60 = vector.broadcast %c0_i32_13 : i32 to vector<128x1xi32>
    %61 = arith.cmpi sge, %59, %60 : vector<128x1xi32>
    %c1_i32_14 = arith.constant 1 : i32
    %62 = vector.broadcast %c1_i32_14 : i32 to vector<128x1xi32>
    %63 = arith.addi %2, %62 : vector<128x1xi32>
    %c16_i32_15 = arith.constant 16 : i32
    %64 = vector.broadcast %c16_i32_15 : i32 to vector<128x1xi32>
    %65 = arith.cmpi slt, %63, %64 : vector<128x1xi32>
    %66 = arith.andi %61, %65 : vector<128x1xi1>
    %cst_16 = arith.constant 0.000000e+00 : f32
    %67 = vector.shape_cast %66 : vector<128x1xi1> to vector<128x1xi1>
    %68 = vector.broadcast %67 : vector<128x1xi1> to vector<128x32xi1>
    %69 = vector.broadcast %cst_16 : f32 to vector<128x32xf32>
    %70 = arith.select %68, %57, %69 : vector<128x32xi1>, vector<128x32xf32>
    %71 = tpu.concatenate %56, %38, %70 in 1 : vector<128x32xf32>, vector<128x32xf32>, vector<128x32xf32> -> vector<128x96xf32>
    %72 = arith.truncf %71 : vector<128x96xf32> to vector<128x96xbf16>
    %cst_17 = arith.constant dense<0.000000e+00> : vector<128x32xf32>
    %73 = tpu.matmul %72, %41, %cst_17 {dimension_numbers = #tpu.dot_dimension_numbers<[1], [0], [0], [1], [0, 0, 1, 1], [], []>} : vector<128x96xbf16>, vector<96x32xbf16>, vector<128x32xf32> -> vector<128x32xf32>
    %74 = vector.extract_strided_slice %40 {offsets = [0, 0], sizes = [1, 32], strides = [1, 1]} : vector<8x32xf32> to vector<1x32xf32>
    %75 = vector.broadcast %74 : vector<1x32xf32> to vector<128x32xf32>
    %76 = arith.addf %73, %75 : vector<128x32xf32>
    %cst_18 = arith.constant 0.000000e+00 : f32
    %77 = vector.broadcast %cst_18 : f32 to vector<128x32xf32>
    %78 = arith.maximumf %76, %77 : vector<128x32xf32>
    %79 = vector.extract_strided_slice %40 {offsets = [1, 0], sizes = [1, 32], strides = [1, 1]} : vector<8x32xf32> to vector<1x32xf32>
    %80 = vector.extract_strided_slice %40 {offsets = [2, 0], sizes = [1, 32], strides = [1, 1]} : vector<8x32xf32> to vector<1x32xf32>
    %cst_19 = arith.constant dense<0.000000e+00> : vector<128xf32>
    %81 = vector.multi_reduction <add>, %78, %cst_19 [1] : vector<128x32xf32> to vector<128xf32>
    %82 = vector.shape_cast %81 : vector<128xf32> to vector<128x1xf32>
    %cst_20 = arith.constant 3.200000e+01 : f32
    %83 = vector.broadcast %cst_20 : f32 to vector<128x1xf32>
    %84 = arith.divf %82, %83 : vector<128x1xf32>
    %85 = vector.broadcast %84 : vector<128x1xf32> to vector<128x32xf32>
    %86 = arith.subf %78, %85 : vector<128x32xf32>
    %87 = arith.mulf %86, %86 : vector<128x32xf32>
    %cst_21 = arith.constant dense<0.000000e+00> : vector<128xf32>
    %88 = vector.multi_reduction <add>, %87, %cst_21 [1] : vector<128x32xf32> to vector<128xf32>
    %89 = vector.shape_cast %88 : vector<128xf32> to vector<128x1xf32>
    %cst_22 = arith.constant 3.200000e+01 : f32
    %90 = vector.broadcast %cst_22 : f32 to vector<128x1xf32>
    %91 = arith.divf %89, %90 : vector<128x1xf32>
    %92 = vector.broadcast %84 : vector<128x1xf32> to vector<128x32xf32>
    %93 = arith.subf %78, %92 : vector<128x32xf32>
    %cst_23 = arith.constant 9.99999974E-6 : f32
    %94 = vector.broadcast %cst_23 : f32 to vector<128x1xf32>
    %95 = arith.addf %91, %94 : vector<128x1xf32>
    %96 = math.rsqrt %95 : vector<128x1xf32>
    %97 = vector.broadcast %96 : vector<128x1xf32> to vector<128x32xf32>
    %98 = arith.mulf %93, %97 : vector<128x32xf32>
    %99 = vector.broadcast %79 : vector<1x32xf32> to vector<128x32xf32>
    %100 = arith.mulf %98, %99 : vector<128x32xf32>
    %101 = vector.broadcast %80 : vector<1x32xf32> to vector<128x32xf32>
    %102 = arith.addf %100, %101 : vector<128x32xf32>
    %c1_i32_24 = arith.constant 1 : i32
    %103 = tpu.dynamic_rotate %102 by %c1_i32_24 dim 0 : vector<128x32xf32>, i32 -> vector<128x32xf32>
    %c-1_i32_25 = arith.constant -1 : i32
    %104 = vector.broadcast %c-1_i32_25 : i32 to vector<128x1xi32>
    %105 = arith.addi %2, %104 : vector<128x1xi32>
    %c0_i32_26 = arith.constant 0 : i32
    %106 = vector.broadcast %c0_i32_26 : i32 to vector<128x1xi32>
    %107 = arith.cmpi sge, %105, %106 : vector<128x1xi32>
    %c-1_i32_27 = arith.constant -1 : i32
    %108 = vector.broadcast %c-1_i32_27 : i32 to vector<128x1xi32>
    %109 = arith.addi %2, %108 : vector<128x1xi32>
    %c16_i32_28 = arith.constant 16 : i32
    %110 = vector.broadcast %c16_i32_28 : i32 to vector<128x1xi32>
    %111 = arith.cmpi slt, %109, %110 : vector<128x1xi32>
    %112 = arith.andi %107, %111 : vector<128x1xi1>
    %cst_29 = arith.constant 0.000000e+00 : f32
    %113 = vector.shape_cast %112 : vector<128x1xi1> to vector<128x1xi1>
    %114 = vector.broadcast %113 : vector<128x1xi1> to vector<128x32xi1>
    %115 = vector.broadcast %cst_29 : f32 to vector<128x32xf32>
    %116 = arith.select %114, %103, %115 : vector<128x32xi1>, vector<128x32xf32>
    %c127_i32_30 = arith.constant 127 : i32
    %117 = tpu.dynamic_rotate %102 by %c127_i32_30 dim 0 : vector<128x32xf32>, i32 -> vector<128x32xf32>
    %c1_i32_31 = arith.constant 1 : i32
    %118 = vector.broadcast %c1_i32_31 : i32 to vector<128x1xi32>
    %119 = arith.addi %2, %118 : vector<128x1xi32>
    %c0_i32_32 = arith.constant 0 : i32
    %120 = vector.broadcast %c0_i32_32 : i32 to vector<128x1xi32>
    %121 = arith.cmpi sge, %119, %120 : vector<128x1xi32>
    %c1_i32_33 = arith.constant 1 : i32
    %122 = vector.broadcast %c1_i32_33 : i32 to vector<128x1xi32>
    %123 = arith.addi %2, %122 : vector<128x1xi32>
    %c16_i32_34 = arith.constant 16 : i32
    %124 = vector.broadcast %c16_i32_34 : i32 to vector<128x1xi32>
    %125 = arith.cmpi slt, %123, %124 : vector<128x1xi32>
    %126 = arith.andi %121, %125 : vector<128x1xi1>
    %cst_35 = arith.constant 0.000000e+00 : f32
    %127 = vector.shape_cast %126 : vector<128x1xi1> to vector<128x1xi1>
    %128 = vector.broadcast %127 : vector<128x1xi1> to vector<128x32xi1>
    %129 = vector.broadcast %cst_35 : f32 to vector<128x32xf32>
    %130 = arith.select %128, %117, %129 : vector<128x32xi1>, vector<128x32xf32>
    %131 = tpu.concatenate %116, %102, %130 in 1 : vector<128x32xf32>, vector<128x32xf32>, vector<128x32xf32> -> vector<128x96xf32>
    %132 = arith.truncf %131 : vector<128x96xf32> to vector<128x96xbf16>
    %cst_36 = arith.constant dense<0.000000e+00> : vector<128x32xf32>
    %133 = tpu.matmul %132, %42, %cst_36 {dimension_numbers = #tpu.dot_dimension_numbers<[1], [0], [0], [1], [0, 0, 1, 1], [], []>} : vector<128x96xbf16>, vector<96x32xbf16>, vector<128x32xf32> -> vector<128x32xf32>
    %134 = vector.extract_strided_slice %40 {offsets = [3, 0], sizes = [1, 32], strides = [1, 1]} : vector<8x32xf32> to vector<1x32xf32>
    %135 = vector.broadcast %134 : vector<1x32xf32> to vector<128x32xf32>
    %136 = arith.addf %133, %135 : vector<128x32xf32>
    %cst_37 = arith.constant 0.000000e+00 : f32
    %137 = vector.broadcast %cst_37 : f32 to vector<128x32xf32>
    %138 = arith.maximumf %136, %137 : vector<128x32xf32>
    %139 = vector.extract_strided_slice %40 {offsets = [4, 0], sizes = [1, 32], strides = [1, 1]} : vector<8x32xf32> to vector<1x32xf32>
    %140 = vector.extract_strided_slice %40 {offsets = [5, 0], sizes = [1, 32], strides = [1, 1]} : vector<8x32xf32> to vector<1x32xf32>
    %cst_38 = arith.constant dense<0.000000e+00> : vector<128xf32>
    %141 = vector.multi_reduction <add>, %138, %cst_38 [1] : vector<128x32xf32> to vector<128xf32>
    %142 = vector.shape_cast %141 : vector<128xf32> to vector<128x1xf32>
    %cst_39 = arith.constant 3.200000e+01 : f32
    %143 = vector.broadcast %cst_39 : f32 to vector<128x1xf32>
    %144 = arith.divf %142, %143 : vector<128x1xf32>
    %145 = vector.broadcast %144 : vector<128x1xf32> to vector<128x32xf32>
    %146 = arith.subf %138, %145 : vector<128x32xf32>
    %147 = arith.mulf %146, %146 : vector<128x32xf32>
    %cst_40 = arith.constant dense<0.000000e+00> : vector<128xf32>
    %148 = vector.multi_reduction <add>, %147, %cst_40 [1] : vector<128x32xf32> to vector<128xf32>
    %149 = vector.shape_cast %148 : vector<128xf32> to vector<128x1xf32>
    %cst_41 = arith.constant 3.200000e+01 : f32
    %150 = vector.broadcast %cst_41 : f32 to vector<128x1xf32>
    %151 = arith.divf %149, %150 : vector<128x1xf32>
    %152 = vector.broadcast %144 : vector<128x1xf32> to vector<128x32xf32>
    %153 = arith.subf %138, %152 : vector<128x32xf32>
    %cst_42 = arith.constant 9.99999974E-6 : f32
    %154 = vector.broadcast %cst_42 : f32 to vector<128x1xf32>
    %155 = arith.addf %151, %154 : vector<128x1xf32>
    %156 = math.rsqrt %155 : vector<128x1xf32>
    %157 = vector.broadcast %156 : vector<128x1xf32> to vector<128x32xf32>
    %158 = arith.mulf %153, %157 : vector<128x32xf32>
    %159 = vector.broadcast %139 : vector<1x32xf32> to vector<128x32xf32>
    %160 = arith.mulf %158, %159 : vector<128x32xf32>
    %161 = vector.broadcast %140 : vector<1x32xf32> to vector<128x32xf32>
    %162 = arith.addf %160, %161 : vector<128x32xf32>
    %163 = vector.extract_strided_slice %40 {offsets = [6, 0], sizes = [1, 32], strides = [1, 1]} : vector<8x32xf32> to vector<1x32xf32>
    %164 = vector.broadcast %163 : vector<1x32xf32> to vector<128x32xf32>
    %165 = arith.mulf %162, %164 : vector<128x32xf32>
    %cst_43 = arith.constant dense<0.000000e+00> : vector<128xf32>
    %166 = vector.multi_reduction <add>, %165, %cst_43 [1] : vector<128x32xf32> to vector<128xf32>
    %167 = vector.shape_cast %166 : vector<128xf32> to vector<128x1xf32>
    %168 = vector.extract_strided_slice %40 {offsets = [7, 0], sizes = [1, 1], strides = [1, 1]} : vector<8x32xf32> to vector<1x1xf32>
    %169 = vector.broadcast %168 : vector<1x1xf32> to vector<128x1xf32>
    %170 = arith.addf %167, %169 : vector<128x1xf32>
    %cst_44 = arith.constant 0.000000e+00 : f32
    %171 = vector.broadcast %cst_44 : f32 to vector<128x1xf32>
    %172 = arith.select %36, %170, %171 : vector<128x1xi1>, vector<128x1xf32>
    %c0_45 = arith.constant 0 : index
    %c0_46 = arith.constant 0 : index
    %173 = vector.load %arg7[%c0_45, %c0_46] : memref<2x128xf32, #tpu.memory_space<vmem>>, vector<1x128xf32>
    %174 = vector.broadcast %173 : vector<1x128xf32> to vector<128x128xf32>
    %175 = vector.broadcast %172 : vector<128x1xf32> to vector<128x128xf32>
    %176 = arith.cmpf olt, %174, %175 : vector<128x128xf32>
    %177 = arith.extui %176 : vector<128x128xi1> to vector<128x128xi32>
    %cst_47 = arith.constant dense<0> : vector<128xi32>
    %178 = vector.multi_reduction <add>, %177, %cst_47 [1] : vector<128x128xi32> to vector<128xi32>
    %179 = vector.shape_cast %178 : vector<128xi32> to vector<128x1xi32>
    %180 = tpu.iota {dimensions = array<i32: 1>} : vector<128x128xi32>
    %181 = vector.broadcast %179 : vector<128x1xi32> to vector<128x128xi32>
    %182 = arith.cmpi eq, %180, %181 : vector<128x128xi32>
    %183 = arith.extui %182 : vector<128x128xi1> to vector<128x128xi32>
    %184 = arith.sitofp %183 : vector<128x128xi32> to vector<128x128xf32>
    %185 = arith.truncf %184 : vector<128x128xf32> to vector<128x128xbf16>
    %cst_48 = arith.constant dense<0.000000e+00> : vector<128x32xf32>
    %186 = tpu.matmul %185, %39, %cst_48 {dimension_numbers = #tpu.dot_dimension_numbers<[1], [0], [0], [1], [0, 0, 1, 1], [], []>} : vector<128x128xbf16>, vector<128x32xbf16>, vector<128x32xf32> -> vector<128x32xf32>
    %187 = arith.addf %38, %186 : vector<128x32xf32>
    %c0_49 = arith.constant 0 : index
    %c0_50 = arith.constant 0 : index
    %188 = vector.load %arg6[%c0_49, %c0_50] : memref<8x32xf32, #tpu.memory_space<vmem>>, vector<8x32xf32>
    %c0_51 = arith.constant 0 : index
    %c0_52 = arith.constant 0 : index
    %189 = vector.load %arg5[%c0_51, %c0_52] : memref<192x32xbf16, #tpu.memory_space<vmem>>, vector<96x32xbf16>
    %c96_53 = arith.constant 96 : index
    %c0_54 = arith.constant 0 : index
    %190 = vector.load %arg5[%c96_53, %c0_54] : memref<192x32xbf16, #tpu.memory_space<vmem>>, vector<96x32xbf16>
    %c1_i32_55 = arith.constant 1 : i32
    %191 = tpu.dynamic_rotate %187 by %c1_i32_55 dim 0 : vector<128x32xf32>, i32 -> vector<128x32xf32>
    %c-1_i32_56 = arith.constant -1 : i32
    %192 = vector.broadcast %c-1_i32_56 : i32 to vector<128x1xi32>
    %193 = arith.addi %2, %192 : vector<128x1xi32>
    %c0_i32_57 = arith.constant 0 : i32
    %194 = vector.broadcast %c0_i32_57 : i32 to vector<128x1xi32>
    %195 = arith.cmpi sge, %193, %194 : vector<128x1xi32>
    %c-1_i32_58 = arith.constant -1 : i32
    %196 = vector.broadcast %c-1_i32_58 : i32 to vector<128x1xi32>
    %197 = arith.addi %2, %196 : vector<128x1xi32>
    %c16_i32_59 = arith.constant 16 : i32
    %198 = vector.broadcast %c16_i32_59 : i32 to vector<128x1xi32>
    %199 = arith.cmpi slt, %197, %198 : vector<128x1xi32>
    %200 = arith.andi %195, %199 : vector<128x1xi1>
    %cst_60 = arith.constant 0.000000e+00 : f32
    %201 = vector.shape_cast %200 : vector<128x1xi1> to vector<128x1xi1>
    %202 = vector.broadcast %201 : vector<128x1xi1> to vector<128x32xi1>
    %203 = vector.broadcast %cst_60 : f32 to vector<128x32xf32>
    %204 = arith.select %202, %191, %203 : vector<128x32xi1>, vector<128x32xf32>
    %c127_i32_61 = arith.constant 127 : i32
    %205 = tpu.dynamic_rotate %187 by %c127_i32_61 dim 0 : vector<128x32xf32>, i32 -> vector<128x32xf32>
    %c1_i32_62 = arith.constant 1 : i32
    %206 = vector.broadcast %c1_i32_62 : i32 to vector<128x1xi32>
    %207 = arith.addi %2, %206 : vector<128x1xi32>
    %c0_i32_63 = arith.constant 0 : i32
    %208 = vector.broadcast %c0_i32_63 : i32 to vector<128x1xi32>
    %209 = arith.cmpi sge, %207, %208 : vector<128x1xi32>
    %c1_i32_64 = arith.constant 1 : i32
    %210 = vector.broadcast %c1_i32_64 : i32 to vector<128x1xi32>
    %211 = arith.addi %2, %210 : vector<128x1xi32>
    %c16_i32_65 = arith.constant 16 : i32
    %212 = vector.broadcast %c16_i32_65 : i32 to vector<128x1xi32>
    %213 = arith.cmpi slt, %211, %212 : vector<128x1xi32>
    %214 = arith.andi %209, %213 : vector<128x1xi1>
    %cst_66 = arith.constant 0.000000e+00 : f32
    %215 = vector.shape_cast %214 : vector<128x1xi1> to vector<128x1xi1>
    %216 = vector.broadcast %215 : vector<128x1xi1> to vector<128x32xi1>
    %217 = vector.broadcast %cst_66 : f32 to vector<128x32xf32>
    %218 = arith.select %216, %205, %217 : vector<128x32xi1>, vector<128x32xf32>
    %219 = tpu.concatenate %204, %187, %218 in 1 : vector<128x32xf32>, vector<128x32xf32>, vector<128x32xf32> -> vector<128x96xf32>
    %220 = arith.truncf %219 : vector<128x96xf32> to vector<128x96xbf16>
    %cst_67 = arith.constant dense<0.000000e+00> : vector<128x32xf32>
    %221 = tpu.matmul %220, %189, %cst_67 {dimension_numbers = #tpu.dot_dimension_numbers<[1], [0], [0], [1], [0, 0, 1, 1], [], []>} : vector<128x96xbf16>, vector<96x32xbf16>, vector<128x32xf32> -> vector<128x32xf32>
    %222 = vector.extract_strided_slice %188 {offsets = [0, 0], sizes = [1, 32], strides = [1, 1]} : vector<8x32xf32> to vector<1x32xf32>
    %223 = vector.broadcast %222 : vector<1x32xf32> to vector<128x32xf32>
    %224 = arith.addf %221, %223 : vector<128x32xf32>
    %cst_68 = arith.constant 0.000000e+00 : f32
    %225 = vector.broadcast %cst_68 : f32 to vector<128x32xf32>
    %226 = arith.maximumf %224, %225 : vector<128x32xf32>
    %227 = vector.extract_strided_slice %188 {offsets = [1, 0], sizes = [1, 32], strides = [1, 1]} : vector<8x32xf32> to vector<1x32xf32>
    %228 = vector.extract_strided_slice %188 {offsets = [2, 0], sizes = [1, 32], strides = [1, 1]} : vector<8x32xf32> to vector<1x32xf32>
    %cst_69 = arith.constant dense<0.000000e+00> : vector<128xf32>
    %229 = vector.multi_reduction <add>, %226, %cst_69 [1] : vector<128x32xf32> to vector<128xf32>
    %230 = vector.shape_cast %229 : vector<128xf32> to vector<128x1xf32>
    %cst_70 = arith.constant 3.200000e+01 : f32
    %231 = vector.broadcast %cst_70 : f32 to vector<128x1xf32>
    %232 = arith.divf %230, %231 : vector<128x1xf32>
    %233 = vector.broadcast %232 : vector<128x1xf32> to vector<128x32xf32>
    %234 = arith.subf %226, %233 : vector<128x32xf32>
    %235 = arith.mulf %234, %234 : vector<128x32xf32>
    %cst_71 = arith.constant dense<0.000000e+00> : vector<128xf32>
    %236 = vector.multi_reduction <add>, %235, %cst_71 [1] : vector<128x32xf32> to vector<128xf32>
    %237 = vector.shape_cast %236 : vector<128xf32> to vector<128x1xf32>
    %cst_72 = arith.constant 3.200000e+01 : f32
    %238 = vector.broadcast %cst_72 : f32 to vector<128x1xf32>
    %239 = arith.divf %237, %238 : vector<128x1xf32>
    %240 = vector.broadcast %232 : vector<128x1xf32> to vector<128x32xf32>
    %241 = arith.subf %226, %240 : vector<128x32xf32>
    %cst_73 = arith.constant 9.99999974E-6 : f32
    %242 = vector.broadcast %cst_73 : f32 to vector<128x1xf32>
    %243 = arith.addf %239, %242 : vector<128x1xf32>
    %244 = math.rsqrt %243 : vector<128x1xf32>
    %245 = vector.broadcast %244 : vector<128x1xf32> to vector<128x32xf32>
    %246 = arith.mulf %241, %245 : vector<128x32xf32>
    %247 = vector.broadcast %227 : vector<1x32xf32> to vector<128x32xf32>
    %248 = arith.mulf %246, %247 : vector<128x32xf32>
    %249 = vector.broadcast %228 : vector<1x32xf32> to vector<128x32xf32>
    %250 = arith.addf %248, %249 : vector<128x32xf32>
    %c1_i32_74 = arith.constant 1 : i32
    %251 = tpu.dynamic_rotate %250 by %c1_i32_74 dim 0 : vector<128x32xf32>, i32 -> vector<128x32xf32>
    %c-1_i32_75 = arith.constant -1 : i32
    %252 = vector.broadcast %c-1_i32_75 : i32 to vector<128x1xi32>
    %253 = arith.addi %2, %252 : vector<128x1xi32>
    %c0_i32_76 = arith.constant 0 : i32
    %254 = vector.broadcast %c0_i32_76 : i32 to vector<128x1xi32>
    %255 = arith.cmpi sge, %253, %254 : vector<128x1xi32>
    %c-1_i32_77 = arith.constant -1 : i32
    %256 = vector.broadcast %c-1_i32_77 : i32 to vector<128x1xi32>
    %257 = arith.addi %2, %256 : vector<128x1xi32>
    %c16_i32_78 = arith.constant 16 : i32
    %258 = vector.broadcast %c16_i32_78 : i32 to vector<128x1xi32>
    %259 = arith.cmpi slt, %257, %258 : vector<128x1xi32>
    %260 = arith.andi %255, %259 : vector<128x1xi1>
    %cst_79 = arith.constant 0.000000e+00 : f32
    %261 = vector.shape_cast %260 : vector<128x1xi1> to vector<128x1xi1>
    %262 = vector.broadcast %261 : vector<128x1xi1> to vector<128x32xi1>
    %263 = vector.broadcast %cst_79 : f32 to vector<128x32xf32>
    %264 = arith.select %262, %251, %263 : vector<128x32xi1>, vector<128x32xf32>
    %c127_i32_80 = arith.constant 127 : i32
    %265 = tpu.dynamic_rotate %250 by %c127_i32_80 dim 0 : vector<128x32xf32>, i32 -> vector<128x32xf32>
    %c1_i32_81 = arith.constant 1 : i32
    %266 = vector.broadcast %c1_i32_81 : i32 to vector<128x1xi32>
    %267 = arith.addi %2, %266 : vector<128x1xi32>
    %c0_i32_82 = arith.constant 0 : i32
    %268 = vector.broadcast %c0_i32_82 : i32 to vector<128x1xi32>
    %269 = arith.cmpi sge, %267, %268 : vector<128x1xi32>
    %c1_i32_83 = arith.constant 1 : i32
    %270 = vector.broadcast %c1_i32_83 : i32 to vector<128x1xi32>
    %271 = arith.addi %2, %270 : vector<128x1xi32>
    %c16_i32_84 = arith.constant 16 : i32
    %272 = vector.broadcast %c16_i32_84 : i32 to vector<128x1xi32>
    %273 = arith.cmpi slt, %271, %272 : vector<128x1xi32>
    %274 = arith.andi %269, %273 : vector<128x1xi1>
    %cst_85 = arith.constant 0.000000e+00 : f32
    %275 = vector.shape_cast %274 : vector<128x1xi1> to vector<128x1xi1>
    %276 = vector.broadcast %275 : vector<128x1xi1> to vector<128x32xi1>
    %277 = vector.broadcast %cst_85 : f32 to vector<128x32xf32>
    %278 = arith.select %276, %265, %277 : vector<128x32xi1>, vector<128x32xf32>
    %279 = tpu.concatenate %264, %250, %278 in 1 : vector<128x32xf32>, vector<128x32xf32>, vector<128x32xf32> -> vector<128x96xf32>
    %280 = arith.truncf %279 : vector<128x96xf32> to vector<128x96xbf16>
    %cst_86 = arith.constant dense<0.000000e+00> : vector<128x32xf32>
    %281 = tpu.matmul %280, %190, %cst_86 {dimension_numbers = #tpu.dot_dimension_numbers<[1], [0], [0], [1], [0, 0, 1, 1], [], []>} : vector<128x96xbf16>, vector<96x32xbf16>, vector<128x32xf32> -> vector<128x32xf32>
    %282 = vector.extract_strided_slice %188 {offsets = [3, 0], sizes = [1, 32], strides = [1, 1]} : vector<8x32xf32> to vector<1x32xf32>
    %283 = vector.broadcast %282 : vector<1x32xf32> to vector<128x32xf32>
    %284 = arith.addf %281, %283 : vector<128x32xf32>
    %cst_87 = arith.constant 0.000000e+00 : f32
    %285 = vector.broadcast %cst_87 : f32 to vector<128x32xf32>
    %286 = arith.maximumf %284, %285 : vector<128x32xf32>
    %287 = vector.extract_strided_slice %188 {offsets = [4, 0], sizes = [1, 32], strides = [1, 1]} : vector<8x32xf32> to vector<1x32xf32>
    %288 = vector.extract_strided_slice %188 {offsets = [5, 0], sizes = [1, 32], strides = [1, 1]} : vector<8x32xf32> to vector<1x32xf32>
    %cst_88 = arith.constant dense<0.000000e+00> : vector<128xf32>
    %289 = vector.multi_reduction <add>, %286, %cst_88 [1] : vector<128x32xf32> to vector<128xf32>
    %290 = vector.shape_cast %289 : vector<128xf32> to vector<128x1xf32>
    %cst_89 = arith.constant 3.200000e+01 : f32
    %291 = vector.broadcast %cst_89 : f32 to vector<128x1xf32>
    %292 = arith.divf %290, %291 : vector<128x1xf32>
    %293 = vector.broadcast %292 : vector<128x1xf32> to vector<128x32xf32>
    %294 = arith.subf %286, %293 : vector<128x32xf32>
    %295 = arith.mulf %294, %294 : vector<128x32xf32>
    %cst_90 = arith.constant dense<0.000000e+00> : vector<128xf32>
    %296 = vector.multi_reduction <add>, %295, %cst_90 [1] : vector<128x32xf32> to vector<128xf32>
    %297 = vector.shape_cast %296 : vector<128xf32> to vector<128x1xf32>
    %cst_91 = arith.constant 3.200000e+01 : f32
    %298 = vector.broadcast %cst_91 : f32 to vector<128x1xf32>
    %299 = arith.divf %297, %298 : vector<128x1xf32>
    %300 = vector.broadcast %292 : vector<128x1xf32> to vector<128x32xf32>
    %301 = arith.subf %286, %300 : vector<128x32xf32>
    %cst_92 = arith.constant 9.99999974E-6 : f32
    %302 = vector.broadcast %cst_92 : f32 to vector<128x1xf32>
    %303 = arith.addf %299, %302 : vector<128x1xf32>
    %304 = math.rsqrt %303 : vector<128x1xf32>
    %305 = vector.broadcast %304 : vector<128x1xf32> to vector<128x32xf32>
    %306 = arith.mulf %301, %305 : vector<128x32xf32>
    %307 = vector.broadcast %287 : vector<1x32xf32> to vector<128x32xf32>
    %308 = arith.mulf %306, %307 : vector<128x32xf32>
    %309 = vector.broadcast %288 : vector<1x32xf32> to vector<128x32xf32>
    %310 = arith.addf %308, %309 : vector<128x32xf32>
    %311 = vector.extract_strided_slice %188 {offsets = [6, 0], sizes = [1, 32], strides = [1, 1]} : vector<8x32xf32> to vector<1x32xf32>
    %312 = vector.broadcast %311 : vector<1x32xf32> to vector<128x32xf32>
    %313 = arith.mulf %310, %312 : vector<128x32xf32>
    %cst_93 = arith.constant dense<0.000000e+00> : vector<128xf32>
    %314 = vector.multi_reduction <add>, %313, %cst_93 [1] : vector<128x32xf32> to vector<128xf32>
    %315 = vector.shape_cast %314 : vector<128xf32> to vector<128x1xf32>
    %316 = vector.extract_strided_slice %188 {offsets = [7, 0], sizes = [1, 1], strides = [1, 1]} : vector<8x32xf32> to vector<1x1xf32>
    %317 = vector.broadcast %316 : vector<1x1xf32> to vector<128x1xf32>
    %318 = arith.addf %315, %317 : vector<128x1xf32>
    %cst_94 = arith.constant 0.000000e+00 : f32
    %319 = vector.broadcast %cst_94 : f32 to vector<128x1xf32>
    %320 = arith.select %36, %318, %319 : vector<128x1xi1>, vector<128x1xf32>
    %c1 = arith.constant 1 : index
    %c0_95 = arith.constant 0 : index
    %321 = vector.load %arg7[%c1, %c0_95] : memref<2x128xf32, #tpu.memory_space<vmem>>, vector<1x128xf32>
    %322 = vector.broadcast %321 : vector<1x128xf32> to vector<128x128xf32>
    %323 = vector.broadcast %320 : vector<128x1xf32> to vector<128x128xf32>
    %324 = arith.cmpf olt, %322, %323 : vector<128x128xf32>
    %325 = arith.extui %324 : vector<128x128xi1> to vector<128x128xi32>
    %cst_96 = arith.constant dense<0> : vector<128xi32>
    %326 = vector.multi_reduction <add>, %325, %cst_96 [1] : vector<128x128xi32> to vector<128xi32>
    %327 = vector.shape_cast %326 : vector<128xi32> to vector<128x1xi32>
    %328 = tpu.iota {dimensions = array<i32: 1>} : vector<128x128xi32>
    %329 = vector.broadcast %327 : vector<128x1xi32> to vector<128x128xi32>
    %330 = arith.cmpi eq, %328, %329 : vector<128x128xi32>
    %331 = arith.extui %330 : vector<128x128xi1> to vector<128x128xi32>
    %332 = arith.sitofp %331 : vector<128x128xi32> to vector<128x128xf32>
    %333 = arith.truncf %332 : vector<128x128xf32> to vector<128x128xbf16>
    %cst_97 = arith.constant dense<0.000000e+00> : vector<128x32xf32>
    %334 = tpu.matmul %333, %39, %cst_97 {dimension_numbers = #tpu.dot_dimension_numbers<[1], [0], [0], [1], [0, 0, 1, 1], [], []>} : vector<128x128xbf16>, vector<128x32xbf16>, vector<128x32xf32> -> vector<128x32xf32>
    %335 = arith.addf %187, %334 : vector<128x32xf32>
    %336 = vector.shape_cast %335 : vector<128x32xf32> to vector<8x16x32xf32>
    %c0_98 = arith.constant 0 : index
    %c0_99 = arith.constant 0 : index
    %c0_100 = arith.constant 0 : index
    %337 = vector.load %arg9[%c0_98, %c0_99, %c0_100] : memref<8x16x32xf32, #tpu.memory_space<vmem>>, vector<8x16x32xf32>
    tpu.vector_store %arg9[%c0_98, %c0_99, %c0_100], %336 {strides = array<i32>} : memref<8x16x32xf32, #tpu.memory_space<vmem>>, vector<8x16x32xf32>,
    %338 = vector.shape_cast %172 : vector<128x1xf32> to vector<8x16x1xf32>
    %c0_101 = arith.constant 0 : index
    %c0_102 = arith.constant 0 : index
    %c0_103 = arith.constant 0 : index
    %339 = vector.load %arg10[%c0_101, %c0_102, %c0_103] : memref<8x16x1xf32, #tpu.memory_space<vmem>>, vector<8x16x1xf32>
    tpu.vector_store %arg10[%c0_101, %c0_102, %c0_103], %338 {strides = array<i32>} : memref<8x16x1xf32, #tpu.memory_space<vmem>>, vector<8x16x1xf32>,
    %340 = vector.shape_cast %320 : vector<128x1xf32> to vector<8x16x1xf32>
    %c0_104 = arith.constant 0 : index
    %c0_105 = arith.constant 0 : index
    %c0_106 = arith.constant 0 : index
    %341 = vector.load %arg11[%c0_104, %c0_105, %c0_106] : memref<8x16x1xf32, #tpu.memory_space<vmem>>, vector<8x16x1xf32>
    tpu.vector_store %arg11[%c0_104, %c0_105, %c0_106], %340 {strides = array<i32>} : memref<8x16x1xf32, #tpu.memory_space<vmem>>, vector<8x16x1xf32>,
    return
  }
  func.func @transform_0(%arg0: i32, %arg1: memref<16xi32, #tpu.memory_space<smem>>) -> (i32, i32, i32) {
    %c0_i32 = arith.constant 0 : i32
    %c0_i32_0 = arith.constant 0 : i32
    %c0_i32_1 = arith.constant 0 : i32
    return %arg0, %c0_i32, %c0_i32_0 : i32, i32, i32
  }
  func.func @transform_1(%arg0: i32, %arg1: memref<16xi32, #tpu.memory_space<smem>>) -> (i32, i32) {
    %c0_i32 = arith.constant 0 : i32
    %c0_i32_0 = arith.constant 0 : i32
    %c0_i32_1 = arith.constant 0 : i32
    return %c0_i32, %c0_i32_0 : i32, i32
  }
  func.func @transform_2(%arg0: i32, %arg1: memref<16xi32, #tpu.memory_space<smem>>) -> (i32, i32) {
    %c0_i32 = arith.constant 0 : i32
    %c0_i32_0 = arith.constant 0 : i32
    %c0_i32_1 = arith.constant 0 : i32
    return %c0_i32, %c0_i32_0 : i32, i32
  }
  func.func @transform_3(%arg0: i32, %arg1: memref<16xi32, #tpu.memory_space<smem>>) -> (i32, i32) {
    %c0_i32 = arith.constant 0 : i32
    %c0_i32_0 = arith.constant 0 : i32
    %c0_i32_1 = arith.constant 0 : i32
    return %c0_i32, %c0_i32_0 : i32, i32
  }
  func.func @transform_4(%arg0: i32, %arg1: memref<16xi32, #tpu.memory_space<smem>>) -> (i32, i32) {
    %c0_i32 = arith.constant 0 : i32
    %c0_i32_0 = arith.constant 0 : i32
    %c0_i32_1 = arith.constant 0 : i32
    return %c0_i32, %c0_i32_0 : i32, i32
  }
  func.func @transform_5(%arg0: i32, %arg1: memref<16xi32, #tpu.memory_space<smem>>) -> (i32, i32) {
    %c0_i32 = arith.constant 0 : i32
    %c0_i32_0 = arith.constant 0 : i32
    %c0_i32_1 = arith.constant 0 : i32
    return %c0_i32, %c0_i32_0 : i32, i32
  }
  func.func @transform_6(%arg0: i32, %arg1: memref<16xi32, #tpu.memory_space<smem>>) -> (i32, i32) {
    %c0_i32 = arith.constant 0 : i32
    %c0_i32_0 = arith.constant 0 : i32
    %c0_i32_1 = arith.constant 0 : i32
    return %c0_i32, %c0_i32_0 : i32, i32
  }
  func.func @transform_7(%arg0: i32, %arg1: memref<16xi32, #tpu.memory_space<smem>>) -> (i32, i32, i32) {
    %c0_i32 = arith.constant 0 : i32
    %c0_i32_0 = arith.constant 0 : i32
    %c0_i32_1 = arith.constant 0 : i32
    return %arg0, %c0_i32, %c0_i32_0 : i32, i32, i32
  }
  func.func @transform_8(%arg0: i32, %arg1: memref<16xi32, #tpu.memory_space<smem>>) -> (i32, i32, i32) {
    %c0_i32 = arith.constant 0 : i32
    %c0_i32_0 = arith.constant 0 : i32
    %c0_i32_1 = arith.constant 0 : i32
    return %arg0, %c0_i32, %c0_i32_0 : i32, i32, i32
  }
  func.func @transform_9(%arg0: i32, %arg1: memref<16xi32, #tpu.memory_space<smem>>) -> (i32, i32, i32) {
    %c0_i32 = arith.constant 0 : i32
    %c0_i32_0 = arith.constant 0 : i32
    %c0_i32_1 = arith.constant 0 : i32
    return %arg0, %c0_i32, %c0_i32_0 : i32, i32, i32
  }
}

</mosaic_0001>

<llo_original>
// kernel: tpu_custom_call.1
$region0: #{tpu_custom_call.1}
  #allocation0 [shape = 'u32[]', space=smem, size = 0x4, offset = 0x4, fixed_abs, tag = 'smem constant byte address 0x4 - core index']
  #allocation1 [shape = 'u32[144,128]{1,0:T(1,128)}', space=vmem, size = 0x12000, scoped, tag = 'internal scratch']
  #allocation2 [shape = 's32[1]{0}', space=sflag, size = 0x4, scoped, tag = 'scoped memory for tpu_custom_call.1']
  #allocation3 [shape = 'u8[512]{0}', space=smem, size = 0x200, scoped, tag = 'prefetched SMEM operand 0']
  %s0 = inlined_call_operand.vmem [shape: s32[16], index: 0, kind: input, shape index: {}]
  %s1 = inlined_call_operand.vmem [shape: f32[16,16,32], index: 1, kind: input, shape index: {}]
  %s2 = inlined_call_operand.vmem [shape: bf16[192,32], index: 2, kind: input, shape index: {}]
  %s3 = inlined_call_operand.vmem [shape: f32[8,32], index: 3, kind: input, shape index: {}]
  %s4 = inlined_call_operand.vmem [shape: bf16[192,32], index: 4, kind: input, shape index: {}]
  %s5 = inlined_call_operand.vmem [shape: f32[8,32], index: 5, kind: input, shape index: {}]
  %s6 = inlined_call_operand.vmem [shape: f32[2,128], index: 6, kind: input, shape index: {}]
  %s7 = inlined_call_operand.vmem [shape: bf16[128,32], index: 7, kind: input, shape index: {}]
  %s8 = inlined_call_operand.hbm [shape: f32[16,16,32], index: 8, kind: output, shape index: {0}]
  %s9 = inlined_call_operand.vmem [shape: f32[16,16,1], index: 9, kind: output, shape index: {1}]
  %s10 = inlined_call_operand.vmem [shape: f32[16,16,1], index: 10, kind: output, shape index: {2}]
  %11 = xla_tuple %s8, %s9, %s10
  %s12 = sld [smem:[#allocation0]]
  $region77: #{tpu_custom_call.1} parent=0
    _
  %s14 = ssub.s32 1, %s12
  %s15 = scalar_select 0, %s14, %s12
  %s16 = sshll.u32 %s0, 4
  %s17 = int_to_ptr.vmem [resolvable:$true] %s16
  %19 = dma.vmem_to_smem %s17, 16, [#allocation3], [#allocation2]
  %20 = dma.done [#allocation2], 16
  %21 = sfence
  $region1: #{tpu_custom_call.1} parent=0
    #allocation4 [shape = 'u8[131072]{0}', space=vmem, size = 0x20000, scoped, tag = 'output window, operand 0']
    #allocation5 [shape = 's32[2]{0}', space=sflag, size = 0x8, scoped, tag = 'scoped memory for tpu_custom_call.1']
    %22 = vsyncpa [#allocation5], 0
    %s23 = scalar_lea.sflag [#allocation5], 1
    %24 = vsyncpa %s23, 0
    loop: start=0, step=1, limit=4
    $region2: #{tpu_custom_call.1} parent=1 // loop_pre_header
      _
    $region3: #{tpu_custom_call.1} parent=1 // loop_header
      %s26 = sphi 0, %s30
      %p27 = scmp.ge.s32.totalorder %s26, 4
      %s36 = sphi 0, %s38
      %s39 = sphi 0, %s36
      %s40 = sphi 0, %s39
      %s56 = sphi 0, %s40
      %s60 = sphi 0, %s60
      %s62 = sphi 0, %s60
      %s63 = sphi 0, %s62
      %s77 = sphi 0, %s63
      %s81 = sphi 0, %s81
      %s83 = sphi 0, %s81
      %s84 = sphi 0, %s83
      %s98 = sphi 0, %s84
      %s102 = sphi 0, %s102
      %s104 = sphi 0, %s102
      %s105 = sphi 0, %s104
      %s119 = sphi 0, %s105
      %s123 = sphi 0, %s123
      %s125 = sphi 0, %s123
      %s126 = sphi 0, %s125
      %s140 = sphi 0, %s126
      %s144 = sphi 0, %s144
      %s146 = sphi 0, %s144
      %s147 = sphi 0, %s146
      %s161 = sphi 0, %s147
      %s165 = sphi 0, %s165
      %s167 = sphi 0, %s165
      %s168 = sphi 0, %s167
      %s182 = sphi 0, %s168
      %s188 = sphi 0, %s190
      %s191 = sphi 0, %s188
      %s192 = sphi 0, %s191
      %s208 = sphi 0, %s192
      %s214 = sphi 0, %s216
      %s217 = sphi 0, %s214
      %s218 = sphi 0, %s217
      %s234 = sphi 0, %s218
      %s240 = sphi 0, %s242
      %s243 = sphi 0, %s240
      %s244 = sphi 0, %s243
      %s260 = sphi 0, %s244
    $region4: #{tpu_custom_call.1} parent=1 // loop_header_branch
      %29 = sbr.rel (%p27) target = $region8
    $region5: #{tpu_custom_call.1} parent=1 // loop_body
      %s31 = ssub.s32 %s26, 1
      %s32 = ssub.s32 %s26, 2
      %s33 = sadd.s32 %s26, 1
      %s34 = ssub.s32 %s26, %s33
      %p35 = scmp.eq.s32.totalorder %s34, 0
      %s37 = sadd.s32 %s36, 1
      %s38 = scalar_select %p35, %s36, %s37
      %p41 = pneg %p35
      %p42 = scmp.eq.s32.totalorder %s26, 1
      %p43 = por %p41, %p42
      %p44 = scmp.ne.s32.totalorder %s36, %s39
      %p45 = scmp.eq.s32.totalorder %s26, 0
      %p46 = por %p44, %p45
      %p47 = scmp.ne.s32.totalorder %s36, %s39
      %p48 = scmp.eq.s32.totalorder %s31, 1
      %p49 = por %p47, %p48
      %p50 = scmp.ne.s32.totalorder %s39, %s40
      %p51 = scmp.eq.s32.totalorder %s31, 0
      %p52 = por %p50, %p51
      %p53 = scmp.ne.s32.totalorder %s39, %s40
      %p54 = scmp.eq.s32.totalorder %s32, 1
      %p55 = por %p53, %p54
      %p57 = scmp.ne.s32.totalorder %s40, %s56
      %p58 = scmp.eq.s32.totalorder %s32, 0
      %p59 = por %p57, %p58
      %s61 = sadd.s32 %s60, 1
      %p64 = scmp.eq.s32.totalorder %s26, 1
      %p65 = scmp.ne.s32.totalorder %s60, %s62
      %p66 = scmp.eq.s32.totalorder %s26, 0
      %p67 = por %p65, %p66
      %p68 = scmp.ne.s32.totalorder %s60, %s62
      %p69 = scmp.eq.s32.totalorder %s31, 1
      %p70 = por %p68, %p69
      %p71 = scmp.ne.s32.totalorder %s62, %s63
      %p72 = scmp.eq.s32.totalorder %s31, 0
      %p73 = por %p71, %p72
      %p74 = scmp.ne.s32.totalorder %s62, %s63
      %p75 = scmp.eq.s32.totalorder %s32, 1
      %p76 = por %p74, %p75
      %p78 = scmp.ne.s32.totalorder %s63, %s77
      %p79 = scmp.eq.s32.totalorder %s32, 0
      %p80 = por %p78, %p79
      %s82 = sadd.s32 %s81, 1
      %p85 = scmp.eq.s32.totalorder %s26, 1
      %p86 = scmp.ne.s32.totalorder %s81, %s83
      %p87 = scmp.eq.s32.totalorder %s26, 0
      %p88 = por %p86, %p87
      %p89 = scmp.ne.s32.totalorder %s81, %s83
      %p90 = scmp.eq.s32.totalorder %s31, 1
      %p91 = por %p89, %p90
      %p92 = scmp.ne.s32.totalorder %s83, %s84
      %p93 = scmp.eq.s32.totalorder %s31, 0
      %p94 = por %p92, %p93
      %p95 = scmp.ne.s32.totalorder %s83, %s84
      %p96 = scmp.eq.s32.totalorder %s32, 1
      %p97 = por %p95, %p96
      %p99 = scmp.ne.s32.totalorder %s84, %s98
      %p100 = scmp.eq.s32.totalorder %s32, 0
      %p101 = por %p99, %p100
      %s103 = sadd.s32 %s102, 1
      %p106 = scmp.eq.s32.totalorder %s26, 1
      %p107 = scmp.ne.s32.totalorder %s102, %s104
      %p108 = scmp.eq.s32.totalorder %s26, 0
      %p109 = por %p107, %p108
      %p110 = scmp.ne.s32.totalorder %s102, %s104
      %p111 = scmp.eq.s32.totalorder %s31, 1
      %p112 = por %p110, %p111
      %p113 = scmp.ne.s32.totalorder %s104, %s105
      %p114 = scmp.eq.s32.totalorder %s31, 0
      %p115 = por %p113, %p114
      %p116 = scmp.ne.s32.totalorder %s104, %s105
      %p117 = scmp.eq.s32.totalorder %s32, 1
      %p118 = por %p116, %p117
      %p120 = scmp.ne.s32.totalorder %s105, %s119
      %p121 = scmp.eq.s32.totalorder %s32, 0
      %p122 = por %p120, %p121
      %s124 = sadd.s32 %s123, 1
      %p127 = scmp.eq.s32.totalorder %s26, 1
      %p128 = scmp.ne.s32.totalorder %s123, %s125
      %p129 = scmp.eq.s32.totalorder %s26, 0
      %p130 = por %p128, %p129
      %p131 = scmp.ne.s32.totalorder %s123, %s125
      %p132 = scmp.eq.s32.totalorder %s31, 1
      %p133 = por %p131, %p132
      %p134 = scmp.ne.s32.totalorder %s125, %s126
      %p135 = scmp.eq.s32.totalorder %s31, 0
      %p136 = por %p134, %p135
      %p137 = scmp.ne.s32.totalorder %s125, %s126
      %p138 = scmp.eq.s32.totalorder %s32, 1
      %p139 = por %p137, %p138
      %p141 = scmp.ne.s32.totalorder %s126, %s140
      %p142 = scmp.eq.s32.totalorder %s32, 0
      %p143 = por %p141, %p142
      %s145 = sadd.s32 %s144, 1
      %p148 = scmp.eq.s32.totalorder %s26, 1
      %p149 = scmp.ne.s32.totalorder %s144, %s146
      %p150 = scmp.eq.s32.totalorder %s26, 0
      %p151 = por %p149, %p150
      %p152 = scmp.ne.s32.totalorder %s144, %s146
      %p153 = scmp.eq.s32.totalorder %s31, 1
      %p154 = por %p152, %p153
      %p155 = scmp.ne.s32.totalorder %s146, %s147
      %p156 = scmp.eq.s32.totalorder %s31, 0
      %p157 = por %p155, %p156
      %p158 = scmp.ne.s32.totalorder %s146, %s147
      %p159 = scmp.eq.s32.totalorder %s32, 1
      %p160 = por %p158, %p159
      %p162 = scmp.ne.s32.totalorder %s147, %s161
      %p163 = scmp.eq.s32.totalorder %s32, 0
      %p164 = por %p162, %p163
      %s166 = sadd.s32 %s165, 1
      %p169 = scmp.eq.s32.totalorder %s26, 1
      %p170 = scmp.ne.s32.totalorder %s165, %s167
      %p171 = scmp.eq.s32.totalorder %s26, 0
      %p172 = por %p170, %p171
      %p173 = scmp.ne.s32.totalorder %s165, %s167
      %p174 = scmp.eq.s32.totalorder %s31, 1
      %p175 = por %p173, %p174
      %p176 = scmp.ne.s32.totalorder %s167, %s168
      %p177 = scmp.eq.s32.totalorder %s31, 0
      %p178 = por %p176, %p177
      %p179 = scmp.ne.s32.totalorder %s167, %s168
      %p180 = scmp.eq.s32.totalorder %s32, 1
      %p181 = por %p179, %p180
      %p183 = scmp.ne.s32.totalorder %s168, %s182
      %p184 = scmp.eq.s32.totalorder %s32, 0
      %p185 = por %p183, %p184
      %s186 = ssub.s32 %s26, %s33
      %p187 = scmp.eq.s32.totalorder %s186, 0
      %s189 = sadd.s32 %s188, 1
      %s190 = scalar_select %p187, %s188, %s189
      %p193 = pneg %p187
      %p194 = scmp.eq.s32.totalorder %s26, 1
      %p195 = por %p193, %p194
      %p196 = scmp.ne.s32.totalorder %s188, %s191
      %p197 = scmp.eq.s32.totalorder %s26, 0
      %p198 = por %p196, %p197
      %p199 = scmp.ne.s32.totalorder %s188, %s191
      %p200 = scmp.eq.s32.totalorder %s31, 1
      %p201 = por %p199, %p200
      %p202 = scmp.ne.s32.totalorder %s191, %s192
      %p203 = scmp.eq.s32.totalorder %s31, 0
      %p204 = por %p202, %p203
      %p205 = scmp.ne.s32.totalorder %s191, %s192
      %p206 = scmp.eq.s32.totalorder %s32, 1
      %p207 = por %p205, %p206
      %p209 = scmp.ne.s32.totalorder %s192, %s208
      %p210 = scmp.eq.s32.totalorder %s32, 0
      %p211 = por %p209, %p210
      %s212 = ssub.s32 %s26, %s33
      %p213 = scmp.eq.s32.totalorder %s212, 0
      %s215 = sadd.s32 %s214, 1
      %s216 = scalar_select %p213, %s214, %s215
      %p219 = pneg %p213
      %p220 = scmp.eq.s32.totalorder %s26, 1
      %p221 = por %p219, %p220
      %p222 = scmp.ne.s32.totalorder %s214, %s217
      %p223 = scmp.eq.s32.totalorder %s26, 0
      %p224 = por %p222, %p223
      %p225 = scmp.ne.s32.totalorder %s214, %s217
      %p226 = scmp.eq.s32.totalorder %s31, 1
      %p227 = por %p225, %p226
      %p228 = scmp.ne.s32.totalorder %s217, %s218
      %p229 = scmp.eq.s32.totalorder %s31, 0
      %p230 = por %p228, %p229
      %p231 = scmp.ne.s32.totalorder %s217, %s218
      %p232 = scmp.eq.s32.totalorder %s32, 1
      %p233 = por %p231, %p232
      %p235 = scmp.ne.s32.totalorder %s218, %s234
      %p236 = scmp.eq.s32.totalorder %s32, 0
      %p237 = por %p235, %p236
      %s238 = ssub.s32 %s26, %s33
      %p239 = scmp.eq.s32.totalorder %s238, 0
      %s241 = sadd.s32 %s240, 1
      %s242 = scalar_select %p239, %s240, %s241
      %p245 = pneg %p239
      %p246 = scmp.eq.s32.totalorder %s26, 1
      %p247 = por %p245, %p246
      %p248 = scmp.ne.s32.totalorder %s240, %s243
      %p249 = scmp.eq.s32.totalorder %s26, 0
      %p250 = por %p248, %p249
      %p251 = scmp.ne.s32.totalorder %s240, %s243
      %p252 = scmp.eq.s32.totalorder %s31, 1
      %p253 = por %p251, %p252
      %p254 = scmp.ne.s32.totalorder %s243, %s244
      %p255 = scmp.eq.s32.totalorder %s31, 0
      %p256 = por %p254, %p255
      %p257 = scmp.ne.s32.totalorder %s243, %s244
      %p258 = scmp.eq.s32.totalorder %s32, 1
      %p259 = por %p257, %p258
      %p261 = scmp.ne.s32.totalorder %s244, %s260
      %p262 = scmp.eq.s32.totalorder %s32, 0
      %p263 = por %p261, %p262
      %p264 = scmp.le.s32.totalorder 1, %s26
      %p265 = scmp.lt.s32.totalorder %s26, 3
      %p266 = pnand %p264, %p265
      %p267 = pneg %p266
      // Predicated region
      $region9: #{tpu_custom_call.1} parent=5 // pred_check
        _
      $region10: #{tpu_custom_call.1} parent=5 // pred_check_branch
        %269 = sbr.rel (%p266) target = $region12
      $region11: #{tpu_custom_call.1} parent=5 // pred_region
        %s270 = ssub.s32 %s26, 1
        // Predicated region
        $region13: #{tpu_custom_call.1} parent=11 // pred_check
          %p271 = pneg %p73
        $region14: #{tpu_custom_call.1} parent=11 // pred_check_branch
          %273 = sbr.rel (%p271) target = $region16
        $region15: #{tpu_custom_call.1} parent=11 // pred_region
          _
        $region16: #{tpu_custom_call.1} parent=11 // pred_fallthru
          _
        // Predicated region
        $region17: #{tpu_custom_call.1} parent=11 // pred_check
          %p274 = pneg %p94
        $region18: #{tpu_custom_call.1} parent=11 // pred_check_branch
          %276 = sbr.rel (%p274) target = $region20
        $region19: #{tpu_custom_call.1} parent=11 // pred_region
          _
        $region20: #{tpu_custom_call.1} parent=11 // pred_fallthru
          _
        // Predicated region
        $region21: #{tpu_custom_call.1} parent=11 // pred_check
          %p277 = pneg %p115
        $region22: #{tpu_custom_call.1} parent=11 // pred_check_branch
          %279 = sbr.rel (%p277) target = $region24
        $region23: #{tpu_custom_call.1} parent=11 // pred_region
          _
        $region24: #{tpu_custom_call.1} parent=11 // pred_fallthru
          _
        // Predicated region
        $region25: #{tpu_custom_call.1} parent=11 // pred_check
          %p280 = pneg %p136
        $region26: #{tpu_custom_call.1} parent=11 // pred_check_branch
          %282 = sbr.rel (%p280) target = $region28
        $region27: #{tpu_custom_call.1} parent=11 // pred_region
          _
        $region28: #{tpu_custom_call.1} parent=11 // pred_fallthru
          _
        // Predicated region
        $region29: #{tpu_custom_call.1} parent=11 // pred_check
          %p283 = pneg %p157
        $region30: #{tpu_custom_call.1} parent=11 // pred_check_branch
          %285 = sbr.rel (%p283) target = $region32
        $region31: #{tpu_custom_call.1} parent=11 // pred_region
          _
        $region32: #{tpu_custom_call.1} parent=11 // pred_fallthru
          _
        // Predicated region
        $region33: #{tpu_custom_call.1} parent=11 // pred_check
          %p286 = pneg %p178
        $region34: #{tpu_custom_call.1} parent=11 // pred_check_branch
          %288 = sbr.rel (%p286) target = $region36
        $region35: #{tpu_custom_call.1} parent=11 // pred_region
          _
        $region36: #{tpu_custom_call.1} parent=11 // pred_fallthru
          _
      $region12: #{tpu_custom_call.1} parent=5 // pred_fallthru
        _
      %p289 = scmp.lt.s32.totalorder %s26, 2
      // Predicated region
      $region37: #{tpu_custom_call.1} parent=5 // pred_check
        %p290 = pneg %p289
      $region38: #{tpu_custom_call.1} parent=5 // pred_check_branch
        %292 = sbr.rel (%p290) target = $region40
      $region39: #{tpu_custom_call.1} parent=5 // pred_region
        // Predicated region
        $region41: #{tpu_custom_call.1} parent=39 // pred_check
          %p293 = pneg %p46
        $region42: #{tpu_custom_call.1} parent=39 // pred_check_branch
          %295 = sbr.rel (%p293) target = $region44
        $region43: #{tpu_custom_call.1} parent=39 // pred_region
          %s296 = smul.u32 8, %s26
          %p297 = scmp.lt.s32.totalorder %s296, 15
          %s298 = scalar_select %p297, %s296, 15
          %s299 = smul.addr %s298, 2
          %s300 = smul.addr %s299, 8
          %s301 = scalar_lea.vmem %s1, %s300
          %s302 = smul.u32 8, %s26
        $region44: #{tpu_custom_call.1} parent=39 // pred_fallthru
          _
      $region40: #{tpu_custom_call.1} parent=5 // pred_fallthru
        _
      %p303 = scmp.le.s32.totalorder 1, %s26
      %p304 = scmp.lt.s32.totalorder %s26, 3
      %p305 = pnand %p303, %p304
      %p306 = pneg %p305
      // Predicated region
      $region45: #{tpu_custom_call.1} parent=5 // pred_check
        _
      $region46: #{tpu_custom_call.1} parent=5 // pred_check_branch
        %308 = sbr.rel (%p305) target = $region48
      $region47: #{tpu_custom_call.1} parent=5 // pred_region
        %s309 = ssub.s32 %s26, 1
        %s310 = smul.u32 8, %s31
        %p311 = scmp.lt.s32.totalorder %s310, 15
        %s312 = scalar_select %p311, %s310, 15
        %s313 = smul.addr %s312, 2
        %s314 = smul.addr %s313, 8
        %s315 = scalar_lea.vmem %s1, %s314
        %p316 = pneg %p52
        %p317 = pneg %p49
        %p318 = pneg %p73
        %p319 = pneg %p70
        %p320 = pneg %p94
        %p321 = pneg %p91
        %p322 = pneg %p115
        %p323 = pneg %p112
        %p324 = pneg %p136
        %p325 = pneg %p133
        %p326 = pneg %p157
        %p327 = pneg %p154
        %p328 = pneg %p178
        %p329 = pneg %p175
        %p330 = pneg %p204
        %p331 = pneg %p201
        %s332 = sand.u32 %s191, 1
        %s333 = scalar_lea.sflag [#allocation5], %s332
        %s334 = sand.u32 %s191, 1
        %s335 = smul.addr %s334, 128
        %s336 = scalar_lea.vmem [#allocation4], %s335
        %p337 = pneg %p230
        %p338 = pneg %p227
        %s339 = smul.u32 8, %s31
        %p340 = scmp.lt.s32.totalorder %s339, 15
        %s341 = scalar_select %p340, %s339, 15
        %s342 = smul.addr %s341, 2
        %s343 = smul.addr %s342, 8
        %s344 = scalar_lea.vmem %s9, %s343
        %p345 = pneg %p256
        %p346 = pneg %p253
        %s347 = smul.u32 8, %s31
        %p348 = scmp.lt.s32.totalorder %s347, 15
        %s349 = scalar_select %p348, %s347, 15
        %s350 = smul.addr %s349, 2
        %s351 = smul.addr %s350, 8
        %s352 = scalar_lea.vmem %s10, %s351
        %s353 = smul.u32 8, %s31
        %p354 = scmp.lt.s32.totalorder %s353, 15
        %s355 = scalar_select %p354, %s353, 15
        %s356 = smul.addr %s355, 2
        %s357 = smul.addr %s356, 8
        %s358 = scalar_lea.vmem %s1, %s357
        %s359 = smul.u32 8, %s31
        %s360 = smul.u32 8, %s31
        %s361 = smul.u32 8, %s31
        %p362 = scmp.lt.s32.totalorder %s361, 15
        %s363 = scalar_select %p362, %s361, 15
        %s364 = smul.addr %s363, 2
        %s365 = smul.addr %s364, 8
        %s366 = scalar_lea.vmem %s9, %s365
        %s367 = smul.u32 8, %s31
        %s368 = smul.u32 8, %s31
        %p369 = scmp.lt.s32.totalorder %s368, 15
        %s370 = scalar_select %p369, %s368, 15
        %s371 = smul.addr %s370, 2
        %s372 = smul.addr %s371, 8
        %s373 = scalar_lea.vmem %s10, %s372
        %s374 = smul.u32 8, %s31
        %s376 = smul.u32 %s31, 8
        %v377 = vlaneseq
        %v378 = vshrl.u32 %v377, 7
        %v379 = vadd.s32 %v378, 8
        %s380 = sld [smem:[#allocation3 + %s376]]
        %v381 = vstv %s380
        %s382 = sadd.s32 %s376, 1
        %s383 = sld [smem:[#allocation3 + %s382]]
        %v384 = vstv %s383
        %s385 = sadd.s32 %s376, 2
        %s386 = sld [smem:[#allocation3 + %s385]]
        %v387 = vstv %s386
        %s388 = sadd.s32 %s376, 3
        %s389 = sld [smem:[#allocation3 + %s388]]
        %v390 = vstv %s389
        %s391 = sadd.s32 %s376, 4
        %s392 = sld [smem:[#allocation3 + %s391]]
        %v393 = vstv %s392
        %s394 = sadd.s32 %s376, 5
        %s395 = sld [smem:[#allocation3 + %s394]]
        %v396 = vstv %s395
        %s397 = sadd.s32 %s376, 6
        %s398 = sld [smem:[#allocation3 + %s397]]
        %v399 = vstv %s398
        %s400 = sadd.s32 %s376, 7
        %s401 = sld [smem:[#allocation3 + %s400]]
        %v402 = vstv %s401
        %vm403 = vcmp.lt.s32.totalorder %v378, %v381
        %vm404 = vcmp.lt.s32.totalorder %v379, %v381
        %vm405 = vcmp.lt.s32.totalorder %v378, %v384
        %vm406 = vcmp.lt.s32.totalorder %v379, %v384
        %vm407 = vcmp.lt.s32.totalorder %v378, %v387
        %vm408 = vcmp.lt.s32.totalorder %v379, %v387
        %vm409 = vcmp.lt.s32.totalorder %v378, %v390
        %vm410 = vcmp.lt.s32.totalorder %v379, %v390
        %vm411 = vcmp.lt.s32.totalorder %v378, %v393
        %vm412 = vcmp.lt.s32.totalorder %v379, %v393
        %vm413 = vcmp.lt.s32.totalorder %v378, %v396
        %vm414 = vcmp.lt.s32.totalorder %v379, %v396
        %vm415 = vcmp.lt.s32.totalorder %v378, %v399
        %vm416 = vcmp.lt.s32.totalorder %v379, %v399
        %vm417 = vcmp.lt.s32.totalorder %v378, %v402
        %vm418 = vcmp.lt.s32.totalorder %v379, %v402
        %v419 = vld [vmem:[%s358] sm:$0xff]
        %v420 = vld [vmem:[%s358 + $0x8] sm:$0xff]
        %v421 = vld [vmem:[%s358 + $0x10] sm:$0xff]
        %v422 = vld [vmem:[%s358 + $0x18] sm:$0xff]
        %v423 = vld [vmem:[%s358 + $0x20] sm:$0xff]
        %v424 = vld [vmem:[%s358 + $0x28] sm:$0xff]
        %v425 = vld [vmem:[%s358 + $0x30] sm:$0xff]
        %v426 = vld [vmem:[%s358 + $0x38] sm:$0xff]
        %v427 = vld [vmem:[%s358 + $0x40] sm:$0xff]
        %v428 = vld [vmem:[%s358 + $0x48] sm:$0xff]
        %v429 = vld [vmem:[%s358 + $0x50] sm:$0xff]
        %v430 = vld [vmem:[%s358 + $0x58] sm:$0xff]
        %v431 = vld [vmem:[%s358 + $0x60] sm:$0xff]
        %v432 = vld [vmem:[%s358 + $0x68] sm:$0xff]
        %v433 = vld [vmem:[%s358 + $0x70] sm:$0xff]
        %v434 = vld [vmem:[%s358 + $0x78] sm:$0xff]
        %v435 = vld [vmem:[%s7] sm:$0xf]
        %v436 = vld [vmem:[%s7 + $0x4] sm:$0xf]
        %v437 = vld [vmem:[%s7 + $0x8] sm:$0xf]
        %v438 = vld [vmem:[%s7 + $0xc] sm:$0xf]
        %v439 = vld [vmem:[%s7 + $0x10] sm:$0xf]
        %v440 = vld [vmem:[%s7 + $0x14] sm:$0xf]
        %v441 = vld [vmem:[%s7 + $0x18] sm:$0xf]
        %v442 = vld [vmem:[%s7 + $0x1c] sm:$0xf]
        %v443 = vld [vmem:[%s7 + $0x20] sm:$0xf]
        %v444 = vld [vmem:[%s7 + $0x24] sm:$0xf]
        %v445 = vld [vmem:[%s7 + $0x28] sm:$0xf]
        %v446 = vld [vmem:[%s7 + $0x2c] sm:$0xf]
        %v447 = vld [vmem:[%s7 + $0x30] sm:$0xf]
        %v448 = vld [vmem:[%s7 + $0x34] sm:$0xf]
        %v449 = vld [vmem:[%s7 + $0x38] sm:$0xf]
        %v450 = vld [vmem:[%s7 + $0x3c] sm:$0xf]
        %v451 = vld [vmem:[%s3] sm:$0xff]
        %v452 = vld [vmem:[%s2] sm:$0xf]
        %v453 = vld [vmem:[%s2 + $0x4] sm:$0xf]
        %v454 = vld [vmem:[%s2 + $0x8] sm:$0xf]
        %v455 = vld [vmem:[%s2 + $0xc] sm:$0xf]
        %v456 = vld [vmem:[%s2 + $0x10] sm:$0xf]
        %v457 = vld [vmem:[%s2 + $0x14] sm:$0xf]
        %v458 = vld [vmem:[%s2 + $0x18] sm:$0xf]
        %v459 = vld [vmem:[%s2 + $0x1c] sm:$0xf]
        %v460 = vld [vmem:[%s2 + $0x20] sm:$0xf]
        %v461 = vld [vmem:[%s2 + $0x24] sm:$0xf]
        %v462 = vld [vmem:[%s2 + $0x28] sm:$0xf]
        %v463 = vld [vmem:[%s2 + $0x2c] sm:$0xf]
        %v464 = vld [vmem:[%s2 + $0x30] sm:$0xf]
        %v465 = vld [vmem:[%s2 + $0x34] sm:$0xf]
        %v466 = vld [vmem:[%s2 + $0x38] sm:$0xf]
        %v467 = vld [vmem:[%s2 + $0x3c] sm:$0xf]
        %v468 = vld [vmem:[%s2 + $0x40] sm:$0xf]
        %v469 = vld [vmem:[%s2 + $0x44] sm:$0xf]
        %v470 = vld [vmem:[%s2 + $0x48] sm:$0xf]
        %v471 = vld [vmem:[%s2 + $0x4c] sm:$0xf]
        %v472 = vld [vmem:[%s2 + $0x50] sm:$0xf]
        %v473 = vld [vmem:[%s2 + $0x54] sm:$0xf]
        %v474 = vld [vmem:[%s2 + $0x58] sm:$0xf]
        %v475 = vld [vmem:[%s2 + $0x5c] sm:$0xf]
        %v476 = vrot.slane %v419, 7
        %v477 = vrot.slane %v420, 7
        %v478 = vrot.slane %v421, 7
        %v479 = vrot.slane %v422, 7
        %v480 = vrot.slane %v423, 7
        %v481 = vrot.slane %v424, 7
        %v482 = vrot.slane %v425, 7
        %v483 = vrot.slane %v426, 7
        %v484 = vrot.slane %v427, 7
        %v485 = vrot.slane %v428, 7
        %v486 = vrot.slane %v429, 7
        %v487 = vrot.slane %v430, 7
        %v488 = vrot.slane %v431, 7
        %v489 = vrot.slane %v432, 7
        %v490 = vrot.slane %v433, 7
        %v491 = vrot.slane %v434, 7
        %vm492 = vcmp.lt.s32.totalorder %v378, 1
        %v493 = vsel %vm492, %v490, %v491
        %v494 = vsel %vm492, %v489, %v490
        %v495 = vsel %vm492, %v488, %v489
        %v496 = vsel %vm492, %v487, %v488
        %v497 = vsel %vm492, %v486, %v487
        %v498 = vsel %vm492, %v485, %v486
        %v499 = vsel %vm492, %v484, %v485
        %v500 = vsel %vm492, %v483, %v484
        %v501 = vsel %vm492, %v482, %v483
        %v502 = vsel %vm492, %v481, %v482
        %v503 = vsel %vm492, %v480, %v481
        %v504 = vsel %vm492, %v479, %v480
        %v505 = vsel %vm492, %v478, %v479
        %v506 = vsel %vm492, %v477, %v478
        %v507 = vsel %vm492, %v476, %v477
        %v508 = vsel %vm492, %v491, %v476
        %v509 = vadd.s32 %v378, 4294967295
        %v510 = vadd.s32 %v379, 4294967295
        %vm511 = vcmp.ge.s32.totalorder %v509, 0
        %vm512 = vcmp.ge.s32.totalorder %v510, 0
        %vm513 = vcmp.lt.s32.totalorder %v509, 16
        %vm514 = vcmp.lt.s32.totalorder %v510, 16
        %vm515 = vmand %vm511, %vm513
        %vm516 = vmand %vm512, %vm514
        %v517 = vsel %vm515, 1, 0
        %v518 = vsel %vm516, 1, 0
        %519 = vset.pattern.permute.xlu0 0
        %520 = vperm.xlu0 %519, %v517
        %v521 = vpop.permute.xlu0 %520
        %522 = vset.pattern.permute.xlu0 0
        %523 = vperm.xlu0 %522, %v518
        %v524 = vpop.permute.xlu0 %523
        %vm525 = vcmp.eq.s32.totalorder %v521, 1
        %vm526 = vcmp.eq.s32.totalorder %v524, 1
        %v527 = vsel %vm525, %v508, 0.0
        %v528 = vsel %vm526, %v507, 0.0
        %v529 = vsel %vm525, %v506, 0.0
        %v530 = vsel %vm526, %v505, 0.0
        %v531 = vsel %vm525, %v504, 0.0
        %v532 = vsel %vm526, %v503, 0.0
        %v533 = vsel %vm525, %v502, 0.0
        %v534 = vsel %vm526, %v501, 0.0
        %v535 = vsel %vm525, %v500, 0.0
        %v536 = vsel %vm526, %v499, 0.0
        %v537 = vsel %vm525, %v498, 0.0
        %v538 = vsel %vm526, %v497, 0.0
        %v539 = vsel %vm525, %v496, 0.0
        %v540 = vsel %vm526, %v495, 0.0
        %v541 = vsel %vm525, %v494, 0.0
        %v542 = vsel %vm526, %v493, 0.0
        %v543 = vrot.slane %v419, 1
        %v544 = vrot.slane %v420, 1
        %v545 = vrot.slane %v421, 1
        %v546 = vrot.slane %v422, 1
        %v547 = vrot.slane %v423, 1
        %v548 = vrot.slane %v424, 1
        %v549 = vrot.slane %v425, 1
        %v550 = vrot.slane %v426, 1
        %v551 = vrot.slane %v427, 1
        %v552 = vrot.slane %v428, 1
        %v553 = vrot.slane %v429, 1
        %v554 = vrot.slane %v430, 1
        %v555 = vrot.slane %v431, 1
        %v556 = vrot.slane %v432, 1
        %v557 = vrot.slane %v433, 1
        %v558 = vrot.slane %v434, 1
        %vm559 = vcmp.lt.s32.totalorder %v378, 7
        %v560 = vsel %vm559, %v557, %v558
        %v561 = vsel %vm559, %v556, %v557
        %v562 = vsel %vm559, %v555, %v556
        %v563 = vsel %vm559, %v554, %v555
        %v564 = vsel %vm559, %v553, %v554
        %v565 = vsel %vm559, %v552, %v553
        %v566 = vsel %vm559, %v551, %v552
        %v567 = vsel %vm559, %v550, %v551
        %v568 = vsel %vm559, %v549, %v550
        %v569 = vsel %vm559, %v548, %v549
        %v570 = vsel %vm559, %v547, %v548
        %v571 = vsel %vm559, %v546, %v547
        %v572 = vsel %vm559, %v545, %v546
        %v573 = vsel %vm559, %v544, %v545
        %v574 = vsel %vm559, %v543, %v544
        %v575 = vsel %vm559, %v558, %v543
        %v576 = vadd.s32 %v378, 1
        %v577 = vadd.s32 %v379, 1
        %vm578 = vcmp.ge.s32.totalorder %v576, 0
        %vm579 = vcmp.ge.s32.totalorder %v577, 0
        %vm580 = vcmp.lt.s32.totalorder %v576, 16
        %vm581 = vcmp.lt.s32.totalorder %v577, 16
        %vm582 = vmand %vm578, %vm580
        %vm583 = vmand %vm579, %vm581
        %v584 = vsel %vm582, 1, 0
        %v585 = vsel %vm583, 1, 0
        %586 = vset.pattern.permute.xlu0 0
        %587 = vperm.xlu0 %586, %v584
        %v588 = vpop.permute.xlu0 %587
        %589 = vset.pattern.permute.xlu0 0
        %590 = vperm.xlu0 %589, %v585
        %v591 = vpop.permute.xlu0 %590
        %vm592 = vcmp.eq.s32.totalorder %v588, 1
        %vm593 = vcmp.eq.s32.totalorder %v591, 1
        %v594 = vsel %vm592, %v574, 0.0
        %v595 = vsel %vm593, %v573, 0.0
        %v596 = vsel %vm592, %v572, 0.0
        %v597 = vsel %vm593, %v571, 0.0
        %v598 = vsel %vm592, %v570, 0.0
        %v599 = vsel %vm593, %v569, 0.0
        %v600 = vsel %vm592, %v568, 0.0
        %v601 = vsel %vm593, %v567, 0.0
        %v602 = vsel %vm592, %v566, 0.0
        %v603 = vsel %vm593, %v565, 0.0
        %v604 = vsel %vm592, %v564, 0.0
        %v605 = vsel %vm593, %v563, 0.0
        %v606 = vsel %vm592, %v562, 0.0
        %v607 = vsel %vm593, %v561, 0.0
        %v608 = vsel %vm592, %v560, 0.0
        %v609 = vsel %vm593, %v575, 0.0
        %626 = vrot.lane.b32.xlu0 %v419, 32
        %v627 = vpop.permute.xlu0 %626
        %628 = vrot.lane.b32.xlu0 %v420, 32
        %v629 = vpop.permute.xlu0 %628
        %630 = vrot.lane.b32.xlu0 %v421, 32
        %v631 = vpop.permute.xlu0 %630
        %632 = vrot.lane.b32.xlu0 %v422, 32
        %v633 = vpop.permute.xlu0 %632
        %634 = vrot.lane.b32.xlu0 %v423, 32
        %v635 = vpop.permute.xlu0 %634
        %636 = vrot.lane.b32.xlu0 %v424, 32
        %v637 = vpop.permute.xlu0 %636
        %638 = vrot.lane.b32.xlu0 %v425, 32
        %v639 = vpop.permute.xlu0 %638
        %640 = vrot.lane.b32.xlu0 %v426, 32
        %v641 = vpop.permute.xlu0 %640
        %642 = vrot.lane.b32.xlu0 %v427, 32
        %v643 = vpop.permute.xlu0 %642
        %644 = vrot.lane.b32.xlu0 %v428, 32
        %v645 = vpop.permute.xlu0 %644
        %646 = vrot.lane.b32.xlu0 %v429, 32
        %v647 = vpop.permute.xlu0 %646
        %648 = vrot.lane.b32.xlu0 %v430, 32
        %v649 = vpop.permute.xlu0 %648
        %650 = vrot.lane.b32.xlu0 %v431, 32
        %v651 = vpop.permute.xlu0 %650
        %652 = vrot.lane.b32.xlu0 %v432, 32
        %v653 = vpop.permute.xlu0 %652
        %654 = vrot.lane.b32.xlu0 %v433, 32
        %v655 = vpop.permute.xlu0 %654
        %656 = vrot.lane.b32.xlu0 %v434, 32
        %v657 = vpop.permute.xlu0 %656
        %690 = vrot.lane.b32.xlu0 %v594, 64
        %v691 = vpop.permute.xlu0 %690
        %692 = vrot.lane.b32.xlu0 %v595, 64
        %v693 = vpop.permute.xlu0 %692
        %694 = vrot.lane.b32.xlu0 %v596, 64
        %v695 = vpop.permute.xlu0 %694
        %696 = vrot.lane.b32.xlu0 %v597, 64
        %v697 = vpop.permute.xlu0 %696
        %698 = vrot.lane.b32.xlu0 %v598, 64
        %v699 = vpop.permute.xlu0 %698
        %700 = vrot.lane.b32.xlu0 %v599, 64
        %v701 = vpop.permute.xlu0 %700
        %702 = vrot.lane.b32.xlu0 %v600, 64
        %v703 = vpop.permute.xlu0 %702
        %704 = vrot.lane.b32.xlu0 %v601, 64
        %v705 = vpop.permute.xlu0 %704
        %706 = vrot.lane.b32.xlu0 %v602, 64
        %v707 = vpop.permute.xlu0 %706
        %708 = vrot.lane.b32.xlu0 %v603, 64
        %v709 = vpop.permute.xlu0 %708
        %710 = vrot.lane.b32.xlu0 %v604, 64
        %v711 = vpop.permute.xlu0 %710
        %712 = vrot.lane.b32.xlu0 %v605, 64
        %v713 = vpop.permute.xlu0 %712
        %714 = vrot.lane.b32.xlu0 %v606, 64
        %v715 = vpop.permute.xlu0 %714
        %716 = vrot.lane.b32.xlu0 %v607, 64
        %v717 = vpop.permute.xlu0 %716
        %718 = vrot.lane.b32.xlu0 %v608, 64
        %v719 = vpop.permute.xlu0 %718
        %720 = vrot.lane.b32.xlu0 %v609, 64
        %v721 = vpop.permute.xlu0 %720
        %vm738 = vcmask 261120
        %v739 = vsel %vm738, %v527, %v627
        %v740 = vsel %vm738, %v528, %v629
        %v741 = vsel %vm738, %v529, %v631
        %v742 = vsel %vm738, %v530, %v633
        %v743 = vsel %vm738, %v531, %v635
        %v744 = vsel %vm738, %v532, %v637
        %v745 = vsel %vm738, %v533, %v639
        %v746 = vsel %vm738, %v534, %v641
        %v747 = vsel %vm738, %v535, %v643
        %v748 = vsel %vm738, %v536, %v645
        %v749 = vsel %vm738, %v537, %v647
        %v750 = vsel %vm738, %v538, %v649
        %v751 = vsel %vm738, %v539, %v651
        %v752 = vsel %vm738, %v540, %v653
        %v753 = vsel %vm738, %v541, %v655
        %v754 = vsel %vm738, %v542, %v657
        %vm755 = vcmask 523264
        %v756 = vsel %vm755, %v739, %v691
        %v757 = vsel %vm755, %v740, %v693
        %v758 = vsel %vm755, %v741, %v695
        %v759 = vsel %vm755, %v742, %v697
        %v760 = vsel %vm755, %v743, %v699
        %v761 = vsel %vm755, %v744, %v701
        %v762 = vsel %vm755, %v745, %v703
        %v763 = vsel %vm755, %v746, %v705
        %v764 = vsel %vm755, %v747, %v707
        %v765 = vsel %vm755, %v748, %v709
        %v766 = vsel %vm755, %v749, %v711
        %v767 = vsel %vm755, %v750, %v713
        %v768 = vsel %vm755, %v751, %v715
        %v769 = vsel %vm755, %v752, %v717
        %v770 = vsel %vm755, %v753, %v719
        %v771 = vsel %vm755, %v754, %v721
        %v772 = vpack.c.bf16 %v757, %v756
        %v773 = vpack.c.bf16 %v759, %v758
        %v774 = vpack.c.bf16 %v761, %v760
        %v775 = vpack.c.bf16 %v763, %v762
        %v776 = vpack.c.bf16 %v765, %v764
        %v777 = vpack.c.bf16 %v767, %v766
        %v778 = vpack.c.bf16 %v769, %v768
        %v779 = vpack.c.bf16 %v771, %v770
        %v780 = vlaneseq
        %v781 = vshrl.u32 %v780, 7
        %v782 = vsub.s32 0, %v781
        %v783 = vrot.slane %v451, %v782
        %v796 = vunpack.c.l.b16 %v452
        %v797 = vunpack.c.l.b16 %v453
        %v798 = vunpack.c.l.b16 %v454
        %v799 = vunpack.c.l.b16 %v455
        %v800 = vunpack.c.l.b16 %v456
        %v801 = vunpack.c.l.b16 %v457
        %v802 = vunpack.c.l.b16 %v458
        %v803 = vunpack.c.l.b16 %v459
        %v804 = vunpack.c.l.b16 %v460
        %v805 = vunpack.c.l.b16 %v461
        %v806 = vunpack.c.l.b16 %v462
        %v807 = vunpack.c.l.b16 %v463
        %v808 = vpack.c.b16 %v797, %v796
        %v809 = vpack.c.b16 %v799, %v798
        %v810 = vpack.c.b16 %v801, %v800
        %v811 = vpack.c.b16 %v803, %v802
        %v812 = vpack.c.b16 %v805, %v804
        %v813 = vpack.c.b16 %v807, %v806
        %vm820 = vcmask 785408
        %v822 = vsel %vm820, %v772, 0
        %v825 = vsel %vm820, %v773, 0
        %v828 = vsel %vm820, %v774, 0
        %v831 = vsel %vm820, %v775, 0
        %v834 = vsel %vm820, %v776, 0
        %v837 = vsel %vm820, %v777, 0
        %v840 = vsel %vm820, %v778, 0
        %v843 = vsel %vm820, %v779, 0
        %845 = vmatprep.subr.bf16.mxu0 0
        %846 = vmatpush1.bf16.msra.mxu0 %v808
        %847 = vmatprep.subr.bf16.mxu0 0
        %848 = vmatpush1.bf16.msra.mxu0 %v809
        %849 = vmatprep.subr.bf16.mxu0 0
        %850 = vmatpush1.bf16.msra.mxu0 %v810
        %851 = vmatprep.subr.bf16.mxu0 0
        %852 = vmatpush1.bf16.msra.mxu0 %v811
        %853 = vmatprep.subr.bf16.mxu0 0
        %854 = vmatpush1.bf16.msra.mxu0 %v812
        %855 = vmatprep.subr.bf16.mxu0 0
        %856 = vmatpush1.bf16.msra.mxu0 %v813
        %857 = vmatprep.subr.bf16.mxu0 0
        %858 = vmatpush1.bf16.msra.mxu0 0
        %859 = vmatprep.subr.bf16.mxu0 0
        %860 = vmatpush1.bf16.msra.mxu0 0
        %861 = vmatprep.subr.bf16.mxu0 0
        %862 = vmatpush1.bf16.msra.mxu0 0
        %863 = vmatprep.subr.bf16.mxu0 0
        %864 = vmatpush1.bf16.msra.mxu0 0
        %865 = vmatprep.subr.bf16.mxu0 0
        %866 = vmatpush1.bf16.msra.mxu0 0
        %867 = vmatprep.subr.bf16.mxu0 0
        %868 = vmatpush1.bf16.msra.mxu0 0
        %869 = vmatprep.subr.bf16.mxu0 0
        %870 = vmatpush1.bf16.msra.mxu0 0
        %871 = vmatprep.subr.bf16.mxu0 0
        %872 = vmatpush1.bf16.msra.mxu0 0
        %873 = vmatprep.subr.bf16.mxu0 0
        %874 = vmatpush1.bf16.msra.mxu0 0
        %875 = vmatprep.subr.bf16.mxu0 0
        %876 = vmatpush1.bf16.msra.mxu0 0
        %877 = vmatprep.mubr.bf16.mxu0 0
        %878 = vmatmul.mubr.bf16.gmra.mrb[0].mxu0 %v822
        %v879 = vpop.f32.mrb[0].mxu0
        %v880 = vadd.f32 %v783, %v879
        %v881 = vpop.f32.mrb[0].mxu0
        %v882 = vpop.f32.mrb[0].mxu0
        %v883 = vadd.f32 %v783, %v882
        %v884 = vpop.f32.mrb[0].mxu0
        %885 = vmatprep.mubr.bf16.mxu0 0
        %886 = vmatmul.mubr.bf16.gmra.mrb[0].mxu0 %v825
        %v887 = vpop.f32.mrb[0].mxu0
        %v888 = vadd.f32 %v783, %v887
        %v889 = vpop.f32.mrb[0].mxu0
        %v890 = vpop.f32.mrb[0].mxu0
        %v891 = vadd.f32 %v783, %v890
        %v892 = vpop.f32.mrb[0].mxu0
        %893 = vmatprep.mubr.bf16.mxu0 0
        %894 = vmatmul.mubr.bf16.gmra.mrb[0].mxu0 %v828
        %v895 = vpop.f32.mrb[0].mxu0
        %v896 = vadd.f32 %v783, %v895
        %v897 = vpop.f32.mrb[0].mxu0
        %v898 = vpop.f32.mrb[0].mxu0
        %v899 = vadd.f32 %v783, %v898
        %v900 = vpop.f32.mrb[0].mxu0
        %901 = vmatprep.mubr.bf16.mxu0 0
        %902 = vmatmul.mubr.bf16.gmra.mrb[0].mxu0 %v831
        %v903 = vpop.f32.mrb[0].mxu0
        %v904 = vadd.f32 %v783, %v903
        %v905 = vpop.f32.mrb[0].mxu0
        %v906 = vpop.f32.mrb[0].mxu0
        %v907 = vadd.f32 %v783, %v906
        %v908 = vpop.f32.mrb[0].mxu0
        %909 = vmatprep.mubr.bf16.mxu0 0
        %910 = vmatmul.mubr.bf16.gmra.mrb[0].mxu0 %v834
        %v911 = vpop.f32.mrb[0].mxu0
        %v912 = vadd.f32 %v783, %v911
        %v913 = vpop.f32.mrb[0].mxu0
        %v914 = vpop.f32.mrb[0].mxu0
        %v915 = vadd.f32 %v783, %v914
        %v916 = vpop.f32.mrb[0].mxu0
        %917 = vmatprep.mubr.bf16.mxu0 0
        %918 = vmatmul.mubr.bf16.gmra.mrb[0].mxu0 %v837
        %v919 = vpop.f32.mrb[0].mxu0
        %v920 = vadd.f32 %v783, %v919
        %v921 = vpop.f32.mrb[0].mxu0
        %v922 = vpop.f32.mrb[0].mxu0
        %v923 = vadd.f32 %v783, %v922
        %v924 = vpop.f32.mrb[0].mxu0
        %925 = vmatprep.mubr.bf16.mxu0 0
        %926 = vmatmul.mubr.bf16.gmra.mrb[0].mxu0 %v840
        %v927 = vpop.f32.mrb[0].mxu0
        %v928 = vadd.f32 %v783, %v927
        %v929 = vpop.f32.mrb[0].mxu0
        %v930 = vpop.f32.mrb[0].mxu0
        %v931 = vadd.f32 %v783, %v930
        %v932 = vpop.f32.mrb[0].mxu0
        %933 = vmatprep.mubr.bf16.mxu0 0
        %934 = vmatmul.mubr.bf16.gmra.mrb[0].mxu0 %v843
        %v935 = vpop.f32.mrb[0].mxu0
        %v936 = vadd.f32 %v783, %v935
        %v937 = vpop.f32.mrb[0].mxu0
        %v938 = vpop.f32.mrb[0].mxu0
        %v939 = vadd.f32 %v783, %v938
        %v940 = vpop.f32.mrb[0].mxu0
        %941 = vdwg.mxu0
        %v942 = vmax.f32 %v880, 0.0
        %v943 = vmax.f32 %v883, 0.0
        %v944 = vmax.f32 %v888, 0.0
        %v945 = vmax.f32 %v891, 0.0
        %v946 = vmax.f32 %v896, 0.0
        %v947 = vmax.f32 %v899, 0.0
        %v948 = vmax.f32 %v904, 0.0
        %v949 = vmax.f32 %v907, 0.0
        %v950 = vmax.f32 %v912, 0.0
        %v951 = vmax.f32 %v915, 0.0
        %v952 = vmax.f32 %v920, 0.0
        %v953 = vmax.f32 %v923, 0.0
        %v954 = vmax.f32 %v928, 0.0
        %v955 = vmax.f32 %v931, 0.0
        %v956 = vmax.f32 %v936, 0.0
        %v957 = vmax.f32 %v939, 0.0
        %v958 = vsel %vm738, %v942, 0.0
        %959 = vadd.xlane.f32.xlu0 %v958
        %v960 = vpop.xlane.xlu0 %959
        %v961 = vsel %vm738, %v943, 0.0
        %962 = vadd.xlane.f32.xlu0 %v961
        %v963 = vpop.xlane.xlu0 %962
        %v964 = vsel %vm738, %v944, 0.0
        %965 = vadd.xlane.f32.xlu0 %v964
        %v966 = vpop.xlane.xlu0 %965
        %v967 = vsel %vm738, %v945, 0.0
        %968 = vadd.xlane.f32.xlu0 %v967
        %v969 = vpop.xlane.xlu0 %968
        %v970 = vsel %vm738, %v946, 0.0
        %971 = vadd.xlane.f32.xlu0 %v970
        %v972 = vpop.xlane.xlu0 %971
        %v973 = vsel %vm738, %v947, 0.0
        %974 = vadd.xlane.f32.xlu0 %v973
        %v975 = vpop.xlane.xlu0 %974
        %v976 = vsel %vm738, %v948, 0.0
        %977 = vadd.xlane.f32.xlu0 %v976
        %v978 = vpop.xlane.xlu0 %977
        %v979 = vsel %vm738, %v949, 0.0
        %980 = vadd.xlane.f32.xlu0 %v979
        %v981 = vpop.xlane.xlu0 %980
        %v982 = vsel %vm738, %v950, 0.0
        %983 = vadd.xlane.f32.xlu0 %v982
        %v984 = vpop.xlane.xlu0 %983
        %v985 = vsel %vm738, %v951, 0.0
        %986 = vadd.xlane.f32.xlu0 %v985
        %v987 = vpop.xlane.xlu0 %986
        %v988 = vsel %vm738, %v952, 0.0
        %989 = vadd.xlane.f32.xlu0 %v988
        %v990 = vpop.xlane.xlu0 %989
        %v991 = vsel %vm738, %v953, 0.0
        %992 = vadd.xlane.f32.xlu0 %v991
        %v993 = vpop.xlane.xlu0 %992
        %v994 = vsel %vm738, %v954, 0.0
        %995 = vadd.xlane.f32.xlu0 %v994
        %v996 = vpop.xlane.xlu0 %995
        %v997 = vsel %vm738, %v955, 0.0
        %998 = vadd.xlane.f32.xlu0 %v997
        %v999 = vpop.xlane.xlu0 %998
        %v1000 = vsel %vm738, %v956, 0.0
        %1001 = vadd.xlane.f32.xlu0 %v1000
        %v1002 = vpop.xlane.xlu0 %1001
        %v1003 = vsel %vm738, %v957, 0.0
        %1004 = vadd.xlane.f32.xlu0 %v1003
        %v1005 = vpop.xlane.xlu0 %1004
        %v1006 = vrcp.pop 32.0
        %v1007 = vmul.f32 %v960, %v1006
        %v1008 = vmul.f32 %v963, %v1006
        %v1009 = vmul.f32 %v966, %v1006
        %v1010 = vmul.f32 %v969, %v1006
        %v1011 = vmul.f32 %v972, %v1006
        %v1012 = vmul.f32 %v975, %v1006
        %v1013 = vmul.f32 %v978, %v1006
        %v1014 = vmul.f32 %v981, %v1006
        %v1015 = vmul.f32 %v984, %v1006
        %v1016 = vmul.f32 %v987, %v1006
        %v1017 = vmul.f32 %v990, %v1006
        %v1018 = vmul.f32 %v993, %v1006
        %v1019 = vmul.f32 %v996, %v1006
        %v1020 = vmul.f32 %v999, %v1006
        %v1021 = vmul.f32 %v1002, %v1006
        %v1022 = vmul.f32 %v1005, %v1006
        %v1023 = vsub.f32 %v942, %v1007
        %v1024 = vsub.f32 %v943, %v1008
        %v1025 = vsub.f32 %v944, %v1009
        %v1026 = vsub.f32 %v945, %v1010
        %v1027 = vsub.f32 %v946, %v1011
        %v1028 = vsub.f32 %v947, %v1012
        %v1029 = vsub.f32 %v948, %v1013
        %v1030 = vsub.f32 %v949, %v1014
        %v1031 = vsub.f32 %v950, %v1015
        %v1032 = vsub.f32 %v951, %v1016
        %v1033 = vsub.f32 %v952, %v1017
        %v1034 = vsub.f32 %v953, %v1018
        %v1035 = vsub.f32 %v954, %v1019
        %v1036 = vsub.f32 %v955, %v1020
        %v1037 = vsub.f32 %v956, %v1021
        %v1038 = vsub.f32 %v957, %v1022
        %v1039 = vmul.f32 %v1023, %v1023
        %v1040 = vmul.f32 %v1024, %v1024
        %v1041 = vmul.f32 %v1025, %v1025
        %v1042 = vmul.f32 %v1026, %v1026
        %v1043 = vmul.f32 %v1027, %v1027
        %v1044 = vmul.f32 %v1028, %v1028
        %v1045 = vmul.f32 %v1029, %v1029
        %v1046 = vmul.f32 %v1030, %v1030
        %v1047 = vmul.f32 %v1031, %v1031
        %v1048 = vmul.f32 %v1032, %v1032
        %v1049 = vmul.f32 %v1033, %v1033
        %v1050 = vmul.f32 %v1034, %v1034
        %v1051 = vmul.f32 %v1035, %v1035
        %v1052 = vmul.f32 %v1036, %v1036
        %v1053 = vmul.f32 %v1037, %v1037
        %v1054 = vmul.f32 %v1038, %v1038
        %v1055 = vsel %vm738, %v1039, 0.0
        %1056 = vadd.xlane.f32.xlu0 %v1055
        %v1057 = vpop.xlane.xlu0 %1056
        %v1058 = vsel %vm738, %v1040, 0.0
        %1059 = vadd.xlane.f32.xlu0 %v1058
        %v1060 = vpop.xlane.xlu0 %1059
        %v1061 = vsel %vm738, %v1041, 0.0
        %1062 = vadd.xlane.f32.xlu0 %v1061
        %v1063 = vpop.xlane.xlu0 %1062
        %v1064 = vsel %vm738, %v1042, 0.0
        %1065 = vadd.xlane.f32.xlu0 %v1064
        %v1066 = vpop.xlane.xlu0 %1065
        %v1067 = vsel %vm738, %v1043, 0.0
        %1068 = vadd.xlane.f32.xlu0 %v1067
        %v1069 = vpop.xlane.xlu0 %1068
        %v1070 = vsel %vm738, %v1044, 0.0
        %1071 = vadd.xlane.f32.xlu0 %v1070
        %v1072 = vpop.xlane.xlu0 %1071
        %v1073 = vsel %vm738, %v1045, 0.0
        %1074 = vadd.xlane.f32.xlu0 %v1073
        %v1075 = vpop.xlane.xlu0 %1074
        %v1076 = vsel %vm738, %v1046, 0.0
        %1077 = vadd.xlane.f32.xlu0 %v1076
        %v1078 = vpop.xlane.xlu0 %1077
        %v1079 = vsel %vm738, %v1047, 0.0
        %1080 = vadd.xlane.f32.xlu0 %v1079
        %v1081 = vpop.xlane.xlu0 %1080
        %v1082 = vsel %vm738, %v1048, 0.0
        %1083 = vadd.xlane.f32.xlu0 %v1082
        %v1084 = vpop.xlane.xlu0 %1083
        %v1085 = vsel %vm738, %v1049, 0.0
        %1086 = vadd.xlane.f32.xlu0 %v1085
        %v1087 = vpop.xlane.xlu0 %1086
        %v1088 = vsel %vm738, %v1050, 0.0
        %1089 = vadd.xlane.f32.xlu0 %v1088
        %v1090 = vpop.xlane.xlu0 %1089
        %v1091 = vsel %vm738, %v1051, 0.0
        %1092 = vadd.xlane.f32.xlu0 %v1091
        %v1093 = vpop.xlane.xlu0 %1092
        %v1094 = vsel %vm738, %v1052, 0.0
        %1095 = vadd.xlane.f32.xlu0 %v1094
        %v1096 = vpop.xlane.xlu0 %1095
        %v1097 = vsel %vm738, %v1053, 0.0
        %1098 = vadd.xlane.f32.xlu0 %v1097
        %v1099 = vpop.xlane.xlu0 %1098
        %v1100 = vsel %vm738, %v1054, 0.0
        %1101 = vadd.xlane.f32.xlu0 %v1100
        %v1102 = vpop.xlane.xlu0 %1101
        %v1103 = vmul.f32 %v1057, %v1006
        %v1104 = vmul.f32 %v1060, %v1006
        %v1105 = vmul.f32 %v1063, %v1006
        %v1106 = vmul.f32 %v1066, %v1006
        %v1107 = vmul.f32 %v1069, %v1006
        %v1108 = vmul.f32 %v1072, %v1006
        %v1109 = vmul.f32 %v1075, %v1006
        %v1110 = vmul.f32 %v1078, %v1006
        %v1111 = vmul.f32 %v1081, %v1006
        %v1112 = vmul.f32 %v1084, %v1006
        %v1113 = vmul.f32 %v1087, %v1006
        %v1114 = vmul.f32 %v1090, %v1006
        %v1115 = vmul.f32 %v1093, %v1006
        %v1116 = vmul.f32 %v1096, %v1006
        %v1117 = vmul.f32 %v1099, %v1006
        %v1118 = vmul.f32 %v1102, %v1006
        %v1119 = vadd.f32 %v1103, 1e-05
        %v1120 = vadd.f32 %v1104, 1e-05
        %v1121 = vadd.f32 %v1105, 1e-05
        %v1122 = vadd.f32 %v1106, 1e-05
        %v1123 = vadd.f32 %v1107, 1e-05
        %v1124 = vadd.f32 %v1108, 1e-05
        %v1125 = vadd.f32 %v1109, 1e-05
        %v1126 = vadd.f32 %v1110, 1e-05
        %v1127 = vadd.f32 %v1111, 1e-05
        %v1128 = vadd.f32 %v1112, 1e-05
        %v1129 = vadd.f32 %v1113, 1e-05
        %v1130 = vadd.f32 %v1114, 1e-05
        %v1131 = vadd.f32 %v1115, 1e-05
        %v1132 = vadd.f32 %v1116, 1e-05
        %v1133 = vadd.f32 %v1117, 1e-05
        %v1134 = vadd.f32 %v1118, 1e-05
        %v1135 = vrsqrt.pop %v1119
        %v1136 = vrsqrt.pop %v1120
        %v1137 = vrsqrt.pop %v1121
        %v1138 = vrsqrt.pop %v1122
        %v1139 = vrsqrt.pop %v1123
        %v1140 = vrsqrt.pop %v1124
        %v1141 = vrsqrt.pop %v1125
        %v1142 = vrsqrt.pop %v1126
        %v1143 = vrsqrt.pop %v1127
        %v1144 = vrsqrt.pop %v1128
        %v1145 = vrsqrt.pop %v1129
        %v1146 = vrsqrt.pop %v1130
        %v1147 = vrsqrt.pop %v1131
        %v1148 = vrsqrt.pop %v1132
        %v1149 = vrsqrt.pop %v1133
        %v1150 = vrsqrt.pop %v1134
        %v1151 = vmul.f32 %v1023, %v1135
        %v1152 = vmul.f32 %v1024, %v1136
        %v1153 = vmul.f32 %v1025, %v1137
        %v1154 = vmul.f32 %v1026, %v1138
        %v1155 = vmul.f32 %v1027, %v1139
        %v1156 = vmul.f32 %v1028, %v1140
        %v1157 = vmul.f32 %v1029, %v1141
        %v1158 = vmul.f32 %v1030, %v1142
        %v1159 = vmul.f32 %v1031, %v1143
        %v1160 = vmul.f32 %v1032, %v1144
        %v1161 = vmul.f32 %v1033, %v1145
        %v1162 = vmul.f32 %v1034, %v1146
        %v1163 = vmul.f32 %v1035, %v1147
        %v1164 = vmul.f32 %v1036, %v1148
        %v1165 = vmul.f32 %v1037, %v1149
        %v1166 = vmul.f32 %v1038, %v1150
        %v1167 = vlaneseq
        %v1168 = vshrl.u32 %v1167, 7
        %v1169 = vsub.s32 1, %v1168
        %v1170 = vrot.slane %v451, %v1169
        %v1171 = vmul.f32 %v1151, %v1170
        %v1172 = vmul.f32 %v1152, %v1170
        %v1173 = vmul.f32 %v1153, %v1170
        %v1174 = vmul.f32 %v1154, %v1170
        %v1175 = vmul.f32 %v1155, %v1170
        %v1176 = vmul.f32 %v1156, %v1170
        %v1177 = vmul.f32 %v1157, %v1170
        %v1178 = vmul.f32 %v1158, %v1170
        %v1179 = vmul.f32 %v1159, %v1170
        %v1180 = vmul.f32 %v1160, %v1170
        %v1181 = vmul.f32 %v1161, %v1170
        %v1182 = vmul.f32 %v1162, %v1170
        %v1183 = vmul.f32 %v1163, %v1170
        %v1184 = vmul.f32 %v1164, %v1170
        %v1185 = vmul.f32 %v1165, %v1170
        %v1186 = vmul.f32 %v1166, %v1170
        %v1187 = vlaneseq
        %v1188 = vshrl.u32 %v1187, 7
        %v1189 = vsub.s32 2, %v1188
        %v1190 = vrot.slane %v451, %v1189
        %v1191 = vadd.f32 %v1171, %v1190
        %v1192 = vadd.f32 %v1172, %v1190
        %v1193 = vadd.f32 %v1173, %v1190
        %v1194 = vadd.f32 %v1174, %v1190
        %v1195 = vadd.f32 %v1175, %v1190
        %v1196 = vadd.f32 %v1176, %v1190
        %v1197 = vadd.f32 %v1177, %v1190
        %v1198 = vadd.f32 %v1178, %v1190
        %v1199 = vadd.f32 %v1179, %v1190
        %v1200 = vadd.f32 %v1180, %v1190
        %v1201 = vadd.f32 %v1181, %v1190
        %v1202 = vadd.f32 %v1182, %v1190
        %v1203 = vadd.f32 %v1183, %v1190
        %v1204 = vadd.f32 %v1184, %v1190
        %v1205 = vadd.f32 %v1185, %v1190
        %v1206 = vadd.f32 %v1186, %v1190
        %v1207 = vrot.slane %v1191, 7
        %v1208 = vrot.slane %v1192, 7
        %v1209 = vrot.slane %v1193, 7
        %v1210 = vrot.slane %v1194, 7
        %v1211 = vrot.slane %v1195, 7
        %v1212 = vrot.slane %v1196, 7
        %v1213 = vrot.slane %v1197, 7
        %v1214 = vrot.slane %v1198, 7
        %v1215 = vrot.slane %v1199, 7
        %v1216 = vrot.slane %v1200, 7
        %v1217 = vrot.slane %v1201, 7
        %v1218 = vrot.slane %v1202, 7
        %v1219 = vrot.slane %v1203, 7
        %v1220 = vrot.slane %v1204, 7
        %v1221 = vrot.slane %v1205, 7
        %v1222 = vrot.slane %v1206, 7
        %v1223 = vsel %vm492, %v1221, %v1222
        %v1224 = vsel %vm492, %v1220, %v1221
        %v1225 = vsel %vm492, %v1219, %v1220
        %v1226 = vsel %vm492, %v1218, %v1219
        %v1227 = vsel %vm492, %v1217, %v1218
        %v1228 = vsel %vm492, %v1216, %v1217
        %v1229 = vsel %vm492, %v1215, %v1216
        %v1230 = vsel %vm492, %v1214, %v1215
        %v1231 = vsel %vm492, %v1213, %v1214
        %v1232 = vsel %vm492, %v1212, %v1213
        %v1233 = vsel %vm492, %v1211, %v1212
        %v1234 = vsel %vm492, %v1210, %v1211
        %v1235 = vsel %vm492, %v1209, %v1210
        %v1236 = vsel %vm492, %v1208, %v1209
        %v1237 = vsel %vm492, %v1207, %v1208
        %v1238 = vsel %vm492, %v1222, %v1207
        %v1239 = vsel %vm525, %v1238, 0.0
        %v1240 = vsel %vm526, %v1237, 0.0
        %v1241 = vsel %vm525, %v1236, 0.0
        %v1242 = vsel %vm526, %v1235, 0.0
        %v1243 = vsel %vm525, %v1234, 0.0
        %v1244 = vsel %vm526, %v1233, 0.0
        %v1245 = vsel %vm525, %v1232, 0.0
        %v1246 = vsel %vm526, %v1231, 0.0
        %v1247 = vsel %vm525, %v1230, 0.0
        %v1248 = vsel %vm526, %v1229, 0.0
        %v1249 = vsel %vm525, %v1228, 0.0
        %v1250 = vsel %vm526, %v1227, 0.0
        %v1251 = vsel %vm525, %v1226, 0.0
        %v1252 = vsel %vm526, %v1225, 0.0
        %v1253 = vsel %vm525, %v1224, 0.0
        %v1254 = vsel %vm526, %v1223, 0.0
        %v1255 = vrot.slane %v1191, 1
        %v1256 = vrot.slane %v1192, 1
        %v1257 = vrot.slane %v1193, 1
        %v1258 = vrot.slane %v1194, 1
        %v1259 = vrot.slane %v1195, 1
        %v1260 = vrot.slane %v1196, 1
        %v1261 = vrot.slane %v1197, 1
        %v1262 = vrot.slane %v1198, 1
        %v1263 = vrot.slane %v1199, 1
        %v1264 = vrot.slane %v1200, 1
        %v1265 = vrot.slane %v1201, 1
        %v1266 = vrot.slane %v1202, 1
        %v1267 = vrot.slane %v1203, 1
        %v1268 = vrot.slane %v1204, 1
        %v1269 = vrot.slane %v1205, 1
        %v1270 = vrot.slane %v1206, 1
        %v1271 = vsel %vm559, %v1269, %v1270
        %v1272 = vsel %vm559, %v1268, %v1269
        %v1273 = vsel %vm559, %v1267, %v1268
        %v1274 = vsel %vm559, %v1266, %v1267
        %v1275 = vsel %vm559, %v1265, %v1266
        %v1276 = vsel %vm559, %v1264, %v1265
        %v1277 = vsel %vm559, %v1263, %v1264
        %v1278 = vsel %vm559, %v1262, %v1263
        %v1279 = vsel %vm559, %v1261, %v1262
        %v1280 = vsel %vm559, %v1260, %v1261
        %v1281 = vsel %vm559, %v1259, %v1260
        %v1282 = vsel %vm559, %v1258, %v1259
        %v1283 = vsel %vm559, %v1257, %v1258
        %v1284 = vsel %vm559, %v1256, %v1257
        %v1285 = vsel %vm559, %v1255, %v1256
        %v1286 = vsel %vm559, %v1270, %v1255
        %v1287 = vsel %vm592, %v1285, 0.0
        %v1288 = vsel %vm593, %v1284, 0.0
        %v1289 = vsel %vm592, %v1283, 0.0
        %v1290 = vsel %vm593, %v1282, 0.0
        %v1291 = vsel %vm592, %v1281, 0.0
        %v1292 = vsel %vm593, %v1280, 0.0
        %v1293 = vsel %vm592, %v1279, 0.0
        %v1294 = vsel %vm593, %v1278, 0.0
        %v1295 = vsel %vm592, %v1277, 0.0
        %v1296 = vsel %vm593, %v1276, 0.0
        %v1297 = vsel %vm592, %v1275, 0.0
        %v1298 = vsel %vm593, %v1274, 0.0
        %v1299 = vsel %vm592, %v1273, 0.0
        %v1300 = vsel %vm593, %v1272, 0.0
        %v1301 = vsel %vm592, %v1271, 0.0
        %v1302 = vsel %vm593, %v1286, 0.0
        %1319 = vrot.lane.b32.xlu0 %v1191, 32
        %v1320 = vpop.permute.xlu0 %1319
        %1321 = vrot.lane.b32.xlu0 %v1192, 32
        %v1322 = vpop.permute.xlu0 %1321
        %1323 = vrot.lane.b32.xlu0 %v1193, 32
        %v1324 = vpop.permute.xlu0 %1323
        %1325 = vrot.lane.b32.xlu0 %v1194, 32
        %v1326 = vpop.permute.xlu0 %1325
        %1327 = vrot.lane.b32.xlu0 %v1195, 32
        %v1328 = vpop.permute.xlu0 %1327
        %1329 = vrot.lane.b32.xlu0 %v1196, 32
        %v1330 = vpop.permute.xlu0 %1329
        %1331 = vrot.lane.b32.xlu0 %v1197, 32
        %v1332 = vpop.permute.xlu0 %1331
        %1333 = vrot.lane.b32.xlu0 %v1198, 32
        %v1334 = vpop.permute.xlu0 %1333
        %1335 = vrot.lane.b32.xlu0 %v1199, 32
        %v1336 = vpop.permute.xlu0 %1335
        %1337 = vrot.lane.b32.xlu0 %v1200, 32
        %v1338 = vpop.permute.xlu0 %1337
        %1339 = vrot.lane.b32.xlu0 %v1201, 32
        %v1340 = vpop.permute.xlu0 %1339
        %1341 = vrot.lane.b32.xlu0 %v1202, 32
        %v1342 = vpop.permute.xlu0 %1341
        %1343 = vrot.lane.b32.xlu0 %v1203, 32
        %v1344 = vpop.permute.xlu0 %1343
        %1345 = vrot.lane.b32.xlu0 %v1204, 32
        %v1346 = vpop.permute.xlu0 %1345
        %1347 = vrot.lane.b32.xlu0 %v1205, 32
        %v1348 = vpop.permute.xlu0 %1347
        %1349 = vrot.lane.b32.xlu0 %v1206, 32
        %v1350 = vpop.permute.xlu0 %1349
        %1383 = vrot.lane.b32.xlu0 %v1287, 64
        %v1384 = vpop.permute.xlu0 %1383
        %1385 = vrot.lane.b32.xlu0 %v1288, 64
        %v1386 = vpop.permute.xlu0 %1385
        %1387 = vrot.lane.b32.xlu0 %v1289, 64
        %v1388 = vpop.permute.xlu0 %1387
        %1389 = vrot.lane.b32.xlu0 %v1290, 64
        %v1390 = vpop.permute.xlu0 %1389
        %1391 = vrot.lane.b32.xlu0 %v1291, 64
        %v1392 = vpop.permute.xlu0 %1391
        %1393 = vrot.lane.b32.xlu0 %v1292, 64
        %v1394 = vpop.permute.xlu0 %1393
        %1395 = vrot.lane.b32.xlu0 %v1293, 64
        %v1396 = vpop.permute.xlu0 %1395
        %1397 = vrot.lane.b32.xlu0 %v1294, 64
        %v1398 = vpop.permute.xlu0 %1397
        %1399 = vrot.lane.b32.xlu0 %v1295, 64
        %v1400 = vpop.permute.xlu0 %1399
        %1401 = vrot.lane.b32.xlu0 %v1296, 64
        %v1402 = vpop.permute.xlu0 %1401
        %1403 = vrot.lane.b32.xlu0 %v1297, 64
        %v1404 = vpop.permute.xlu0 %1403
        %1405 = vrot.lane.b32.xlu0 %v1298, 64
        %v1406 = vpop.permute.xlu0 %1405
        %1407 = vrot.lane.b32.xlu0 %v1299, 64
        %v1408 = vpop.permute.xlu0 %1407
        %1409 = vrot.lane.b32.xlu0 %v1300, 64
        %v1410 = vpop.permute.xlu0 %1409
        %1411 = vrot.lane.b32.xlu0 %v1301, 64
        %v1412 = vpop.permute.xlu0 %1411
        %1413 = vrot.lane.b32.xlu0 %v1302, 64
        %v1414 = vpop.permute.xlu0 %1413
        %v1431 = vsel %vm738, %v1239, %v1320
        %v1432 = vsel %vm738, %v1240, %v1322
        %v1433 = vsel %vm738, %v1241, %v1324
        %v1434 = vsel %vm738, %v1242, %v1326
        %v1435 = vsel %vm738, %v1243, %v1328
        %v1436 = vsel %vm738, %v1244, %v1330
        %v1437 = vsel %vm738, %v1245, %v1332
        %v1438 = vsel %vm738, %v1246, %v1334
        %v1439 = vsel %vm738, %v1247, %v1336
        %v1440 = vsel %vm738, %v1248, %v1338
        %v1441 = vsel %vm738, %v1249, %v1340
        %v1442 = vsel %vm738, %v1250, %v1342
        %v1443 = vsel %vm738, %v1251, %v1344
        %v1444 = vsel %vm738, %v1252, %v1346
        %v1445 = vsel %vm738, %v1253, %v1348
        %v1446 = vsel %vm738, %v1254, %v1350
        %v1447 = vsel %vm755, %v1431, %v1384
        %v1448 = vsel %vm755, %v1432, %v1386
        %v1449 = vsel %vm755, %v1433, %v1388
        %v1450 = vsel %vm755, %v1434, %v1390
        %v1451 = vsel %vm755, %v1435, %v1392
        %v1452 = vsel %vm755, %v1436, %v1394
        %v1453 = vsel %vm755, %v1437, %v1396
        %v1454 = vsel %vm755, %v1438, %v1398
        %v1455 = vsel %vm755, %v1439, %v1400
        %v1456 = vsel %vm755, %v1440, %v1402
        %v1457 = vsel %vm755, %v1441, %v1404
        %v1458 = vsel %vm755, %v1442, %v1406
        %v1459 = vsel %vm755, %v1443, %v1408
        %v1460 = vsel %vm755, %v1444, %v1410
        %v1461 = vsel %vm755, %v1445, %v1412
        %v1462 = vsel %vm755, %v1446, %v1414
        %v1463 = vpack.c.bf16 %v1448, %v1447
        %v1464 = vpack.c.bf16 %v1450, %v1449
        %v1465 = vpack.c.bf16 %v1452, %v1451
        %v1466 = vpack.c.bf16 %v1454, %v1453
        %v1467 = vpack.c.bf16 %v1456, %v1455
        %v1468 = vpack.c.bf16 %v1458, %v1457
        %v1469 = vpack.c.bf16 %v1460, %v1459
        %v1470 = vpack.c.bf16 %v1462, %v1461
        %v1471 = vlaneseq
        %v1472 = vshrl.u32 %v1471, 7
        %v1473 = vsub.s32 3, %v1472
        %v1474 = vrot.slane %v451, %v1473
        %v1487 = vunpack.c.l.b16 %v464
        %v1488 = vunpack.c.l.b16 %v465
        %v1489 = vunpack.c.l.b16 %v466
        %v1490 = vunpack.c.l.b16 %v467
        %v1491 = vunpack.c.l.b16 %v468
        %v1492 = vunpack.c.l.b16 %v469
        %v1493 = vunpack.c.l.b16 %v470
        %v1494 = vunpack.c.l.b16 %v471
        %v1495 = vunpack.c.l.b16 %v472
        %v1496 = vunpack.c.l.b16 %v473
        %v1497 = vunpack.c.l.b16 %v474
        %v1498 = vunpack.c.l.b16 %v475
        %v1499 = vpack.c.b16 %v1488, %v1487
        %v1500 = vpack.c.b16 %v1490, %v1489
        %v1501 = vpack.c.b16 %v1492, %v1491
        %v1502 = vpack.c.b16 %v1494, %v1493
        %v1503 = vpack.c.b16 %v1496, %v1495
        %v1504 = vpack.c.b16 %v1498, %v1497
        %v1512 = vsel %vm820, %v1463, 0
        %v1515 = vsel %vm820, %v1464, 0
        %v1518 = vsel %vm820, %v1465, 0
        %v1521 = vsel %vm820, %v1466, 0
        %v1524 = vsel %vm820, %v1467, 0
        %v1527 = vsel %vm820, %v1468, 0
        %v1530 = vsel %vm820, %v1469, 0
        %v1533 = vsel %vm820, %v1470, 0
        %1535 = vmatprep.subr.bf16.mxu0 0
        %1536 = vmatpush1.bf16.msra.mxu0 %v1499
        %1537 = vmatprep.subr.bf16.mxu0 0
        %1538 = vmatpush1.bf16.msra.mxu0 %v1500
        %1539 = vmatprep.subr.bf16.mxu0 0
        %1540 = vmatpush1.bf16.msra.mxu0 %v1501
        %1541 = vmatprep.subr.bf16.mxu0 0
        %1542 = vmatpush1.bf16.msra.mxu0 %v1502
        %1543 = vmatprep.subr.bf16.mxu0 0
        %1544 = vmatpush1.bf16.msra.mxu0 %v1503
        %1545 = vmatprep.subr.bf16.mxu0 0
        %1546 = vmatpush1.bf16.msra.mxu0 %v1504
        %1547 = vmatprep.subr.bf16.mxu0 0
        %1548 = vmatpush1.bf16.msra.mxu0 0
        %1549 = vmatprep.subr.bf16.mxu0 0
        %1550 = vmatpush1.bf16.msra.mxu0 0
        %1551 = vmatprep.subr.bf16.mxu0 0
        %1552 = vmatpush1.bf16.msra.mxu0 0
        %1553 = vmatprep.subr.bf16.mxu0 0
        %1554 = vmatpush1.bf16.msra.mxu0 0
        %1555 = vmatprep.subr.bf16.mxu0 0
        %1556 = vmatpush1.bf16.msra.mxu0 0
        %1557 = vmatprep.subr.bf16.mxu0 0
        %1558 = vmatpush1.bf16.msra.mxu0 0
        %1559 = vmatprep.subr.bf16.mxu0 0
        %1560 = vmatpush1.bf16.msra.mxu0 0
        %1561 = vmatprep.subr.bf16.mxu0 0
        %1562 = vmatpush1.bf16.msra.mxu0 0
        %1563 = vmatprep.subr.bf16.mxu0 0
        %1564 = vmatpush1.bf16.msra.mxu0 0
        %1565 = vmatprep.subr.bf16.mxu0 0
        %1566 = vmatpush1.bf16.msra.mxu0 0
        %1567 = vmatprep.mubr.bf16.mxu0 0
        %1568 = vmatmul.mubr.bf16.gmra.mrb[0].mxu0 %v1512
        %v1569 = vpop.f32.mrb[0].mxu0
        %v1570 = vadd.f32 %v1474, %v1569
        %v1571 = vpop.f32.mrb[0].mxu0
        %v1572 = vpop.f32.mrb[0].mxu0
        %v1573 = vadd.f32 %v1474, %v1572
        %v1574 = vpop.f32.mrb[0].mxu0
        %1575 = vmatprep.mubr.bf16.mxu0 0
        %1576 = vmatmul.mubr.bf16.gmra.mrb[0].mxu0 %v1515
        %v1577 = vpop.f32.mrb[0].mxu0
        %v1578 = vadd.f32 %v1474, %v1577
        %v1579 = vpop.f32.mrb[0].mxu0
        %v1580 = vpop.f32.mrb[0].mxu0
        %v1581 = vadd.f32 %v1474, %v1580
        %v1582 = vpop.f32.mrb[0].mxu0
        %1583 = vmatprep.mubr.bf16.mxu0 0
        %1584 = vmatmul.mubr.bf16.gmra.mrb[0].mxu0 %v1518
        %v1585 = vpop.f32.mrb[0].mxu0
        %v1586 = vadd.f32 %v1474, %v1585
        %v1587 = vpop.f32.mrb[0].mxu0
        %v1588 = vpop.f32.mrb[0].mxu0
        %v1589 = vadd.f32 %v1474, %v1588
        %v1590 = vpop.f32.mrb[0].mxu0
        %1591 = vmatprep.mubr.bf16.mxu0 0
        %1592 = vmatmul.mubr.bf16.gmra.mrb[0].mxu0 %v1521
        %v1593 = vpop.f32.mrb[0].mxu0
        %v1594 = vadd.f32 %v1474, %v1593
        %v1595 = vpop.f32.mrb[0].mxu0
        %v1596 = vpop.f32.mrb[0].mxu0
        %v1597 = vadd.f32 %v1474, %v1596
        %v1598 = vpop.f32.mrb[0].mxu0
        %1599 = vmatprep.mubr.bf16.mxu0 0
        %1600 = vmatmul.mubr.bf16.gmra.mrb[0].mxu0 %v1524
        %v1601 = vpop.f32.mrb[0].mxu0
        %v1602 = vadd.f32 %v1474, %v1601
        %v1603 = vpop.f32.mrb[0].mxu0
        %v1604 = vpop.f32.mrb[0].mxu0
        %v1605 = vadd.f32 %v1474, %v1604
        %v1606 = vpop.f32.mrb[0].mxu0
        %1607 = vmatprep.mubr.bf16.mxu0 0
        %1608 = vmatmul.mubr.bf16.gmra.mrb[0].mxu0 %v1527
        %v1609 = vpop.f32.mrb[0].mxu0
        %v1610 = vadd.f32 %v1474, %v1609
        %v1611 = vpop.f32.mrb[0].mxu0
        %v1612 = vpop.f32.mrb[0].mxu0
        %v1613 = vadd.f32 %v1474, %v1612
        %v1614 = vpop.f32.mrb[0].mxu0
        %1615 = vmatprep.mubr.bf16.mxu0 0
        %1616 = vmatmul.mubr.bf16.gmra.mrb[0].mxu0 %v1530
        %v1617 = vpop.f32.mrb[0].mxu0
        %v1618 = vadd.f32 %v1474, %v1617
        %v1619 = vpop.f32.mrb[0].mxu0
        %v1620 = vpop.f32.mrb[0].mxu0
        %v1621 = vadd.f32 %v1474, %v1620
        %v1622 = vpop.f32.mrb[0].mxu0
        %1623 = vmatprep.mubr.bf16.mxu0 0
        %1624 = vmatmul.mubr.bf16.gmra.mrb[0].mxu0 %v1533
        %v1625 = vpop.f32.mrb[0].mxu0
        %v1626 = vadd.f32 %v1474, %v1625
        %v1627 = vpop.f32.mrb[0].mxu0
        %v1628 = vpop.f32.mrb[0].mxu0
        %v1629 = vadd.f32 %v1474, %v1628
        %v1630 = vpop.f32.mrb[0].mxu0
        %1631 = vdwg.mxu0
        %v1632 = vmax.f32 %v1570, 0.0
        %v1633 = vmax.f32 %v1573, 0.0
        %v1634 = vmax.f32 %v1578, 0.0
        %v1635 = vmax.f32 %v1581, 0.0
        %v1636 = vmax.f32 %v1586, 0.0
        %v1637 = vmax.f32 %v1589, 0.0
        %v1638 = vmax.f32 %v1594, 0.0
        %v1639 = vmax.f32 %v1597, 0.0
        %v1640 = vmax.f32 %v1602, 0.0
        %v1641 = vmax.f32 %v1605, 0.0
        %v1642 = vmax.f32 %v1610, 0.0
        %v1643 = vmax.f32 %v1613, 0.0
        %v1644 = vmax.f32 %v1618, 0.0
        %v1645 = vmax.f32 %v1621, 0.0
        %v1646 = vmax.f32 %v1626, 0.0
        %v1647 = vmax.f32 %v1629, 0.0
        %v1648 = vsel %vm738, %v1632, 0.0
        %1649 = vadd.xlane.f32.xlu0 %v1648
        %v1650 = vpop.xlane.xlu0 %1649
        %v1651 = vsel %vm738, %v1633, 0.0
        %1652 = vadd.xlane.f32.xlu0 %v1651
        %v1653 = vpop.xlane.xlu0 %1652
        %v1654 = vsel %vm738, %v1634, 0.0
        %1655 = vadd.xlane.f32.xlu0 %v1654
        %v1656 = vpop.xlane.xlu0 %1655
        %v1657 = vsel %vm738, %v1635, 0.0
        %1658 = vadd.xlane.f32.xlu0 %v1657
        %v1659 = vpop.xlane.xlu0 %1658
        %v1660 = vsel %vm738, %v1636, 0.0
        %1661 = vadd.xlane.f32.xlu0 %v1660
        %v1662 = vpop.xlane.xlu0 %1661
        %v1663 = vsel %vm738, %v1637, 0.0
        %1664 = vadd.xlane.f32.xlu0 %v1663
        %v1665 = vpop.xlane.xlu0 %1664
        %v1666 = vsel %vm738, %v1638, 0.0
        %1667 = vadd.xlane.f32.xlu0 %v1666
        %v1668 = vpop.xlane.xlu0 %1667
        %v1669 = vsel %vm738, %v1639, 0.0
        %1670 = vadd.xlane.f32.xlu0 %v1669
        %v1671 = vpop.xlane.xlu0 %1670
        %v1672 = vsel %vm738, %v1640, 0.0
        %1673 = vadd.xlane.f32.xlu0 %v1672
        %v1674 = vpop.xlane.xlu0 %1673
        %v1675 = vsel %vm738, %v1641, 0.0
        %1676 = vadd.xlane.f32.xlu0 %v1675
        %v1677 = vpop.xlane.xlu0 %1676
        %v1678 = vsel %vm738, %v1642, 0.0
        %1679 = vadd.xlane.f32.xlu0 %v1678
        %v1680 = vpop.xlane.xlu0 %1679
        %v1681 = vsel %vm738, %v1643, 0.0
        %1682 = vadd.xlane.f32.xlu0 %v1681
        %v1683 = vpop.xlane.xlu0 %1682
        %v1684 = vsel %vm738, %v1644, 0.0
        %1685 = vadd.xlane.f32.xlu0 %v1684
        %v1686 = vpop.xlane.xlu0 %1685
        %v1687 = vsel %vm738, %v1645, 0.0
        %1688 = vadd.xlane.f32.xlu0 %v1687
        %v1689 = vpop.xlane.xlu0 %1688
        %v1690 = vsel %vm738, %v1646, 0.0
        %1691 = vadd.xlane.f32.xlu0 %v1690
        %v1692 = vpop.xlane.xlu0 %1691
        %v1693 = vsel %vm738, %v1647, 0.0
        %1694 = vadd.xlane.f32.xlu0 %v1693
        %v1695 = vpop.xlane.xlu0 %1694
        %v1696 = vmul.f32 %v1650, %v1006
        %v1697 = vmul.f32 %v1653, %v1006
        %v1698 = vmul.f32 %v1656, %v1006
        %v1699 = vmul.f32 %v1659, %v1006
        %v1700 = vmul.f32 %v1662, %v1006
        %v1701 = vmul.f32 %v1665, %v1006
        %v1702 = vmul.f32 %v1668, %v1006
        %v1703 = vmul.f32 %v1671, %v1006
        %v1704 = vmul.f32 %v1674, %v1006
        %v1705 = vmul.f32 %v1677, %v1006
        %v1706 = vmul.f32 %v1680, %v1006
        %v1707 = vmul.f32 %v1683, %v1006
        %v1708 = vmul.f32 %v1686, %v1006
        %v1709 = vmul.f32 %v1689, %v1006
        %v1710 = vmul.f32 %v1692, %v1006
        %v1711 = vmul.f32 %v1695, %v1006
        %v1712 = vsub.f32 %v1632, %v1696
        %v1713 = vsub.f32 %v1633, %v1697
        %v1714 = vsub.f32 %v1634, %v1698
        %v1715 = vsub.f32 %v1635, %v1699
        %v1716 = vsub.f32 %v1636, %v1700
        %v1717 = vsub.f32 %v1637, %v1701
        %v1718 = vsub.f32 %v1638, %v1702
        %v1719 = vsub.f32 %v1639, %v1703
        %v1720 = vsub.f32 %v1640, %v1704
        %v1721 = vsub.f32 %v1641, %v1705
        %v1722 = vsub.f32 %v1642, %v1706
        %v1723 = vsub.f32 %v1643, %v1707
        %v1724 = vsub.f32 %v1644, %v1708
        %v1725 = vsub.f32 %v1645, %v1709
        %v1726 = vsub.f32 %v1646, %v1710
        %v1727 = vsub.f32 %v1647, %v1711
        %v1728 = vmul.f32 %v1712, %v1712
        %v1729 = vmul.f32 %v1713, %v1713
        %v1730 = vmul.f32 %v1714, %v1714
        %v1731 = vmul.f32 %v1715, %v1715
        %v1732 = vmul.f32 %v1716, %v1716
        %v1733 = vmul.f32 %v1717, %v1717
        %v1734 = vmul.f32 %v1718, %v1718
        %v1735 = vmul.f32 %v1719, %v1719
        %v1736 = vmul.f32 %v1720, %v1720
        %v1737 = vmul.f32 %v1721, %v1721
        %v1738 = vmul.f32 %v1722, %v1722
        %v1739 = vmul.f32 %v1723, %v1723
        %v1740 = vmul.f32 %v1724, %v1724
        %v1741 = vmul.f32 %v1725, %v1725
        %v1742 = vmul.f32 %v1726, %v1726
        %v1743 = vmul.f32 %v1727, %v1727
        %v1744 = vsel %vm738, %v1728, 0.0
        %1745 = vadd.xlane.f32.xlu0 %v1744
        %v1746 = vpop.xlane.xlu0 %1745
        %v1747 = vsel %vm738, %v1729, 0.0
        %1748 = vadd.xlane.f32.xlu0 %v1747
        %v1749 = vpop.xlane.xlu0 %1748
        %v1750 = vsel %vm738, %v1730, 0.0
        %1751 = vadd.xlane.f32.xlu0 %v1750
        %v1752 = vpop.xlane.xlu0 %1751
        %v1753 = vsel %vm738, %v1731, 0.0
        %1754 = vadd.xlane.f32.xlu0 %v1753
        %v1755 = vpop.xlane.xlu0 %1754
        %v1756 = vsel %vm738, %v1732, 0.0
        %1757 = vadd.xlane.f32.xlu0 %v1756
        %v1758 = vpop.xlane.xlu0 %1757
        %v1759 = vsel %vm738, %v1733, 0.0
        %1760 = vadd.xlane.f32.xlu0 %v1759
        %v1761 = vpop.xlane.xlu0 %1760
        %v1762 = vsel %vm738, %v1734, 0.0
        %1763 = vadd.xlane.f32.xlu0 %v1762
        %v1764 = vpop.xlane.xlu0 %1763
        %v1765 = vsel %vm738, %v1735, 0.0
        %1766 = vadd.xlane.f32.xlu0 %v1765
        %v1767 = vpop.xlane.xlu0 %1766
        %v1768 = vsel %vm738, %v1736, 0.0
        %1769 = vadd.xlane.f32.xlu0 %v1768
        %v1770 = vpop.xlane.xlu0 %1769
        %v1771 = vsel %vm738, %v1737, 0.0
        %1772 = vadd.xlane.f32.xlu0 %v1771
        %v1773 = vpop.xlane.xlu0 %1772
        %v1774 = vsel %vm738, %v1738, 0.0
        %1775 = vadd.xlane.f32.xlu0 %v1774
        %v1776 = vpop.xlane.xlu0 %1775
        %v1777 = vsel %vm738, %v1739, 0.0
        %1778 = vadd.xlane.f32.xlu0 %v1777
        %v1779 = vpop.xlane.xlu0 %1778
        %v1780 = vsel %vm738, %v1740, 0.0
        %1781 = vadd.xlane.f32.xlu0 %v1780
        %v1782 = vpop.xlane.xlu0 %1781
        %v1783 = vsel %vm738, %v1741, 0.0
        %1784 = vadd.xlane.f32.xlu0 %v1783
        %v1785 = vpop.xlane.xlu0 %1784
        %v1786 = vsel %vm738, %v1742, 0.0
        %1787 = vadd.xlane.f32.xlu0 %v1786
        %v1788 = vpop.xlane.xlu0 %1787
        %v1789 = vsel %vm738, %v1743, 0.0
        %1790 = vadd.xlane.f32.xlu0 %v1789
        %v1791 = vpop.xlane.xlu0 %1790
        %v1792 = vmul.f32 %v1746, %v1006
        %v1793 = vmul.f32 %v1749, %v1006
        %v1794 = vmul.f32 %v1752, %v1006
        %v1795 = vmul.f32 %v1755, %v1006
        %v1796 = vmul.f32 %v1758, %v1006
        %v1797 = vmul.f32 %v1761, %v1006
        %v1798 = vmul.f32 %v1764, %v1006
        %v1799 = vmul.f32 %v1767, %v1006
        %v1800 = vmul.f32 %v1770, %v1006
        %v1801 = vmul.f32 %v1773, %v1006
        %v1802 = vmul.f32 %v1776, %v1006
        %v1803 = vmul.f32 %v1779, %v1006
        %v1804 = vmul.f32 %v1782, %v1006
        %v1805 = vmul.f32 %v1785, %v1006
        %v1806 = vmul.f32 %v1788, %v1006
        %v1807 = vmul.f32 %v1791, %v1006
        %v1808 = vadd.f32 %v1792, 1e-05
        %v1809 = vadd.f32 %v1793, 1e-05
        %v1810 = vadd.f32 %v1794, 1e-05
        %v1811 = vadd.f32 %v1795, 1e-05
        %v1812 = vadd.f32 %v1796, 1e-05
        %v1813 = vadd.f32 %v1797, 1e-05
        %v1814 = vadd.f32 %v1798, 1e-05
        %v1815 = vadd.f32 %v1799, 1e-05
        %v1816 = vadd.f32 %v1800, 1e-05
        %v1817 = vadd.f32 %v1801, 1e-05
        %v1818 = vadd.f32 %v1802, 1e-05
        %v1819 = vadd.f32 %v1803, 1e-05
        %v1820 = vadd.f32 %v1804, 1e-05
        %v1821 = vadd.f32 %v1805, 1e-05
        %v1822 = vadd.f32 %v1806, 1e-05
        %v1823 = vadd.f32 %v1807, 1e-05
        %v1824 = vrsqrt.pop %v1808
        %v1825 = vrsqrt.pop %v1809
        %v1826 = vrsqrt.pop %v1810
        %v1827 = vrsqrt.pop %v1811
        %v1828 = vrsqrt.pop %v1812
        %v1829 = vrsqrt.pop %v1813
        %v1830 = vrsqrt.pop %v1814
        %v1831 = vrsqrt.pop %v1815
        %v1832 = vrsqrt.pop %v1816
        %v1833 = vrsqrt.pop %v1817
        %v1834 = vrsqrt.pop %v1818
        %v1835 = vrsqrt.pop %v1819
        %v1836 = vrsqrt.pop %v1820
        %v1837 = vrsqrt.pop %v1821
        %v1838 = vrsqrt.pop %v1822
        %v1839 = vrsqrt.pop %v1823
        %v1840 = vmul.f32 %v1712, %v1824
        %v1841 = vmul.f32 %v1713, %v1825
        %v1842 = vmul.f32 %v1714, %v1826
        %v1843 = vmul.f32 %v1715, %v1827
        %v1844 = vmul.f32 %v1716, %v1828
        %v1845 = vmul.f32 %v1717, %v1829
        %v1846 = vmul.f32 %v1718, %v1830
        %v1847 = vmul.f32 %v1719, %v1831
        %v1848 = vmul.f32 %v1720, %v1832
        %v1849 = vmul.f32 %v1721, %v1833
        %v1850 = vmul.f32 %v1722, %v1834
        %v1851 = vmul.f32 %v1723, %v1835
        %v1852 = vmul.f32 %v1724, %v1836
        %v1853 = vmul.f32 %v1725, %v1837
        %v1854 = vmul.f32 %v1726, %v1838
        %v1855 = vmul.f32 %v1727, %v1839
        %v1856 = vlaneseq
        %v1857 = vshrl.u32 %v1856, 7
        %v1858 = vsub.s32 4, %v1857
        %v1859 = vrot.slane %v451, %v1858
        %v1860 = vmul.f32 %v1840, %v1859
        %v1861 = vmul.f32 %v1841, %v1859
        %v1862 = vmul.f32 %v1842, %v1859
        %v1863 = vmul.f32 %v1843, %v1859
        %v1864 = vmul.f32 %v1844, %v1859
        %v1865 = vmul.f32 %v1845, %v1859
        %v1866 = vmul.f32 %v1846, %v1859
        %v1867 = vmul.f32 %v1847, %v1859
        %v1868 = vmul.f32 %v1848, %v1859
        %v1869 = vmul.f32 %v1849, %v1859
        %v1870 = vmul.f32 %v1850, %v1859
        %v1871 = vmul.f32 %v1851, %v1859
        %v1872 = vmul.f32 %v1852, %v1859
        %v1873 = vmul.f32 %v1853, %v1859
        %v1874 = vmul.f32 %v1854, %v1859
        %v1875 = vmul.f32 %v1855, %v1859
        %v1876 = vlaneseq
        %v1877 = vshrl.u32 %v1876, 7
        %v1878 = vsub.s32 5, %v1877
        %v1879 = vrot.slane %v451, %v1878
        %v1880 = vadd.f32 %v1860, %v1879
        %v1881 = vadd.f32 %v1861, %v1879
        %v1882 = vadd.f32 %v1862, %v1879
        %v1883 = vadd.f32 %v1863, %v1879
        %v1884 = vadd.f32 %v1864, %v1879
        %v1885 = vadd.f32 %v1865, %v1879
        %v1886 = vadd.f32 %v1866, %v1879
        %v1887 = vadd.f32 %v1867, %v1879
        %v1888 = vadd.f32 %v1868, %v1879
        %v1889 = vadd.f32 %v1869, %v1879
        %v1890 = vadd.f32 %v1870, %v1879
        %v1891 = vadd.f32 %v1871, %v1879
        %v1892 = vadd.f32 %v1872, %v1879
        %v1893 = vadd.f32 %v1873, %v1879
        %v1894 = vadd.f32 %v1874, %v1879
        %v1895 = vadd.f32 %v1875, %v1879
        %v1896 = vlaneseq
        %v1897 = vshrl.u32 %v1896, 7
        %v1898 = vsub.s32 6, %v1897
        %v1899 = vrot.slane %v451, %v1898
        %v1900 = vmul.f32 %v1880, %v1899
        %v1901 = vmul.f32 %v1881, %v1899
        %v1902 = vmul.f32 %v1882, %v1899
        %v1903 = vmul.f32 %v1883, %v1899
        %v1904 = vmul.f32 %v1884, %v1899
        %v1905 = vmul.f32 %v1885, %v1899
        %v1906 = vmul.f32 %v1886, %v1899
        %v1907 = vmul.f32 %v1887, %v1899
        %v1908 = vmul.f32 %v1888, %v1899
        %v1909 = vmul.f32 %v1889, %v1899
        %v1910 = vmul.f32 %v1890, %v1899
        %v1911 = vmul.f32 %v1891, %v1899
        %v1912 = vmul.f32 %v1892, %v1899
        %v1913 = vmul.f32 %v1893, %v1899
        %v1914 = vmul.f32 %v1894, %v1899
        %v1915 = vmul.f32 %v1895, %v1899
        %v1916 = vsel %vm738, %v1900, 0.0
        %1917 = vadd.xlane.f32.xlu0 %v1916
        %v1918 = vpop.xlane.xlu0 %1917
        %v1919 = vsel %vm738, %v1901, 0.0
        %1920 = vadd.xlane.f32.xlu0 %v1919
        %v1921 = vpop.xlane.xlu0 %1920
        %v1922 = vsel %vm738, %v1902, 0.0
        %1923 = vadd.xlane.f32.xlu0 %v1922
        %v1924 = vpop.xlane.xlu0 %1923
        %v1925 = vsel %vm738, %v1903, 0.0
        %1926 = vadd.xlane.f32.xlu0 %v1925
        %v1927 = vpop.xlane.xlu0 %1926
        %v1928 = vsel %vm738, %v1904, 0.0
        %1929 = vadd.xlane.f32.xlu0 %v1928
        %v1930 = vpop.xlane.xlu0 %1929
        %v1931 = vsel %vm738, %v1905, 0.0
        %1932 = vadd.xlane.f32.xlu0 %v1931
        %v1933 = vpop.xlane.xlu0 %1932
        %v1934 = vsel %vm738, %v1906, 0.0
        %1935 = vadd.xlane.f32.xlu0 %v1934
        %v1936 = vpop.xlane.xlu0 %1935
        %v1937 = vsel %vm738, %v1907, 0.0
        %1938 = vadd.xlane.f32.xlu0 %v1937
        %v1939 = vpop.xlane.xlu0 %1938
        %v1940 = vsel %vm738, %v1908, 0.0
        %1941 = vadd.xlane.f32.xlu0 %v1940
        %v1942 = vpop.xlane.xlu0 %1941
        %v1943 = vsel %vm738, %v1909, 0.0
        %1944 = vadd.xlane.f32.xlu0 %v1943
        %v1945 = vpop.xlane.xlu0 %1944
        %v1946 = vsel %vm738, %v1910, 0.0
        %1947 = vadd.xlane.f32.xlu0 %v1946
        %v1948 = vpop.xlane.xlu0 %1947
        %v1949 = vsel %vm738, %v1911, 0.0
        %1950 = vadd.xlane.f32.xlu0 %v1949
        %v1951 = vpop.xlane.xlu0 %1950
        %v1952 = vsel %vm738, %v1912, 0.0
        %1953 = vadd.xlane.f32.xlu0 %v1952
        %v1954 = vpop.xlane.xlu0 %1953
        %v1955 = vsel %vm738, %v1913, 0.0
        %1956 = vadd.xlane.f32.xlu0 %v1955
        %v1957 = vpop.xlane.xlu0 %1956
        %v1958 = vsel %vm738, %v1914, 0.0
        %1959 = vadd.xlane.f32.xlu0 %v1958
        %v1960 = vpop.xlane.xlu0 %1959
        %v1961 = vsel %vm738, %v1915, 0.0
        %1962 = vadd.xlane.f32.xlu0 %v1961
        %v1963 = vpop.xlane.xlu0 %1962
        %v1964 = vlaneseq
        %v1965 = vshrl.u32 %v1964, 7
        %v1966 = vsub.s32 7, %v1965
        %v1967 = vrot.slane %v451, %v1966
        %v1968 = vadd.f32 %v1918, %v1967
        %v1969 = vadd.f32 %v1921, %v1967
        %v1970 = vadd.f32 %v1924, %v1967
        %v1971 = vadd.f32 %v1927, %v1967
        %v1972 = vadd.f32 %v1930, %v1967
        %v1973 = vadd.f32 %v1933, %v1967
        %v1974 = vadd.f32 %v1936, %v1967
        %v1975 = vadd.f32 %v1939, %v1967
        %v1976 = vadd.f32 %v1942, %v1967
        %v1977 = vadd.f32 %v1945, %v1967
        %v1978 = vadd.f32 %v1948, %v1967
        %v1979 = vadd.f32 %v1951, %v1967
        %v1980 = vadd.f32 %v1954, %v1967
        %v1981 = vadd.f32 %v1957, %v1967
        %v1982 = vadd.f32 %v1960, %v1967
        %v1983 = vadd.f32 %v1963, %v1967
        %v1984 = vsel %vm403, %v1968, 0.0
        %v1985 = vsel %vm404, %v1969, 0.0
        %v1986 = vsel %vm405, %v1970, 0.0
        %v1987 = vsel %vm406, %v1971, 0.0
        %v1988 = vsel %vm407, %v1972, 0.0
        %v1989 = vsel %vm408, %v1973, 0.0
        %v1990 = vsel %vm409, %v1974, 0.0
        %v1991 = vsel %vm410, %v1975, 0.0
        %v1992 = vsel %vm411, %v1976, 0.0
        %v1993 = vsel %vm412, %v1977, 0.0
        %v1994 = vsel %vm413, %v1978, 0.0
        %v1995 = vsel %vm414, %v1979, 0.0
        %v1996 = vsel %vm415, %v1980, 0.0
        %v1997 = vsel %vm416, %v1981, 0.0
        %v1998 = vsel %vm417, %v1982, 0.0
        %v1999 = vsel %vm418, %v1983, 0.0
        %v2000 = vld [vmem:[%s6] sm:$0x1]
        %v2001 = vlaneseq
        %v2002 = vshrl.u32 %v2001, 7
        %v2003 = vsub.s32 0, %v2002
        %v2004 = vrot.slane %v2000, %v2003
        %2006 = vset.pattern.permute.xlu0 0
        %2007 = vperm.xlu0 %2006, %v1984
        %v2008 = vpop.permute.xlu0 %2007
        %2011 = vset.pattern.permute.xlu0 0
        %2012 = vperm.xlu0 %2011, %v1985
        %v2013 = vpop.permute.xlu0 %2012
        %2016 = vset.pattern.permute.xlu0 0
        %2017 = vperm.xlu0 %2016, %v1986
        %v2018 = vpop.permute.xlu0 %2017
        %2021 = vset.pattern.permute.xlu0 0
        %2022 = vperm.xlu0 %2021, %v1987
        %v2023 = vpop.permute.xlu0 %2022
        %2026 = vset.pattern.permute.xlu0 0
        %2027 = vperm.xlu0 %2026, %v1988
        %v2028 = vpop.permute.xlu0 %2027
        %2031 = vset.pattern.permute.xlu0 0
        %2032 = vperm.xlu0 %2031, %v1989
        %v2033 = vpop.permute.xlu0 %2032
        %2036 = vset.pattern.permute.xlu0 0
        %2037 = vperm.xlu0 %2036, %v1990
        %v2038 = vpop.permute.xlu0 %2037
        %2041 = vset.pattern.permute.xlu0 0
        %2042 = vperm.xlu0 %2041, %v1991
        %v2043 = vpop.permute.xlu0 %2042
        %2046 = vset.pattern.permute.xlu0 0
        %2047 = vperm.xlu0 %2046, %v1992
        %v2048 = vpop.permute.xlu0 %2047
        %2051 = vset.pattern.permute.xlu0 0
        %2052 = vperm.xlu0 %2051, %v1993
        %v2053 = vpop.permute.xlu0 %2052
        %2056 = vset.pattern.permute.xlu0 0
        %2057 = vperm.xlu0 %2056, %v1994
        %v2058 = vpop.permute.xlu0 %2057
        %2061 = vset.pattern.permute.xlu0 0
        %2062 = vperm.xlu0 %2061, %v1995
        %v2063 = vpop.permute.xlu0 %2062
        %2066 = vset.pattern.permute.xlu0 0
        %2067 = vperm.xlu0 %2066, %v1996
        %v2068 = vpop.permute.xlu0 %2067
        %2071 = vset.pattern.permute.xlu0 0
        %2072 = vperm.xlu0 %2071, %v1997
        %v2073 = vpop.permute.xlu0 %2072
        %2076 = vset.pattern.permute.xlu0 0
        %2077 = vperm.xlu0 %2076, %v1998
        %v2078 = vpop.permute.xlu0 %2077
        %2081 = vset.pattern.permute.xlu0 0
        %2082 = vperm.xlu0 %2081, %v1999
        %v2083 = vpop.permute.xlu0 %2082
        %vm2085 = vcmp.lt.f32.partialorder %v2004, %v2008
        %vm2086 = vcmp.lt.f32.partialorder %v2004, %v2013
        %vm2087 = vcmp.lt.f32.partialorder %v2004, %v2018
        %vm2088 = vcmp.lt.f32.partialorder %v2004, %v2023
        %vm2089 = vcmp.lt.f32.partialorder %v2004, %v2028
        %vm2090 = vcmp.lt.f32.partialorder %v2004, %v2033
        %vm2091 = vcmp.lt.f32.partialorder %v2004, %v2038
        %vm2092 = vcmp.lt.f32.partialorder %v2004, %v2043
        %vm2093 = vcmp.lt.f32.partialorder %v2004, %v2048
        %vm2094 = vcmp.lt.f32.partialorder %v2004, %v2053
        %vm2095 = vcmp.lt.f32.partialorder %v2004, %v2058
        %vm2096 = vcmp.lt.f32.partialorder %v2004, %v2063
        %vm2097 = vcmp.lt.f32.partialorder %v2004, %v2068
        %vm2098 = vcmp.lt.f32.partialorder %v2004, %v2073
        %vm2099 = vcmp.lt.f32.partialorder %v2004, %v2078
        %vm2100 = vcmp.lt.f32.partialorder %v2004, %v2083
        %v2101 = vsel %vm2085, 1, 0
        %v2102 = vsel %vm2086, 1, 0
        %v2103 = vsel %vm2087, 1, 0
        %v2104 = vsel %vm2088, 1, 0
        %v2105 = vsel %vm2089, 1, 0
        %v2106 = vsel %vm2090, 1, 0
        %v2107 = vsel %vm2091, 1, 0
        %v2108 = vsel %vm2092, 1, 0
        %v2109 = vsel %vm2093, 1, 0
        %v2110 = vsel %vm2094, 1, 0
        %v2111 = vsel %vm2095, 1, 0
        %v2112 = vsel %vm2096, 1, 0
        %v2113 = vsel %vm2097, 1, 0
        %v2114 = vsel %vm2098, 1, 0
        %v2115 = vsel %vm2099, 1, 0
        %v2116 = vsel %vm2100, 1, 0
        %v2117 = vand.u32 %v2101, 65535
        %v2118 = vshrl.u32 %v2101, 16
        %v2119 = vcvt.s32.f32 %v2117
        %v2120 = vcvt.s32.f32 %v2118
        %2121 = vadd.xlane.f32.xlu0 %v2119
        %v2122 = vpop.xlane.xlu0 %2121
        %2123 = vadd.xlane.f32.xlu0 %v2120
        %v2124 = vpop.xlane.xlu0 %2123
        %v2125 = vcvt.f32.s32 %v2122
        %v2126 = vcvt.f32.s32 %v2124
        %v2127 = vshll.u32 %v2126, 16
        %v2128 = vadd.s32 %v2127, %v2125
        %v2129 = vand.u32 %v2102, 65535
        %v2130 = vshrl.u32 %v2102, 16
        %v2131 = vcvt.s32.f32 %v2129
        %v2132 = vcvt.s32.f32 %v2130
        %2133 = vadd.xlane.f32.xlu0 %v2131
        %v2134 = vpop.xlane.xlu0 %2133
        %2135 = vadd.xlane.f32.xlu0 %v2132
        %v2136 = vpop.xlane.xlu0 %2135
        %v2137 = vcvt.f32.s32 %v2134
        %v2138 = vcvt.f32.s32 %v2136
        %v2139 = vshll.u32 %v2138, 16
        %v2140 = vadd.s32 %v2139, %v2137
        %v2141 = vand.u32 %v2103, 65535
        %v2142 = vshrl.u32 %v2103, 16
        %v2143 = vcvt.s32.f32 %v2141
        %v2144 = vcvt.s32.f32 %v2142
        %2145 = vadd.xlane.f32.xlu0 %v2143
        %v2146 = vpop.xlane.xlu0 %2145
        %2147 = vadd.xlane.f32.xlu0 %v2144
        %v2148 = vpop.xlane.xlu0 %2147
        %v2149 = vcvt.f32.s32 %v2146
        %v2150 = vcvt.f32.s32 %v2148
        %v2151 = vshll.u32 %v2150, 16
        %v2152 = vadd.s32 %v2151, %v2149
        %v2153 = vand.u32 %v2104, 65535
        %v2154 = vshrl.u32 %v2104, 16
        %v2155 = vcvt.s32.f32 %v2153
        %v2156 = vcvt.s32.f32 %v2154
        %2157 = vadd.xlane.f32.xlu0 %v2155
        %v2158 = vpop.xlane.xlu0 %2157
        %2159 = vadd.xlane.f32.xlu0 %v2156
        %v2160 = vpop.xlane.xlu0 %2159
        %v2161 = vcvt.f32.s32 %v2158
        %v2162 = vcvt.f32.s32 %v2160
        %v2163 = vshll.u32 %v2162, 16
        %v2164 = vadd.s32 %v2163, %v2161
        %v2165 = vand.u32 %v2105, 65535
        %v2166 = vshrl.u32 %v2105, 16
        %v2167 = vcvt.s32.f32 %v2165
        %v2168 = vcvt.s32.f32 %v2166
        %2169 = vadd.xlane.f32.xlu0 %v2167
        %v2170 = vpop.xlane.xlu0 %2169
        %2171 = vadd.xlane.f32.xlu0 %v2168
        %v2172 = vpop.xlane.xlu0 %2171
        %v2173 = vcvt.f32.s32 %v2170
        %v2174 = vcvt.f32.s32 %v2172
        %v2175 = vshll.u32 %v2174, 16
        %v2176 = vadd.s32 %v2175, %v2173
        %v2177 = vand.u32 %v2106, 65535
        %v2178 = vshrl.u32 %v2106, 16
        %v2179 = vcvt.s32.f32 %v2177
        %v2180 = vcvt.s32.f32 %v2178
        %2181 = vadd.xlane.f32.xlu0 %v2179
        %v2182 = vpop.xlane.xlu0 %2181
        %2183 = vadd.xlane.f32.xlu0 %v2180
        %v2184 = vpop.xlane.xlu0 %2183
        %v2185 = vcvt.f32.s32 %v2182
        %v2186 = vcvt.f32.s32 %v2184
        %v2187 = vshll.u32 %v2186, 16
        %v2188 = vadd.s32 %v2187, %v2185
        %v2189 = vand.u32 %v2107, 65535
        %v2190 = vshrl.u32 %v2107, 16
        %v2191 = vcvt.s32.f32 %v2189
        %v2192 = vcvt.s32.f32 %v2190
        %2193 = vadd.xlane.f32.xlu0 %v2191
        %v2194 = vpop.xlane.xlu0 %2193
        %2195 = vadd.xlane.f32.xlu0 %v2192
        %v2196 = vpop.xlane.xlu0 %2195
        %v2197 = vcvt.f32.s32 %v2194
        %v2198 = vcvt.f32.s32 %v2196
        %v2199 = vshll.u32 %v2198, 16
        %v2200 = vadd.s32 %v2199, %v2197
        %v2201 = vand.u32 %v2108, 65535
        %v2202 = vshrl.u32 %v2108, 16
        %v2203 = vcvt.s32.f32 %v2201
        %v2204 = vcvt.s32.f32 %v2202
        %2205 = vadd.xlane.f32.xlu0 %v2203
        %v2206 = vpop.xlane.xlu0 %2205
        %2207 = vadd.xlane.f32.xlu0 %v2204
        %v2208 = vpop.xlane.xlu0 %2207
        %v2209 = vcvt.f32.s32 %v2206
        %v2210 = vcvt.f32.s32 %v2208
        %v2211 = vshll.u32 %v2210, 16
        %v2212 = vadd.s32 %v2211, %v2209
        %v2213 = vand.u32 %v2109, 65535
        %v2214 = vshrl.u32 %v2109, 16
        %v2215 = vcvt.s32.f32 %v2213
        %v2216 = vcvt.s32.f32 %v2214
        %2217 = vadd.xlane.f32.xlu0 %v2215
        %v2218 = vpop.xlane.xlu0 %2217
        %2219 = vadd.xlane.f32.xlu0 %v2216
        %v2220 = vpop.xlane.xlu0 %2219
        %v2221 = vcvt.f32.s32 %v2218
        %v2222 = vcvt.f32.s32 %v2220
        %v2223 = vshll.u32 %v2222, 16
        %v2224 = vadd.s32 %v2223, %v2221
        %v2225 = vand.u32 %v2110, 65535
        %v2226 = vshrl.u32 %v2110, 16
        %v2227 = vcvt.s32.f32 %v2225
        %v2228 = vcvt.s32.f32 %v2226
        %2229 = vadd.xlane.f32.xlu0 %v2227
        %v2230 = vpop.xlane.xlu0 %2229
        %2231 = vadd.xlane.f32.xlu0 %v2228
        %v2232 = vpop.xlane.xlu0 %2231
        %v2233 = vcvt.f32.s32 %v2230
        %v2234 = vcvt.f32.s32 %v2232
        %v2235 = vshll.u32 %v2234, 16
        %v2236 = vadd.s32 %v2235, %v2233
        %v2237 = vand.u32 %v2111, 65535
        %v2238 = vshrl.u32 %v2111, 16
        %v2239 = vcvt.s32.f32 %v2237
        %v2240 = vcvt.s32.f32 %v2238
        %2241 = vadd.xlane.f32.xlu0 %v2239
        %v2242 = vpop.xlane.xlu0 %2241
        %2243 = vadd.xlane.f32.xlu0 %v2240
        %v2244 = vpop.xlane.xlu0 %2243
        %v2245 = vcvt.f32.s32 %v2242
        %v2246 = vcvt.f32.s32 %v2244
        %v2247 = vshll.u32 %v2246, 16
        %v2248 = vadd.s32 %v2247, %v2245
        %v2249 = vand.u32 %v2112, 65535
        %v2250 = vshrl.u32 %v2112, 16
        %v2251 = vcvt.s32.f32 %v2249
        %v2252 = vcvt.s32.f32 %v2250
        %2253 = vadd.xlane.f32.xlu0 %v2251
        %v2254 = vpop.xlane.xlu0 %2253
        %2255 = vadd.xlane.f32.xlu0 %v2252
        %v2256 = vpop.xlane.xlu0 %2255
        %v2257 = vcvt.f32.s32 %v2254
        %v2258 = vcvt.f32.s32 %v2256
        %v2259 = vshll.u32 %v2258, 16
        %v2260 = vadd.s32 %v2259, %v2257
        %v2261 = vand.u32 %v2113, 65535
        %v2262 = vshrl.u32 %v2113, 16
        %v2263 = vcvt.s32.f32 %v2261
        %v2264 = vcvt.s32.f32 %v2262
        %2265 = vadd.xlane.f32.xlu0 %v2263
        %v2266 = vpop.xlane.xlu0 %2265
        %2267 = vadd.xlane.f32.xlu0 %v2264
        %v2268 = vpop.xlane.xlu0 %2267
        %v2269 = vcvt.f32.s32 %v2266
        %v2270 = vcvt.f32.s32 %v2268
        %v2271 = vshll.u32 %v2270, 16
        %v2272 = vadd.s32 %v2271, %v2269
        %v2273 = vand.u32 %v2114, 65535
        %v2274 = vshrl.u32 %v2114, 16
        %v2275 = vcvt.s32.f32 %v2273
        %v2276 = vcvt.s32.f32 %v2274
        %2277 = vadd.xlane.f32.xlu0 %v2275
        %v2278 = vpop.xlane.xlu0 %2277
        %2279 = vadd.xlane.f32.xlu0 %v2276
        %v2280 = vpop.xlane.xlu0 %2279
        %v2281 = vcvt.f32.s32 %v2278
        %v2282 = vcvt.f32.s32 %v2280
        %v2283 = vshll.u32 %v2282, 16
        %v2284 = vadd.s32 %v2283, %v2281
        %v2285 = vand.u32 %v2115, 65535
        %v2286 = vshrl.u32 %v2115, 16
        %v2287 = vcvt.s32.f32 %v2285
        %v2288 = vcvt.s32.f32 %v2286
        %2289 = vadd.xlane.f32.xlu0 %v2287
        %v2290 = vpop.xlane.xlu0 %2289
        %2291 = vadd.xlane.f32.xlu0 %v2288
        %v2292 = vpop.xlane.xlu0 %2291
        %v2293 = vcvt.f32.s32 %v2290
        %v2294 = vcvt.f32.s32 %v2292
        %v2295 = vshll.u32 %v2294, 16
        %v2296 = vadd.s32 %v2295, %v2293
        %v2297 = vand.u32 %v2116, 65535
        %v2298 = vshrl.u32 %v2116, 16
        %v2299 = vcvt.s32.f32 %v2297
        %v2300 = vcvt.s32.f32 %v2298
        %2301 = vadd.xlane.f32.xlu0 %v2299
        %v2302 = vpop.xlane.xlu0 %2301
        %2303 = vadd.xlane.f32.xlu0 %v2300
        %v2304 = vpop.xlane.xlu0 %2303
        %v2305 = vcvt.f32.s32 %v2302
        %v2306 = vcvt.f32.s32 %v2304
        %v2307 = vshll.u32 %v2306, 16
        %v2308 = vadd.s32 %v2307, %v2305
        %v2309 = vlaneseq
        %v2310 = vand.u32 %v2309, 127
        %vm2311 = vcmp.eq.s32.totalorder %v2310, %v2128
        %vm2312 = vcmp.eq.s32.totalorder %v2310, %v2140
        %vm2313 = vcmp.eq.s32.totalorder %v2310, %v2152
        %vm2314 = vcmp.eq.s32.totalorder %v2310, %v2164
        %vm2315 = vcmp.eq.s32.totalorder %v2310, %v2176
        %vm2316 = vcmp.eq.s32.totalorder %v2310, %v2188
        %vm2317 = vcmp.eq.s32.totalorder %v2310, %v2200
        %vm2318 = vcmp.eq.s32.totalorder %v2310, %v2212
        %vm2319 = vcmp.eq.s32.totalorder %v2310, %v2224
        %vm2320 = vcmp.eq.s32.totalorder %v2310, %v2236
        %vm2321 = vcmp.eq.s32.totalorder %v2310, %v2248
        %vm2322 = vcmp.eq.s32.totalorder %v2310, %v2260
        %vm2323 = vcmp.eq.s32.totalorder %v2310, %v2272
        %vm2324 = vcmp.eq.s32.totalorder %v2310, %v2284
        %vm2325 = vcmp.eq.s32.totalorder %v2310, %v2296
        %vm2326 = vcmp.eq.s32.totalorder %v2310, %v2308
        %v2327 = vsel %vm2311, 1, 0
        %v2328 = vsel %vm2312, 1, 0
        %v2329 = vsel %vm2313, 1, 0
        %v2330 = vsel %vm2314, 1, 0
        %v2331 = vsel %vm2315, 1, 0
        %v2332 = vsel %vm2316, 1, 0
        %v2333 = vsel %vm2317, 1, 0
        %v2334 = vsel %vm2318, 1, 0
        %v2335 = vsel %vm2319, 1, 0
        %v2336 = vsel %vm2320, 1, 0
        %v2337 = vsel %vm2321, 1, 0
        %v2338 = vsel %vm2322, 1, 0
        %v2339 = vsel %vm2323, 1, 0
        %v2340 = vsel %vm2324, 1, 0
        %v2341 = vsel %vm2325, 1, 0
        %v2342 = vsel %vm2326, 1, 0
        %v2343 = vcvt.s32.f32 %v2327
        %v2344 = vcvt.s32.f32 %v2328
        %v2345 = vcvt.s32.f32 %v2329
        %v2346 = vcvt.s32.f32 %v2330
        %v2347 = vcvt.s32.f32 %v2331
        %v2348 = vcvt.s32.f32 %v2332
        %v2349 = vcvt.s32.f32 %v2333
        %v2350 = vcvt.s32.f32 %v2334
        %v2351 = vcvt.s32.f32 %v2335
        %v2352 = vcvt.s32.f32 %v2336
        %v2353 = vcvt.s32.f32 %v2337
        %v2354 = vcvt.s32.f32 %v2338
        %v2355 = vcvt.s32.f32 %v2339
        %v2356 = vcvt.s32.f32 %v2340
        %v2357 = vcvt.s32.f32 %v2341
        %v2358 = vcvt.s32.f32 %v2342
        %v2359 = vpack.c.bf16 %v2344, %v2343
        %v2360 = vpack.c.bf16 %v2346, %v2345
        %v2361 = vpack.c.bf16 %v2348, %v2347
        %v2362 = vpack.c.bf16 %v2350, %v2349
        %v2363 = vpack.c.bf16 %v2352, %v2351
        %v2364 = vpack.c.bf16 %v2354, %v2353
        %v2365 = vpack.c.bf16 %v2356, %v2355
        %v2366 = vpack.c.bf16 %v2358, %v2357
        %v2383 = vunpack.c.l.b16 %v435
        %v2384 = vunpack.c.l.b16 %v436
        %v2385 = vunpack.c.l.b16 %v437
        %v2386 = vunpack.c.l.b16 %v438
        %v2387 = vunpack.c.l.b16 %v439
        %v2388 = vunpack.c.l.b16 %v440
        %v2389 = vunpack.c.l.b16 %v441
        %v2390 = vunpack.c.l.b16 %v442
        %v2391 = vunpack.c.l.b16 %v443
        %v2392 = vunpack.c.l.b16 %v444
        %v2393 = vunpack.c.l.b16 %v445
        %v2394 = vunpack.c.l.b16 %v446
        %v2395 = vunpack.c.l.b16 %v447
        %v2396 = vunpack.c.l.b16 %v448
        %v2397 = vunpack.c.l.b16 %v449
        %v2398 = vunpack.c.l.b16 %v450
        %v2399 = vpack.c.b16 %v2384, %v2383
        %v2400 = vpack.c.b16 %v2386, %v2385
        %v2401 = vpack.c.b16 %v2388, %v2387
        %v2402 = vpack.c.b16 %v2390, %v2389
        %v2403 = vpack.c.b16 %v2392, %v2391
        %v2404 = vpack.c.b16 %v2394, %v2393
        %v2405 = vpack.c.b16 %v2396, %v2395
        %v2406 = vpack.c.b16 %v2398, %v2397
        %2415 = vmatprep.subr.bf16.mxu0 0
        %2416 = vmatpush1.bf16.msra.mxu0 %v2399
        %2417 = vmatprep.subr.bf16.mxu0 0
        %2418 = vmatpush1.bf16.msra.mxu0 %v2400
        %2419 = vmatprep.subr.bf16.mxu0 0
        %2420 = vmatpush1.bf16.msra.mxu0 %v2401
        %2421 = vmatprep.subr.bf16.mxu0 0
        %2422 = vmatpush1.bf16.msra.mxu0 %v2402
        %2423 = vmatprep.subr.bf16.mxu0 0
        %2424 = vmatpush1.bf16.msra.mxu0 %v2403
        %2425 = vmatprep.subr.bf16.mxu0 0
        %2426 = vmatpush1.bf16.msra.mxu0 %v2404
        %2427 = vmatprep.subr.bf16.mxu0 0
        %2428 = vmatpush1.bf16.msra.mxu0 %v2405
        %2429 = vmatprep.subr.bf16.mxu0 0
        %2430 = vmatpush1.bf16.msra.mxu0 %v2406
        %2431 = vmatprep.subr.bf16.mxu0 0
        %2432 = vmatpush1.bf16.msra.mxu0 0
        %2433 = vmatprep.subr.bf16.mxu0 0
        %2434 = vmatpush1.bf16.msra.mxu0 0
        %2435 = vmatprep.subr.bf16.mxu0 0
        %2436 = vmatpush1.bf16.msra.mxu0 0
        %2437 = vmatprep.subr.bf16.mxu0 0
        %2438 = vmatpush1.bf16.msra.mxu0 0
        %2439 = vmatprep.subr.bf16.mxu0 0
        %2440 = vmatpush1.bf16.msra.mxu0 0
        %2441 = vmatprep.subr.bf16.mxu0 0
        %2442 = vmatpush1.bf16.msra.mxu0 0
        %2443 = vmatprep.subr.bf16.mxu0 0
        %2444 = vmatpush1.bf16.msra.mxu0 0
        %2445 = vmatprep.subr.bf16.mxu0 0
        %2446 = vmatpush1.bf16.msra.mxu0 0
        %2447 = vmatprep.mubr.bf16.mxu0 0
        %2448 = vmatmul.mubr.bf16.gmra.mrb[0].mxu0 %v2359
        %v2449 = vpop.f32.mrb[0].mxu0
        %v2450 = vadd.f32 0.0, %v2449
        %v2451 = vpop.f32.mrb[0].mxu0
        %v2452 = vpop.f32.mrb[0].mxu0
        %v2453 = vadd.f32 0.0, %v2452
        %v2454 = vpop.f32.mrb[0].mxu0
        %2455 = vmatprep.mubr.bf16.mxu0 0
        %2456 = vmatmul.mubr.bf16.gmra.mrb[0].mxu0 %v2360
        %v2457 = vpop.f32.mrb[0].mxu0
        %v2458 = vadd.f32 0.0, %v2457
        %v2459 = vpop.f32.mrb[0].mxu0
        %v2460 = vpop.f32.mrb[0].mxu0
        %v2461 = vadd.f32 0.0, %v2460
        %v2462 = vpop.f32.mrb[0].mxu0
        %2463 = vmatprep.mubr.bf16.mxu0 0
        %2464 = vmatmul.mubr.bf16.gmra.mrb[0].mxu0 %v2361
        %v2465 = vpop.f32.mrb[0].mxu0
        %v2466 = vadd.f32 0.0, %v2465
        %v2467 = vpop.f32.mrb[0].mxu0
        %v2468 = vpop.f32.mrb[0].mxu0
        %v2469 = vadd.f32 0.0, %v2468
        %v2470 = vpop.f32.mrb[0].mxu0
        %2471 = vmatprep.mubr.bf16.mxu0 0
        %2472 = vmatmul.mubr.bf16.gmra.mrb[0].mxu0 %v2362
        %v2473 = vpop.f32.mrb[0].mxu0
        %v2474 = vadd.f32 0.0, %v2473
        %v2475 = vpop.f32.mrb[0].mxu0
        %v2476 = vpop.f32.mrb[0].mxu0
        %v2477 = vadd.f32 0.0, %v2476
        %v2478 = vpop.f32.mrb[0].mxu0
        %2479 = vmatprep.mubr.bf16.mxu0 0
        %2480 = vmatmul.mubr.bf16.gmra.mrb[0].mxu0 %v2363
        %v2481 = vpop.f32.mrb[0].mxu0
        %v2482 = vadd.f32 0.0, %v2481
        %v2483 = vpop.f32.mrb[0].mxu0
        %v2484 = vpop.f32.mrb[0].mxu0
        %v2485 = vadd.f32 0.0, %v2484
        %v2486 = vpop.f32.mrb[0].mxu0
        %2487 = vmatprep.mubr.bf16.mxu0 0
        %2488 = vmatmul.mubr.bf16.gmra.mrb[0].mxu0 %v2364
        %v2489 = vpop.f32.mrb[0].mxu0
        %v2490 = vadd.f32 0.0, %v2489
        %v2491 = vpop.f32.mrb[0].mxu0
        %v2492 = vpop.f32.mrb[0].mxu0
        %v2493 = vadd.f32 0.0, %v2492
        %v2494 = vpop.f32.mrb[0].mxu0
        %2495 = vmatprep.mubr.bf16.mxu0 0
        %2496 = vmatmul.mubr.bf16.gmra.mrb[0].mxu0 %v2365
        %v2497 = vpop.f32.mrb[0].mxu0
        %v2498 = vadd.f32 0.0, %v2497
        %v2499 = vpop.f32.mrb[0].mxu0
        %v2500 = vpop.f32.mrb[0].mxu0
        %v2501 = vadd.f32 0.0, %v2500
        %v2502 = vpop.f32.mrb[0].mxu0
        %2503 = vmatprep.mubr.bf16.mxu0 0
        %2504 = vmatmul.mubr.bf16.gmra.mrb[0].mxu0 %v2366
        %v2505 = vpop.f32.mrb[0].mxu0
        %v2506 = vadd.f32 0.0, %v2505
        %v2507 = vpop.f32.mrb[0].mxu0
        %v2508 = vpop.f32.mrb[0].mxu0
        %v2509 = vadd.f32 0.0, %v2508
        %v2510 = vpop.f32.mrb[0].mxu0
        %2511 = vdwg.mxu0
        %v2512 = vadd.f32 %v419, %v2450
        %v2513 = vadd.f32 %v420, %v2453
        %v2514 = vadd.f32 %v421, %v2458
        %v2515 = vadd.f32 %v422, %v2461
        %v2516 = vadd.f32 %v423, %v2466
        %v2517 = vadd.f32 %v424, %v2469
        %v2518 = vadd.f32 %v425, %v2474
        %v2519 = vadd.f32 %v426, %v2477
        %v2520 = vadd.f32 %v427, %v2482
        %v2521 = vadd.f32 %v428, %v2485
        %v2522 = vadd.f32 %v429, %v2490
        %v2523 = vadd.f32 %v430, %v2493
        %v2524 = vadd.f32 %v431, %v2498
        %v2525 = vadd.f32 %v432, %v2501
        %v2526 = vadd.f32 %v433, %v2506
        %v2527 = vadd.f32 %v434, %v2509
        %v2528 = vld [vmem:[%s5] sm:$0xff]
        %v2529 = vld [vmem:[%s4] sm:$0xf]
        %v2530 = vld [vmem:[%s4 + $0x4] sm:$0xf]
        %v2531 = vld [vmem:[%s4 + $0x8] sm:$0xf]
        %v2532 = vld [vmem:[%s4 + $0xc] sm:$0xf]
        %v2533 = vld [vmem:[%s4 + $0x10] sm:$0xf]
        %v2534 = vld [vmem:[%s4 + $0x14] sm:$0xf]
        %v2535 = vld [vmem:[%s4 + $0x18] sm:$0xf]
        %v2536 = vld [vmem:[%s4 + $0x1c] sm:$0xf]
        %v2537 = vld [vmem:[%s4 + $0x20] sm:$0xf]
        %v2538 = vld [vmem:[%s4 + $0x24] sm:$0xf]
        %v2539 = vld [vmem:[%s4 + $0x28] sm:$0xf]
        %v2540 = vld [vmem:[%s4 + $0x2c] sm:$0xf]
        %v2541 = vld [vmem:[%s4 + $0x30] sm:$0xf]
        %v2542 = vld [vmem:[%s4 + $0x34] sm:$0xf]
        %v2543 = vld [vmem:[%s4 + $0x38] sm:$0xf]
        %v2544 = vld [vmem:[%s4 + $0x3c] sm:$0xf]
        %v2545 = vld [vmem:[%s4 + $0x40] sm:$0xf]
        %v2546 = vld [vmem:[%s4 + $0x44] sm:$0xf]
        %v2547 = vld [vmem:[%s4 + $0x48] sm:$0xf]
        %v2548 = vld [vmem:[%s4 + $0x4c] sm:$0xf]
        %v2549 = vld [vmem:[%s4 + $0x50] sm:$0xf]
        %v2550 = vld [vmem:[%s4 + $0x54] sm:$0xf]
        %v2551 = vld [vmem:[%s4 + $0x58] sm:$0xf]
        %v2552 = vld [vmem:[%s4 + $0x5c] sm:$0xf]
        %v2553 = vrot.slane %v2512, 7
        %v2554 = vrot.slane %v2513, 7
        %v2555 = vrot.slane %v2514, 7
        %v2556 = vrot.slane %v2515, 7
        %v2557 = vrot.slane %v2516, 7
        %v2558 = vrot.slane %v2517, 7
        %v2559 = vrot.slane %v2518, 7
        %v2560 = vrot.slane %v2519, 7
        %v2561 = vrot.slane %v2520, 7
        %v2562 = vrot.slane %v2521, 7
        %v2563 = vrot.slane %v2522, 7
        %v2564 = vrot.slane %v2523, 7
        %v2565 = vrot.slane %v2524, 7
        %v2566 = vrot.slane %v2525, 7
        %v2567 = vrot.slane %v2526, 7
        %v2568 = vrot.slane %v2527, 7
        %v2569 = vsel %vm492, %v2567, %v2568
        %v2570 = vsel %vm492, %v2566, %v2567
        %v2571 = vsel %vm492, %v2565, %v2566
        %v2572 = vsel %vm492, %v2564, %v2565
        %v2573 = vsel %vm492, %v2563, %v2564
        %v2574 = vsel %vm492, %v2562, %v2563
        %v2575 = vsel %vm492, %v2561, %v2562
        %v2576 = vsel %vm492, %v2560, %v2561
        %v2577 = vsel %vm492, %v2559, %v2560
        %v2578 = vsel %vm492, %v2558, %v2559
        %v2579 = vsel %vm492, %v2557, %v2558
        %v2580 = vsel %vm492, %v2556, %v2557
        %v2581 = vsel %vm492, %v2555, %v2556
        %v2582 = vsel %vm492, %v2554, %v2555
        %v2583 = vsel %vm492, %v2553, %v2554
        %v2584 = vsel %vm492, %v2568, %v2553
        %v2585 = vsel %vm525, %v2584, 0.0
        %v2586 = vsel %vm526, %v2583, 0.0
        %v2587 = vsel %vm525, %v2582, 0.0
        %v2588 = vsel %vm526, %v2581, 0.0
        %v2589 = vsel %vm525, %v2580, 0.0
        %v2590 = vsel %vm526, %v2579, 0.0
        %v2591 = vsel %vm525, %v2578, 0.0
        %v2592 = vsel %vm526, %v2577, 0.0
        %v2593 = vsel %vm525, %v2576, 0.0
        %v2594 = vsel %vm526, %v2575, 0.0
        %v2595 = vsel %vm525, %v2574, 0.0
        %v2596 = vsel %vm526, %v2573, 0.0
        %v2597 = vsel %vm525, %v2572, 0.0
        %v2598 = vsel %vm526, %v2571, 0.0
        %v2599 = vsel %vm525, %v2570, 0.0
        %v2600 = vsel %vm526, %v2569, 0.0
        %v2601 = vrot.slane %v2512, 1
        %v2602 = vrot.slane %v2513, 1
        %v2603 = vrot.slane %v2514, 1
        %v2604 = vrot.slane %v2515, 1
        %v2605 = vrot.slane %v2516, 1
        %v2606 = vrot.slane %v2517, 1
        %v2607 = vrot.slane %v2518, 1
        %v2608 = vrot.slane %v2519, 1
        %v2609 = vrot.slane %v2520, 1
        %v2610 = vrot.slane %v2521, 1
        %v2611 = vrot.slane %v2522, 1
        %v2612 = vrot.slane %v2523, 1
        %v2613 = vrot.slane %v2524, 1
        %v2614 = vrot.slane %v2525, 1
        %v2615 = vrot.slane %v2526, 1
        %v2616 = vrot.slane %v2527, 1
        %v2617 = vsel %vm559, %v2615, %v2616
        %v2618 = vsel %vm559, %v2614, %v2615
        %v2619 = vsel %vm559, %v2613, %v2614
        %v2620 = vsel %vm559, %v2612, %v2613
        %v2621 = vsel %vm559, %v2611, %v2612
        %v2622 = vsel %vm559, %v2610, %v2611
        %v2623 = vsel %vm559, %v2609, %v2610
        %v2624 = vsel %vm559, %v2608, %v2609
        %v2625 = vsel %vm559, %v2607, %v2608
        %v2626 = vsel %vm559, %v2606, %v2607
        %v2627 = vsel %vm559, %v2605, %v2606
        %v2628 = vsel %vm559, %v2604, %v2605
        %v2629 = vsel %vm559, %v2603, %v2604
        %v2630 = vsel %vm559, %v2602, %v2603
        %v2631 = vsel %vm559, %v2601, %v2602
        %v2632 = vsel %vm559, %v2616, %v2601
        %v2633 = vsel %vm592, %v2631, 0.0
        %v2634 = vsel %vm593, %v2630, 0.0
        %v2635 = vsel %vm592, %v2629, 0.0
        %v2636 = vsel %vm593, %v2628, 0.0
        %v2637 = vsel %vm592, %v2627, 0.0
        %v2638 = vsel %vm593, %v2626, 0.0
        %v2639 = vsel %vm592, %v2625, 0.0
        %v2640 = vsel %vm593, %v2624, 0.0
        %v2641 = vsel %vm592, %v2623, 0.0
        %v2642 = vsel %vm593, %v2622, 0.0
        %v2643 = vsel %vm592, %v2621, 0.0
        %v2644 = vsel %vm593, %v2620, 0.0
        %v2645 = vsel %vm592, %v2619, 0.0
        %v2646 = vsel %vm593, %v2618, 0.0
        %v2647 = vsel %vm592, %v2617, 0.0
        %v2648 = vsel %vm593, %v2632, 0.0
        %2665 = vrot.lane.b32.xlu0 %v2512, 32
        %v2666 = vpop.permute.xlu0 %2665
        %2667 = vrot.lane.b32.xlu0 %v2513, 32
        %v2668 = vpop.permute.xlu0 %2667
        %2669 = vrot.lane.b32.xlu0 %v2514, 32
        %v2670 = vpop.permute.xlu0 %2669
        %2671 = vrot.lane.b32.xlu0 %v2515, 32
        %v2672 = vpop.permute.xlu0 %2671
        %2673 = vrot.lane.b32.xlu0 %v2516, 32
        %v2674 = vpop.permute.xlu0 %2673
        %2675 = vrot.lane.b32.xlu0 %v2517, 32
        %v2676 = vpop.permute.xlu0 %2675
        %2677 = vrot.lane.b32.xlu0 %v2518, 32
        %v2678 = vpop.permute.xlu0 %2677
        %2679 = vrot.lane.b32.xlu0 %v2519, 32
        %v2680 = vpop.permute.xlu0 %2679
        %2681 = vrot.lane.b32.xlu0 %v2520, 32
        %v2682 = vpop.permute.xlu0 %2681
        %2683 = vrot.lane.b32.xlu0 %v2521, 32
        %v2684 = vpop.permute.xlu0 %2683
        %2685 = vrot.lane.b32.xlu0 %v2522, 32
        %v2686 = vpop.permute.xlu0 %2685
        %2687 = vrot.lane.b32.xlu0 %v2523, 32
        %v2688 = vpop.permute.xlu0 %2687
        %2689 = vrot.lane.b32.xlu0 %v2524, 32
        %v2690 = vpop.permute.xlu0 %2689
        %2691 = vrot.lane.b32.xlu0 %v2525, 32
        %v2692 = vpop.permute.xlu0 %2691
        %2693 = vrot.lane.b32.xlu0 %v2526, 32
        %v2694 = vpop.permute.xlu0 %2693
        %2695 = vrot.lane.b32.xlu0 %v2527, 32
        %v2696 = vpop.permute.xlu0 %2695
        %2729 = vrot.lane.b32.xlu0 %v2633, 64
        %v2730 = vpop.permute.xlu0 %2729
        %2731 = vrot.lane.b32.xlu0 %v2634, 64
        %v2732 = vpop.permute.xlu0 %2731
        %2733 = vrot.lane.b32.xlu0 %v2635, 64
        %v2734 = vpop.permute.xlu0 %2733
        %2735 = vrot.lane.b32.xlu0 %v2636, 64
        %v2736 = vpop.permute.xlu0 %2735
        %2737 = vrot.lane.b32.xlu0 %v2637, 64
        %v2738 = vpop.permute.xlu0 %2737
        %2739 = vrot.lane.b32.xlu0 %v2638, 64
        %v2740 = vpop.permute.xlu0 %2739
        %2741 = vrot.lane.b32.xlu0 %v2639, 64
        %v2742 = vpop.permute.xlu0 %2741
        %2743 = vrot.lane.b32.xlu0 %v2640, 64
        %v2744 = vpop.permute.xlu0 %2743
        %2745 = vrot.lane.b32.xlu0 %v2641, 64
        %v2746 = vpop.permute.xlu0 %2745
        %2747 = vrot.lane.b32.xlu0 %v2642, 64
        %v2748 = vpop.permute.xlu0 %2747
        %2749 = vrot.lane.b32.xlu0 %v2643, 64
        %v2750 = vpop.permute.xlu0 %2749
        %2751 = vrot.lane.b32.xlu0 %v2644, 64
        %v2752 = vpop.permute.xlu0 %2751
        %2753 = vrot.lane.b32.xlu0 %v2645, 64
        %v2754 = vpop.permute.xlu0 %2753
        %2755 = vrot.lane.b32.xlu0 %v2646, 64
        %v2756 = vpop.permute.xlu0 %2755
        %2757 = vrot.lane.b32.xlu0 %v2647, 64
        %v2758 = vpop.permute.xlu0 %2757
        %2759 = vrot.lane.b32.xlu0 %v2648, 64
        %v2760 = vpop.permute.xlu0 %2759
        %v2777 = vsel %vm738, %v2585, %v2666
        %v2778 = vsel %vm738, %v2586, %v2668
        %v2779 = vsel %vm738, %v2587, %v2670
        %v2780 = vsel %vm738, %v2588, %v2672
        %v2781 = vsel %vm738, %v2589, %v2674
        %v2782 = vsel %vm738, %v2590, %v2676
        %v2783 = vsel %vm738, %v2591, %v2678
        %v2784 = vsel %vm738, %v2592, %v2680
        %v2785 = vsel %vm738, %v2593, %v2682
        %v2786 = vsel %vm738, %v2594, %v2684
        %v2787 = vsel %vm738, %v2595, %v2686
        %v2788 = vsel %vm738, %v2596, %v2688
        %v2789 = vsel %vm738, %v2597, %v2690
        %v2790 = vsel %vm738, %v2598, %v2692
        %v2791 = vsel %vm738, %v2599, %v2694
        %v2792 = vsel %vm738, %v2600, %v2696
        %v2793 = vsel %vm755, %v2777, %v2730
        %v2794 = vsel %vm755, %v2778, %v2732
        %v2795 = vsel %vm755, %v2779, %v2734
        %v2796 = vsel %vm755, %v2780, %v2736
        %v2797 = vsel %vm755, %v2781, %v2738
        %v2798 = vsel %vm755, %v2782, %v2740
        %v2799 = vsel %vm755, %v2783, %v2742
        %v2800 = vsel %vm755, %v2784, %v2744
        %v2801 = vsel %vm755, %v2785, %v2746
        %v2802 = vsel %vm755, %v2786, %v2748
        %v2803 = vsel %vm755, %v2787, %v2750
        %v2804 = vsel %vm755, %v2788, %v2752
        %v2805 = vsel %vm755, %v2789, %v2754
        %v2806 = vsel %vm755, %v2790, %v2756
        %v2807 = vsel %vm755, %v2791, %v2758
        %v2808 = vsel %vm755, %v2792, %v2760
        %v2809 = vpack.c.bf16 %v2794, %v2793
        %v2810 = vpack.c.bf16 %v2796, %v2795
        %v2811 = vpack.c.bf16 %v2798, %v2797
        %v2812 = vpack.c.bf16 %v2800, %v2799
        %v2813 = vpack.c.bf16 %v2802, %v2801
        %v2814 = vpack.c.bf16 %v2804, %v2803
        %v2815 = vpack.c.bf16 %v2806, %v2805
        %v2816 = vpack.c.bf16 %v2808, %v2807
        %v2817 = vlaneseq
        %v2818 = vshrl.u32 %v2817, 7
        %v2819 = vsub.s32 0, %v2818
        %v2820 = vrot.slane %v2528, %v2819
        %v2833 = vunpack.c.l.b16 %v2529
        %v2834 = vunpack.c.l.b16 %v2530
        %v2835 = vunpack.c.l.b16 %v2531
        %v2836 = vunpack.c.l.b16 %v2532
        %v2837 = vunpack.c.l.b16 %v2533
        %v2838 = vunpack.c.l.b16 %v2534
        %v2839 = vunpack.c.l.b16 %v2535
        %v2840 = vunpack.c.l.b16 %v2536
        %v2841 = vunpack.c.l.b16 %v2537
        %v2842 = vunpack.c.l.b16 %v2538
        %v2843 = vunpack.c.l.b16 %v2539
        %v2844 = vunpack.c.l.b16 %v2540
        %v2845 = vpack.c.b16 %v2834, %v2833
        %v2846 = vpack.c.b16 %v2836, %v2835
        %v2847 = vpack.c.b16 %v2838, %v2837
        %v2848 = vpack.c.b16 %v2840, %v2839
        %v2849 = vpack.c.b16 %v2842, %v2841
        %v2850 = vpack.c.b16 %v2844, %v2843
        %v2858 = vsel %vm820, %v2809, 0
        %v2861 = vsel %vm820, %v2810, 0
        %v2864 = vsel %vm820, %v2811, 0
        %v2867 = vsel %vm820, %v2812, 0
        %v2870 = vsel %vm820, %v2813, 0
        %v2873 = vsel %vm820, %v2814, 0
        %v2876 = vsel %vm820, %v2815, 0
        %v2879 = vsel %vm820, %v2816, 0
        %2881 = vmatprep.subr.bf16.mxu0 0
        %2882 = vmatpush1.bf16.msra.mxu0 %v2845
        %2883 = vmatprep.subr.bf16.mxu0 0
        %2884 = vmatpush1.bf16.msra.mxu0 %v2846
        %2885 = vmatprep.subr.bf16.mxu0 0
        %2886 = vmatpush1.bf16.msra.mxu0 %v2847
        %2887 = vmatprep.subr.bf16.mxu0 0
        %2888 = vmatpush1.bf16.msra.mxu0 %v2848
        %2889 = vmatprep.subr.bf16.mxu0 0
        %2890 = vmatpush1.bf16.msra.mxu0 %v2849
        %2891 = vmatprep.subr.bf16.mxu0 0
        %2892 = vmatpush1.bf16.msra.mxu0 %v2850
        %2893 = vmatprep.subr.bf16.mxu0 0
        %2894 = vmatpush1.bf16.msra.mxu0 0
        %2895 = vmatprep.subr.bf16.mxu0 0
        %2896 = vmatpush1.bf16.msra.mxu0 0
        %2897 = vmatprep.subr.bf16.mxu0 0
        %2898 = vmatpush1.bf16.msra.mxu0 0
        %2899 = vmatprep.subr.bf16.mxu0 0
        %2900 = vmatpush1.bf16.msra.mxu0 0
        %2901 = vmatprep.subr.bf16.mxu0 0
        %2902 = vmatpush1.bf16.msra.mxu0 0
        %2903 = vmatprep.subr.bf16.mxu0 0
        %2904 = vmatpush1.bf16.msra.mxu0 0
        %2905 = vmatprep.subr.bf16.mxu0 0
        %2906 = vmatpush1.bf16.msra.mxu0 0
        %2907 = vmatprep.subr.bf16.mxu0 0
        %2908 = vmatpush1.bf16.msra.mxu0 0
        %2909 = vmatprep.subr.bf16.mxu0 0
        %2910 = vmatpush1.bf16.msra.mxu0 0
        %2911 = vmatprep.subr.bf16.mxu0 0
        %2912 = vmatpush1.bf16.msra.mxu0 0
        %2913 = vmatprep.mubr.bf16.mxu0 0
        %2914 = vmatmul.mubr.bf16.gmra.mrb[0].mxu0 %v2858
        %v2915 = vpop.f32.mrb[0].mxu0
        %v2916 = vadd.f32 %v2820, %v2915
        %v2917 = vpop.f32.mrb[0].mxu0
        %v2918 = vpop.f32.mrb[0].mxu0
        %v2919 = vadd.f32 %v2820, %v2918
        %v2920 = vpop.f32.mrb[0].mxu0
        %2921 = vmatprep.mubr.bf16.mxu0 0
        %2922 = vmatmul.mubr.bf16.gmra.mrb[0].mxu0 %v2861
        %v2923 = vpop.f32.mrb[0].mxu0
        %v2924 = vadd.f32 %v2820, %v2923
        %v2925 = vpop.f32.mrb[0].mxu0
        %v2926 = vpop.f32.mrb[0].mxu0
        %v2927 = vadd.f32 %v2820, %v2926
        %v2928 = vpop.f32.mrb[0].mxu0
        %2929 = vmatprep.mubr.bf16.mxu0 0
        %2930 = vmatmul.mubr.bf16.gmra.mrb[0].mxu0 %v2864
        %v2931 = vpop.f32.mrb[0].mxu0
        %v2932 = vadd.f32 %v2820, %v2931
        %v2933 = vpop.f32.mrb[0].mxu0
        %v2934 = vpop.f32.mrb[0].mxu0
        %v2935 = vadd.f32 %v2820, %v2934
        %v2936 = vpop.f32.mrb[0].mxu0
        %2937 = vmatprep.mubr.bf16.mxu0 0
        %2938 = vmatmul.mubr.bf16.gmra.mrb[0].mxu0 %v2867
        %v2939 = vpop.f32.mrb[0].mxu0
        %v2940 = vadd.f32 %v2820, %v2939
        %v2941 = vpop.f32.mrb[0].mxu0
        %v2942 = vpop.f32.mrb[0].mxu0
        %v2943 = vadd.f32 %v2820, %v2942
        %v2944 = vpop.f32.mrb[0].mxu0
        %2945 = vmatprep.mubr.bf16.mxu0 0
        %2946 = vmatmul.mubr.bf16.gmra.mrb[0].mxu0 %v2870
        %v2947 = vpop.f32.mrb[0].mxu0
        %v2948 = vadd.f32 %v2820, %v2947
        %v2949 = vpop.f32.mrb[0].mxu0
        %v2950 = vpop.f32.mrb[0].mxu0
        %v2951 = vadd.f32 %v2820, %v2950
        %v2952 = vpop.f32.mrb[0].mxu0
        %2953 = vmatprep.mubr.bf16.mxu0 0
        %2954 = vmatmul.mubr.bf16.gmra.mrb[0].mxu0 %v2873
        %v2955 = vpop.f32.mrb[0].mxu0
        %v2956 = vadd.f32 %v2820, %v2955
        %v2957 = vpop.f32.mrb[0].mxu0
        %v2958 = vpop.f32.mrb[0].mxu0
        %v2959 = vadd.f32 %v2820, %v2958
        %v2960 = vpop.f32.mrb[0].mxu0
        %2961 = vmatprep.mubr.bf16.mxu0 0
        %2962 = vmatmul.mubr.bf16.gmra.mrb[0].mxu0 %v2876
        %v2963 = vpop.f32.mrb[0].mxu0
        %v2964 = vadd.f32 %v2820, %v2963
        %v2965 = vpop.f32.mrb[0].mxu0
        %v2966 = vpop.f32.mrb[0].mxu0
        %v2967 = vadd.f32 %v2820, %v2966
        %v2968 = vpop.f32.mrb[0].mxu0
        %2969 = vmatprep.mubr.bf16.mxu0 0
        %2970 = vmatmul.mubr.bf16.gmra.mrb[0].mxu0 %v2879
        %v2971 = vpop.f32.mrb[0].mxu0
        %v2972 = vadd.f32 %v2820, %v2971
        %v2973 = vpop.f32.mrb[0].mxu0
        %v2974 = vpop.f32.mrb[0].mxu0
        %v2975 = vadd.f32 %v2820, %v2974
        %v2976 = vpop.f32.mrb[0].mxu0
        %2977 = vdwg.mxu0
        %v2978 = vmax.f32 %v2916, 0.0
        %v2979 = vmax.f32 %v2919, 0.0
        %v2980 = vmax.f32 %v2924, 0.0
        %v2981 = vmax.f32 %v2927, 0.0
        %v2982 = vmax.f32 %v2932, 0.0
        %v2983 = vmax.f32 %v2935, 0.0
        %v2984 = vmax.f32 %v2940, 0.0
        %v2985 = vmax.f32 %v2943, 0.0
        %v2986 = vmax.f32 %v2948, 0.0
        %v2987 = vmax.f32 %v2951, 0.0
        %v2988 = vmax.f32 %v2956, 0.0
        %v2989 = vmax.f32 %v2959, 0.0
        %v2990 = vmax.f32 %v2964, 0.0
        %v2991 = vmax.f32 %v2967, 0.0
        %v2992 = vmax.f32 %v2972, 0.0
        %v2993 = vmax.f32 %v2975, 0.0
        %v2994 = vsel %vm738, %v2978, 0.0
        %2995 = vadd.xlane.f32.xlu0 %v2994
        %v2996 = vpop.xlane.xlu0 %2995
        %v2997 = vsel %vm738, %v2979, 0.0
        %2998 = vadd.xlane.f32.xlu0 %v2997
        %v2999 = vpop.xlane.xlu0 %2998
        %v3000 = vsel %vm738, %v2980, 0.0
        %3001 = vadd.xlane.f32.xlu0 %v3000
        %v3002 = vpop.xlane.xlu0 %3001
        %v3003 = vsel %vm738, %v2981, 0.0
        %3004 = vadd.xlane.f32.xlu0 %v3003
        %v3005 = vpop.xlane.xlu0 %3004
        %v3006 = vsel %vm738, %v2982, 0.0
        %3007 = vadd.xlane.f32.xlu0 %v3006
        %v3008 = vpop.xlane.xlu0 %3007
        %v3009 = vsel %vm738, %v2983, 0.0
        %3010 = vadd.xlane.f32.xlu0 %v3009
        %v3011 = vpop.xlane.xlu0 %3010
        %v3012 = vsel %vm738, %v2984, 0.0
        %3013 = vadd.xlane.f32.xlu0 %v3012
        %v3014 = vpop.xlane.xlu0 %3013
        %v3015 = vsel %vm738, %v2985, 0.0
        %3016 = vadd.xlane.f32.xlu0 %v3015
        %v3017 = vpop.xlane.xlu0 %3016
        %v3018 = vsel %vm738, %v2986, 0.0
        %3019 = vadd.xlane.f32.xlu0 %v3018
        %v3020 = vpop.xlane.xlu0 %3019
        %v3021 = vsel %vm738, %v2987, 0.0
        %3022 = vadd.xlane.f32.xlu0 %v3021
        %v3023 = vpop.xlane.xlu0 %3022
        %v3024 = vsel %vm738, %v2988, 0.0
        %3025 = vadd.xlane.f32.xlu0 %v3024
        %v3026 = vpop.xlane.xlu0 %3025
        %v3027 = vsel %vm738, %v2989, 0.0
        %3028 = vadd.xlane.f32.xlu0 %v3027
        %v3029 = vpop.xlane.xlu0 %3028
        %v3030 = vsel %vm738, %v2990, 0.0
        %3031 = vadd.xlane.f32.xlu0 %v3030
        %v3032 = vpop.xlane.xlu0 %3031
        %v3033 = vsel %vm738, %v2991, 0.0
        %3034 = vadd.xlane.f32.xlu0 %v3033
        %v3035 = vpop.xlane.xlu0 %3034
        %v3036 = vsel %vm738, %v2992, 0.0
        %3037 = vadd.xlane.f32.xlu0 %v3036
        %v3038 = vpop.xlane.xlu0 %3037
        %v3039 = vsel %vm738, %v2993, 0.0
        %3040 = vadd.xlane.f32.xlu0 %v3039
        %v3041 = vpop.xlane.xlu0 %3040
        %v3042 = vmul.f32 %v2996, %v1006
        %v3043 = vmul.f32 %v2999, %v1006
        %v3044 = vmul.f32 %v3002, %v1006
        %v3045 = vmul.f32 %v3005, %v1006
        %v3046 = vmul.f32 %v3008, %v1006
        %v3047 = vmul.f32 %v3011, %v1006
        %v3048 = vmul.f32 %v3014, %v1006
        %v3049 = vmul.f32 %v3017, %v1006
        %v3050 = vmul.f32 %v3020, %v1006
        %v3051 = vmul.f32 %v3023, %v1006
        %v3052 = vmul.f32 %v3026, %v1006
        %v3053 = vmul.f32 %v3029, %v1006
        %v3054 = vmul.f32 %v3032, %v1006
        %v3055 = vmul.f32 %v3035, %v1006
        %v3056 = vmul.f32 %v3038, %v1006
        %v3057 = vmul.f32 %v3041, %v1006
        %v3058 = vsub.f32 %v2978, %v3042
        %v3059 = vsub.f32 %v2979, %v3043
        %v3060 = vsub.f32 %v2980, %v3044
        %v3061 = vsub.f32 %v2981, %v3045
        %v3062 = vsub.f32 %v2982, %v3046
        %v3063 = vsub.f32 %v2983, %v3047
        %v3064 = vsub.f32 %v2984, %v3048
        %v3065 = vsub.f32 %v2985, %v3049
        %v3066 = vsub.f32 %v2986, %v3050
        %v3067 = vsub.f32 %v2987, %v3051
        %v3068 = vsub.f32 %v2988, %v3052
        %v3069 = vsub.f32 %v2989, %v3053
        %v3070 = vsub.f32 %v2990, %v3054
        %v3071 = vsub.f32 %v2991, %v3055
        %v3072 = vsub.f32 %v2992, %v3056
        %v3073 = vsub.f32 %v2993, %v3057
        %v3074 = vmul.f32 %v3058, %v3058
        %v3075 = vmul.f32 %v3059, %v3059
        %v3076 = vmul.f32 %v3060, %v3060
        %v3077 = vmul.f32 %v3061, %v3061
        %v3078 = vmul.f32 %v3062, %v3062
        %v3079 = vmul.f32 %v3063, %v3063
        %v3080 = vmul.f32 %v3064, %v3064
        %v3081 = vmul.f32 %v3065, %v3065
        %v3082 = vmul.f32 %v3066, %v3066
        %v3083 = vmul.f32 %v3067, %v3067
        %v3084 = vmul.f32 %v3068, %v3068
        %v3085 = vmul.f32 %v3069, %v3069
        %v3086 = vmul.f32 %v3070, %v3070
        %v3087 = vmul.f32 %v3071, %v3071
        %v3088 = vmul.f32 %v3072, %v3072
        %v3089 = vmul.f32 %v3073, %v3073
        %v3090 = vsel %vm738, %v3074, 0.0
        %3091 = vadd.xlane.f32.xlu0 %v3090
        %v3092 = vpop.xlane.xlu0 %3091
        %v3093 = vsel %vm738, %v3075, 0.0
        %3094 = vadd.xlane.f32.xlu0 %v3093
        %v3095 = vpop.xlane.xlu0 %3094
        %v3096 = vsel %vm738, %v3076, 0.0
        %3097 = vadd.xlane.f32.xlu0 %v3096
        %v3098 = vpop.xlane.xlu0 %3097
        %v3099 = vsel %vm738, %v3077, 0.0
        %3100 = vadd.xlane.f32.xlu0 %v3099
        %v3101 = vpop.xlane.xlu0 %3100
        %v3102 = vsel %vm738, %v3078, 0.0
        %3103 = vadd.xlane.f32.xlu0 %v3102
        %v3104 = vpop.xlane.xlu0 %3103
        %v3105 = vsel %vm738, %v3079, 0.0
        %3106 = vadd.xlane.f32.xlu0 %v3105
        %v3107 = vpop.xlane.xlu0 %3106
        %v3108 = vsel %vm738, %v3080, 0.0
        %3109 = vadd.xlane.f32.xlu0 %v3108
        %v3110 = vpop.xlane.xlu0 %3109
        %v3111 = vsel %vm738, %v3081, 0.0
        %3112 = vadd.xlane.f32.xlu0 %v3111
        %v3113 = vpop.xlane.xlu0 %3112
        %v3114 = vsel %vm738, %v3082, 0.0
        %3115 = vadd.xlane.f32.xlu0 %v3114
        %v3116 = vpop.xlane.xlu0 %3115
        %v3117 = vsel %vm738, %v3083, 0.0
        %3118 = vadd.xlane.f32.xlu0 %v3117
        %v3119 = vpop.xlane.xlu0 %3118
        %v3120 = vsel %vm738, %v3084, 0.0
        %3121 = vadd.xlane.f32.xlu0 %v3120
        %v3122 = vpop.xlane.xlu0 %3121
        %v3123 = vsel %vm738, %v3085, 0.0
        %3124 = vadd.xlane.f32.xlu0 %v3123
        %v3125 = vpop.xlane.xlu0 %3124
        %v3126 = vsel %vm738, %v3086, 0.0
        %3127 = vadd.xlane.f32.xlu0 %v3126
        %v3128 = vpop.xlane.xlu0 %3127
        %v3129 = vsel %vm738, %v3087, 0.0
        %3130 = vadd.xlane.f32.xlu0 %v3129
        %v3131 = vpop.xlane.xlu0 %3130
        %v3132 = vsel %vm738, %v3088, 0.0
        %3133 = vadd.xlane.f32.xlu0 %v3132
        %v3134 = vpop.xlane.xlu0 %3133
        %v3135 = vsel %vm738, %v3089, 0.0
        %3136 = vadd.xlane.f32.xlu0 %v3135
        %v3137 = vpop.xlane.xlu0 %3136
        %v3138 = vmul.f32 %v3092, %v1006
        %v3139 = vmul.f32 %v3095, %v1006
        %v3140 = vmul.f32 %v3098, %v1006
        %v3141 = vmul.f32 %v3101, %v1006
        %v3142 = vmul.f32 %v3104, %v1006
        %v3143 = vmul.f32 %v3107, %v1006
        %v3144 = vmul.f32 %v3110, %v1006
        %v3145 = vmul.f32 %v3113, %v1006
        %v3146 = vmul.f32 %v3116, %v1006
        %v3147 = vmul.f32 %v3119, %v1006
        %v3148 = vmul.f32 %v3122, %v1006
        %v3149 = vmul.f32 %v3125, %v1006
        %v3150 = vmul.f32 %v3128, %v1006
        %v3151 = vmul.f32 %v3131, %v1006
        %v3152 = vmul.f32 %v3134, %v1006
        %v3153 = vmul.f32 %v3137, %v1006
        %v3154 = vadd.f32 %v3138, 1e-05
        %v3155 = vadd.f32 %v3139, 1e-05
        %v3156 = vadd.f32 %v3140, 1e-05
        %v3157 = vadd.f32 %v3141, 1e-05
        %v3158 = vadd.f32 %v3142, 1e-05
        %v3159 = vadd.f32 %v3143, 1e-05
        %v3160 = vadd.f32 %v3144, 1e-05
        %v3161 = vadd.f32 %v3145, 1e-05
        %v3162 = vadd.f32 %v3146, 1e-05
        %v3163 = vadd.f32 %v3147, 1e-05
        %v3164 = vadd.f32 %v3148, 1e-05
        %v3165 = vadd.f32 %v3149, 1e-05
        %v3166 = vadd.f32 %v3150, 1e-05
        %v3167 = vadd.f32 %v3151, 1e-05
        %v3168 = vadd.f32 %v3152, 1e-05
        %v3169 = vadd.f32 %v3153, 1e-05
        %v3170 = vrsqrt.pop %v3154
        %v3171 = vrsqrt.pop %v3155
        %v3172 = vrsqrt.pop %v3156
        %v3173 = vrsqrt.pop %v3157
        %v3174 = vrsqrt.pop %v3158
        %v3175 = vrsqrt.pop %v3159
        %v3176 = vrsqrt.pop %v3160
        %v3177 = vrsqrt.pop %v3161
        %v3178 = vrsqrt.pop %v3162
        %v3179 = vrsqrt.pop %v3163
        %v3180 = vrsqrt.pop %v3164
        %v3181 = vrsqrt.pop %v3165
        %v3182 = vrsqrt.pop %v3166
        %v3183 = vrsqrt.pop %v3167
        %v3184 = vrsqrt.pop %v3168
        %v3185 = vrsqrt.pop %v3169
        %v3186 = vmul.f32 %v3058, %v3170
        %v3187 = vmul.f32 %v3059, %v3171
        %v3188 = vmul.f32 %v3060, %v3172
        %v3189 = vmul.f32 %v3061, %v3173
        %v3190 = vmul.f32 %v3062, %v3174
        %v3191 = vmul.f32 %v3063, %v3175
        %v3192 = vmul.f32 %v3064, %v3176
        %v3193 = vmul.f32 %v3065, %v3177
        %v3194 = vmul.f32 %v3066, %v3178
        %v3195 = vmul.f32 %v3067, %v3179
        %v3196 = vmul.f32 %v3068, %v3180
        %v3197 = vmul.f32 %v3069, %v3181
        %v3198 = vmul.f32 %v3070, %v3182
        %v3199 = vmul.f32 %v3071, %v3183
        %v3200 = vmul.f32 %v3072, %v3184
        %v3201 = vmul.f32 %v3073, %v3185
        %v3202 = vlaneseq
        %v3203 = vshrl.u32 %v3202, 7
        %v3204 = vsub.s32 1, %v3203
        %v3205 = vrot.slane %v2528, %v3204
        %v3206 = vmul.f32 %v3186, %v3205
        %v3207 = vmul.f32 %v3187, %v3205
        %v3208 = vmul.f32 %v3188, %v3205
        %v3209 = vmul.f32 %v3189, %v3205
        %v3210 = vmul.f32 %v3190, %v3205
        %v3211 = vmul.f32 %v3191, %v3205
        %v3212 = vmul.f32 %v3192, %v3205
        %v3213 = vmul.f32 %v3193, %v3205
        %v3214 = vmul.f32 %v3194, %v3205
        %v3215 = vmul.f32 %v3195, %v3205
        %v3216 = vmul.f32 %v3196, %v3205
        %v3217 = vmul.f32 %v3197, %v3205
        %v3218 = vmul.f32 %v3198, %v3205
        %v3219 = vmul.f32 %v3199, %v3205
        %v3220 = vmul.f32 %v3200, %v3205
        %v3221 = vmul.f32 %v3201, %v3205
        %v3222 = vlaneseq
        %v3223 = vshrl.u32 %v3222, 7
        %v3224 = vsub.s32 2, %v3223
        %v3225 = vrot.slane %v2528, %v3224
        %v3226 = vadd.f32 %v3206, %v3225
        %v3227 = vadd.f32 %v3207, %v3225
        %v3228 = vadd.f32 %v3208, %v3225
        %v3229 = vadd.f32 %v3209, %v3225
        %v3230 = vadd.f32 %v3210, %v3225
        %v3231 = vadd.f32 %v3211, %v3225
        %v3232 = vadd.f32 %v3212, %v3225
        %v3233 = vadd.f32 %v3213, %v3225
        %v3234 = vadd.f32 %v3214, %v3225
        %v3235 = vadd.f32 %v3215, %v3225
        %v3236 = vadd.f32 %v3216, %v3225
        %v3237 = vadd.f32 %v3217, %v3225
        %v3238 = vadd.f32 %v3218, %v3225
        %v3239 = vadd.f32 %v3219, %v3225
        %v3240 = vadd.f32 %v3220, %v3225
        %v3241 = vadd.f32 %v3221, %v3225
        %v3242 = vrot.slane %v3226, 7
        %v3243 = vrot.slane %v3227, 7
        %v3244 = vrot.slane %v3228, 7
        %v3245 = vrot.slane %v3229, 7
        %v3246 = vrot.slane %v3230, 7
        %v3247 = vrot.slane %v3231, 7
        %v3248 = vrot.slane %v3232, 7
        %v3249 = vrot.slane %v3233, 7
        %v3250 = vrot.slane %v3234, 7
        %v3251 = vrot.slane %v3235, 7
        %v3252 = vrot.slane %v3236, 7
        %v3253 = vrot.slane %v3237, 7
        %v3254 = vrot.slane %v3238, 7
        %v3255 = vrot.slane %v3239, 7
        %v3256 = vrot.slane %v3240, 7
        %v3257 = vrot.slane %v3241, 7
        %v3258 = vsel %vm492, %v3256, %v3257
        %v3259 = vsel %vm492, %v3255, %v3256
        %v3260 = vsel %vm492, %v3254, %v3255
        %v3261 = vsel %vm492, %v3253, %v3254
        %v3262 = vsel %vm492, %v3252, %v3253
        %v3263 = vsel %vm492, %v3251, %v3252
        %v3264 = vsel %vm492, %v3250, %v3251
        %v3265 = vsel %vm492, %v3249, %v3250
        %v3266 = vsel %vm492, %v3248, %v3249
        %v3267 = vsel %vm492, %v3247, %v3248
        %v3268 = vsel %vm492, %v3246, %v3247
        %v3269 = vsel %vm492, %v3245, %v3246
        %v3270 = vsel %vm492, %v3244, %v3245
        %v3271 = vsel %vm492, %v3243, %v3244
        %v3272 = vsel %vm492, %v3242, %v3243
        %v3273 = vsel %vm492, %v3257, %v3242
        %v3274 = vsel %vm525, %v3273, 0.0
        %v3275 = vsel %vm526, %v3272, 0.0
        %v3276 = vsel %vm525, %v3271, 0.0
        %v3277 = vsel %vm526, %v3270, 0.0
        %v3278 = vsel %vm525, %v3269, 0.0
        %v3279 = vsel %vm526, %v3268, 0.0
        %v3280 = vsel %vm525, %v3267, 0.0
        %v3281 = vsel %vm526, %v3266, 0.0
        %v3282 = vsel %vm525, %v3265, 0.0
        %v3283 = vsel %vm526, %v3264, 0.0
        %v3284 = vsel %vm525, %v3263, 0.0
        %v3285 = vsel %vm526, %v3262, 0.0
        %v3286 = vsel %vm525, %v3261, 0.0
        %v3287 = vsel %vm526, %v3260, 0.0
        %v3288 = vsel %vm525, %v3259, 0.0
        %v3289 = vsel %vm526, %v3258, 0.0
        %v3290 = vrot.slane %v3226, 1
        %v3291 = vrot.slane %v3227, 1
        %v3292 = vrot.slane %v3228, 1
        %v3293 = vrot.slane %v3229, 1
        %v3294 = vrot.slane %v3230, 1
        %v3295 = vrot.slane %v3231, 1
        %v3296 = vrot.slane %v3232, 1
        %v3297 = vrot.slane %v3233, 1
        %v3298 = vrot.slane %v3234, 1
        %v3299 = vrot.slane %v3235, 1
        %v3300 = vrot.slane %v3236, 1
        %v3301 = vrot.slane %v3237, 1
        %v3302 = vrot.slane %v3238, 1
        %v3303 = vrot.slane %v3239, 1
        %v3304 = vrot.slane %v3240, 1
        %v3305 = vrot.slane %v3241, 1
        %v3306 = vsel %vm559, %v3304, %v3305
        %v3307 = vsel %vm559, %v3303, %v3304
        %v3308 = vsel %vm559, %v3302, %v3303
        %v3309 = vsel %vm559, %v3301, %v3302
        %v3310 = vsel %vm559, %v3300, %v3301
        %v3311 = vsel %vm559, %v3299, %v3300
        %v3312 = vsel %vm559, %v3298, %v3299
        %v3313 = vsel %vm559, %v3297, %v3298
        %v3314 = vsel %vm559, %v3296, %v3297
        %v3315 = vsel %vm559, %v3295, %v3296
        %v3316 = vsel %vm559, %v3294, %v3295
        %v3317 = vsel %vm559, %v3293, %v3294
        %v3318 = vsel %vm559, %v3292, %v3293
        %v3319 = vsel %vm559, %v3291, %v3292
        %v3320 = vsel %vm559, %v3290, %v3291
        %v3321 = vsel %vm559, %v3305, %v3290
        %v3322 = vsel %vm592, %v3320, 0.0
        %v3323 = vsel %vm593, %v3319, 0.0
        %v3324 = vsel %vm592, %v3318, 0.0
        %v3325 = vsel %vm593, %v3317, 0.0
        %v3326 = vsel %vm592, %v3316, 0.0
        %v3327 = vsel %vm593, %v3315, 0.0
        %v3328 = vsel %vm592, %v3314, 0.0
        %v3329 = vsel %vm593, %v3313, 0.0
        %v3330 = vsel %vm592, %v3312, 0.0
        %v3331 = vsel %vm593, %v3311, 0.0
        %v3332 = vsel %vm592, %v3310, 0.0
        %v3333 = vsel %vm593, %v3309, 0.0
        %v3334 = vsel %vm592, %v3308, 0.0
        %v3335 = vsel %vm593, %v3307, 0.0
        %v3336 = vsel %vm592, %v3306, 0.0
        %v3337 = vsel %vm593, %v3321, 0.0
        %3354 = vrot.lane.b32.xlu0 %v3226, 32
        %v3355 = vpop.permute.xlu0 %3354
        %3356 = vrot.lane.b32.xlu0 %v3227, 32
        %v3357 = vpop.permute.xlu0 %3356
        %3358 = vrot.lane.b32.xlu0 %v3228, 32
        %v3359 = vpop.permute.xlu0 %3358
        %3360 = vrot.lane.b32.xlu0 %v3229, 32
        %v3361 = vpop.permute.xlu0 %3360
        %3362 = vrot.lane.b32.xlu0 %v3230, 32
        %v3363 = vpop.permute.xlu0 %3362
        %3364 = vrot.lane.b32.xlu0 %v3231, 32
        %v3365 = vpop.permute.xlu0 %3364
        %3366 = vrot.lane.b32.xlu0 %v3232, 32
        %v3367 = vpop.permute.xlu0 %3366
        %3368 = vrot.lane.b32.xlu0 %v3233, 32
        %v3369 = vpop.permute.xlu0 %3368
        %3370 = vrot.lane.b32.xlu0 %v3234, 32
        %v3371 = vpop.permute.xlu0 %3370
        %3372 = vrot.lane.b32.xlu0 %v3235, 32
        %v3373 = vpop.permute.xlu0 %3372
        %3374 = vrot.lane.b32.xlu0 %v3236, 32
        %v3375 = vpop.permute.xlu0 %3374
        %3376 = vrot.lane.b32.xlu0 %v3237, 32
        %v3377 = vpop.permute.xlu0 %3376
        %3378 = vrot.lane.b32.xlu0 %v3238, 32
        %v3379 = vpop.permute.xlu0 %3378
        %3380 = vrot.lane.b32.xlu0 %v3239, 32
        %v3381 = vpop.permute.xlu0 %3380
        %3382 = vrot.lane.b32.xlu0 %v3240, 32
        %v3383 = vpop.permute.xlu0 %3382
        %3384 = vrot.lane.b32.xlu0 %v3241, 32
        %v3385 = vpop.permute.xlu0 %3384
        %3418 = vrot.lane.b32.xlu0 %v3322, 64
        %v3419 = vpop.permute.xlu0 %3418
        %3420 = vrot.lane.b32.xlu0 %v3323, 64
        %v3421 = vpop.permute.xlu0 %3420
        %3422 = vrot.lane.b32.xlu0 %v3324, 64
        %v3423 = vpop.permute.xlu0 %3422
        %3424 = vrot.lane.b32.xlu0 %v3325, 64
        %v3425 = vpop.permute.xlu0 %3424
        %3426 = vrot.lane.b32.xlu0 %v3326, 64
        %v3427 = vpop.permute.xlu0 %3426
        %3428 = vrot.lane.b32.xlu0 %v3327, 64
        %v3429 = vpop.permute.xlu0 %3428
        %3430 = vrot.lane.b32.xlu0 %v3328, 64
        %v3431 = vpop.permute.xlu0 %3430
        %3432 = vrot.lane.b32.xlu0 %v3329, 64
        %v3433 = vpop.permute.xlu0 %3432
        %3434 = vrot.lane.b32.xlu0 %v3330, 64
        %v3435 = vpop.permute.xlu0 %3434
        %3436 = vrot.lane.b32.xlu0 %v3331, 64
        %v3437 = vpop.permute.xlu0 %3436
        %3438 = vrot.lane.b32.xlu0 %v3332, 64
        %v3439 = vpop.permute.xlu0 %3438
        %3440 = vrot.lane.b32.xlu0 %v3333, 64
        %v3441 = vpop.permute.xlu0 %3440
        %3442 = vrot.lane.b32.xlu0 %v3334, 64
        %v3443 = vpop.permute.xlu0 %3442
        %3444 = vrot.lane.b32.xlu0 %v3335, 64
        %v3445 = vpop.permute.xlu0 %3444
        %3446 = vrot.lane.b32.xlu0 %v3336, 64
        %v3447 = vpop.permute.xlu0 %3446
        %3448 = vrot.lane.b32.xlu0 %v3337, 64
        %v3449 = vpop.permute.xlu0 %3448
        %v3466 = vsel %vm738, %v3274, %v3355
        %v3467 = vsel %vm738, %v3275, %v3357
        %v3468 = vsel %vm738, %v3276, %v3359
        %v3469 = vsel %vm738, %v3277, %v3361
        %v3470 = vsel %vm738, %v3278, %v3363
        %v3471 = vsel %vm738, %v3279, %v3365
        %v3472 = vsel %vm738, %v3280, %v3367
        %v3473 = vsel %vm738, %v3281, %v3369
        %v3474 = vsel %vm738, %v3282, %v3371
        %v3475 = vsel %vm738, %v3283, %v3373
        %v3476 = vsel %vm738, %v3284, %v3375
        %v3477 = vsel %vm738, %v3285, %v3377
        %v3478 = vsel %vm738, %v3286, %v3379
        %v3479 = vsel %vm738, %v3287, %v3381
        %v3480 = vsel %vm738, %v3288, %v3383
        %v3481 = vsel %vm738, %v3289, %v3385
        %v3482 = vsel %vm755, %v3466, %v3419
        %v3483 = vsel %vm755, %v3467, %v3421
        %v3484 = vsel %vm755, %v3468, %v3423
        %v3485 = vsel %vm755, %v3469, %v3425
        %v3486 = vsel %vm755, %v3470, %v3427
        %v3487 = vsel %vm755, %v3471, %v3429
        %v3488 = vsel %vm755, %v3472, %v3431
        %v3489 = vsel %vm755, %v3473, %v3433
        %v3490 = vsel %vm755, %v3474, %v3435
        %v3491 = vsel %vm755, %v3475, %v3437
        %v3492 = vsel %vm755, %v3476, %v3439
        %v3493 = vsel %vm755, %v3477, %v3441
        %v3494 = vsel %vm755, %v3478, %v3443
        %v3495 = vsel %vm755, %v3479, %v3445
        %v3496 = vsel %vm755, %v3480, %v3447
        %v3497 = vsel %vm755, %v3481, %v3449
        %v3498 = vpack.c.bf16 %v3483, %v3482
        %v3499 = vpack.c.bf16 %v3485, %v3484
        %v3500 = vpack.c.bf16 %v3487, %v3486
        %v3501 = vpack.c.bf16 %v3489, %v3488
        %v3502 = vpack.c.bf16 %v3491, %v3490
        %v3503 = vpack.c.bf16 %v3493, %v3492
        %v3504 = vpack.c.bf16 %v3495, %v3494
        %v3505 = vpack.c.bf16 %v3497, %v3496
        %v3506 = vlaneseq
        %v3507 = vshrl.u32 %v3506, 7
        %v3508 = vsub.s32 3, %v3507
        %v3509 = vrot.slane %v2528, %v3508
        %v3522 = vunpack.c.l.b16 %v2541
        %v3523 = vunpack.c.l.b16 %v2542
        %v3524 = vunpack.c.l.b16 %v2543
        %v3525 = vunpack.c.l.b16 %v2544
        %v3526 = vunpack.c.l.b16 %v2545
        %v3527 = vunpack.c.l.b16 %v2546
        %v3528 = vunpack.c.l.b16 %v2547
        %v3529 = vunpack.c.l.b16 %v2548
        %v3530 = vunpack.c.l.b16 %v2549
        %v3531 = vunpack.c.l.b16 %v2550
        %v3532 = vunpack.c.l.b16 %v2551
        %v3533 = vunpack.c.l.b16 %v2552
        %v3534 = vpack.c.b16 %v3523, %v3522
        %v3535 = vpack.c.b16 %v3525, %v3524
        %v3536 = vpack.c.b16 %v3527, %v3526
        %v3537 = vpack.c.b16 %v3529, %v3528
        %v3538 = vpack.c.b16 %v3531, %v3530
        %v3539 = vpack.c.b16 %v3533, %v3532
        %v3547 = vsel %vm820, %v3498, 0
        %v3550 = vsel %vm820, %v3499, 0
        %v3553 = vsel %vm820, %v3500, 0
        %v3556 = vsel %vm820, %v3501, 0
        %v3559 = vsel %vm820, %v3502, 0
        %v3562 = vsel %vm820, %v3503, 0
        %v3565 = vsel %vm820, %v3504, 0
        %v3568 = vsel %vm820, %v3505, 0
        %3570 = vmatprep.subr.bf16.mxu0 0
        %3571 = vmatpush1.bf16.msra.mxu0 %v3534
        %3572 = vmatprep.subr.bf16.mxu0 0
        %3573 = vmatpush1.bf16.msra.mxu0 %v3535
        %3574 = vmatprep.subr.bf16.mxu0 0
        %3575 = vmatpush1.bf16.msra.mxu0 %v3536
        %3576 = vmatprep.subr.bf16.mxu0 0
        %3577 = vmatpush1.bf16.msra.mxu0 %v3537
        %3578 = vmatprep.subr.bf16.mxu0 0
        %3579 = vmatpush1.bf16.msra.mxu0 %v3538
        %3580 = vmatprep.subr.bf16.mxu0 0
        %3581 = vmatpush1.bf16.msra.mxu0 %v3539
        %3582 = vmatprep.subr.bf16.mxu0 0
        %3583 = vmatpush1.bf16.msra.mxu0 0
        %3584 = vmatprep.subr.bf16.mxu0 0
        %3585 = vmatpush1.bf16.msra.mxu0 0
        %3586 = vmatprep.subr.bf16.mxu0 0
        %3587 = vmatpush1.bf16.msra.mxu0 0
        %3588 = vmatprep.subr.bf16.mxu0 0
        %3589 = vmatpush1.bf16.msra.mxu0 0
        %3590 = vmatprep.subr.bf16.mxu0 0
        %3591 = vmatpush1.bf16.msra.mxu0 0
        %3592 = vmatprep.subr.bf16.mxu0 0
        %3593 = vmatpush1.bf16.msra.mxu0 0
        %3594 = vmatprep.subr.bf16.mxu0 0
        %3595 = vmatpush1.bf16.msra.mxu0 0
        %3596 = vmatprep.subr.bf16.mxu0 0
        %3597 = vmatpush1.bf16.msra.mxu0 0
        %3598 = vmatprep.subr.bf16.mxu0 0
        %3599 = vmatpush1.bf16.msra.mxu0 0
        %3600 = vmatprep.subr.bf16.mxu0 0
        %3601 = vmatpush1.bf16.msra.mxu0 0
        %3602 = vmatprep.mubr.bf16.mxu0 0
        %3603 = vmatmul.mubr.bf16.gmra.mrb[0].mxu0 %v3547
        %v3604 = vpop.f32.mrb[0].mxu0
        %v3605 = vadd.f32 %v3509, %v3604
        %v3606 = vpop.f32.mrb[0].mxu0
        %v3607 = vpop.f32.mrb[0].mxu0
        %v3608 = vadd.f32 %v3509, %v3607
        %v3609 = vpop.f32.mrb[0].mxu0
        %3610 = vmatprep.mubr.bf16.mxu0 0
        %3611 = vmatmul.mubr.bf16.gmra.mrb[0].mxu0 %v3550
        %v3612 = vpop.f32.mrb[0].mxu0
        %v3613 = vadd.f32 %v3509, %v3612
        %v3614 = vpop.f32.mrb[0].mxu0
        %v3615 = vpop.f32.mrb[0].mxu0
        %v3616 = vadd.f32 %v3509, %v3615
        %v3617 = vpop.f32.mrb[0].mxu0
        %3618 = vmatprep.mubr.bf16.mxu0 0
        %3619 = vmatmul.mubr.bf16.gmra.mrb[0].mxu0 %v3553
        %v3620 = vpop.f32.mrb[0].mxu0
        %v3621 = vadd.f32 %v3509, %v3620
        %v3622 = vpop.f32.mrb[0].mxu0
        %v3623 = vpop.f32.mrb[0].mxu0
        %v3624 = vadd.f32 %v3509, %v3623
        %v3625 = vpop.f32.mrb[0].mxu0
        %3626 = vmatprep.mubr.bf16.mxu0 0
        %3627 = vmatmul.mubr.bf16.gmra.mrb[0].mxu0 %v3556
        %v3628 = vpop.f32.mrb[0].mxu0
        %v3629 = vadd.f32 %v3509, %v3628
        %v3630 = vpop.f32.mrb[0].mxu0
        %v3631 = vpop.f32.mrb[0].mxu0
        %v3632 = vadd.f32 %v3509, %v3631
        %v3633 = vpop.f32.mrb[0].mxu0
        %3634 = vmatprep.mubr.bf16.mxu0 0
        %3635 = vmatmul.mubr.bf16.gmra.mrb[0].mxu0 %v3559
        %v3636 = vpop.f32.mrb[0].mxu0
        %v3637 = vadd.f32 %v3509, %v3636
        %v3638 = vpop.f32.mrb[0].mxu0
        %v3639 = vpop.f32.mrb[0].mxu0
        %v3640 = vadd.f32 %v3509, %v3639
        %v3641 = vpop.f32.mrb[0].mxu0
        %3642 = vmatprep.mubr.bf16.mxu0 0
        %3643 = vmatmul.mubr.bf16.gmra.mrb[0].mxu0 %v3562
        %v3644 = vpop.f32.mrb[0].mxu0
        %v3645 = vadd.f32 %v3509, %v3644
        %v3646 = vpop.f32.mrb[0].mxu0
        %v3647 = vpop.f32.mrb[0].mxu0
        %v3648 = vadd.f32 %v3509, %v3647
        %v3649 = vpop.f32.mrb[0].mxu0
        %3650 = vmatprep.mubr.bf16.mxu0 0
        %3651 = vmatmul.mubr.bf16.gmra.mrb[0].mxu0 %v3565
        %v3652 = vpop.f32.mrb[0].mxu0
        %v3653 = vadd.f32 %v3509, %v3652
        %v3654 = vpop.f32.mrb[0].mxu0
        %v3655 = vpop.f32.mrb[0].mxu0
        %v3656 = vadd.f32 %v3509, %v3655
        %v3657 = vpop.f32.mrb[0].mxu0
        %3658 = vmatprep.mubr.bf16.mxu0 0
        %3659 = vmatmul.mubr.bf16.gmra.mrb[0].mxu0 %v3568
        %v3660 = vpop.f32.mrb[0].mxu0
        %v3661 = vadd.f32 %v3509, %v3660
        %v3662 = vpop.f32.mrb[0].mxu0
        %v3663 = vpop.f32.mrb[0].mxu0
        %v3664 = vadd.f32 %v3509, %v3663
        %v3665 = vpop.f32.mrb[0].mxu0
        %3666 = vdwg.mxu0
        %v3667 = vmax.f32 %v3605, 0.0
        %v3668 = vmax.f32 %v3608, 0.0
        %v3669 = vmax.f32 %v3613, 0.0
        %v3670 = vmax.f32 %v3616, 0.0
        %v3671 = vmax.f32 %v3621, 0.0
        %v3672 = vmax.f32 %v3624, 0.0
        %v3673 = vmax.f32 %v3629, 0.0
        %v3674 = vmax.f32 %v3632, 0.0
        %v3675 = vmax.f32 %v3637, 0.0
        %v3676 = vmax.f32 %v3640, 0.0
        %v3677 = vmax.f32 %v3645, 0.0
        %v3678 = vmax.f32 %v3648, 0.0
        %v3679 = vmax.f32 %v3653, 0.0
        %v3680 = vmax.f32 %v3656, 0.0
        %v3681 = vmax.f32 %v3661, 0.0
        %v3682 = vmax.f32 %v3664, 0.0
        %v3683 = vsel %vm738, %v3667, 0.0
        %3684 = vadd.xlane.f32.xlu0 %v3683
        %v3685 = vpop.xlane.xlu0 %3684
        %v3686 = vsel %vm738, %v3668, 0.0
        %3687 = vadd.xlane.f32.xlu0 %v3686
        %v3688 = vpop.xlane.xlu0 %3687
        %v3689 = vsel %vm738, %v3669, 0.0
        %3690 = vadd.xlane.f32.xlu0 %v3689
        %v3691 = vpop.xlane.xlu0 %3690
        %v3692 = vsel %vm738, %v3670, 0.0
        %3693 = vadd.xlane.f32.xlu0 %v3692
        %v3694 = vpop.xlane.xlu0 %3693
        %v3695 = vsel %vm738, %v3671, 0.0
        %3696 = vadd.xlane.f32.xlu0 %v3695
        %v3697 = vpop.xlane.xlu0 %3696
        %v3698 = vsel %vm738, %v3672, 0.0
        %3699 = vadd.xlane.f32.xlu0 %v3698
        %v3700 = vpop.xlane.xlu0 %3699
        %v3701 = vsel %vm738, %v3673, 0.0
        %3702 = vadd.xlane.f32.xlu0 %v3701
        %v3703 = vpop.xlane.xlu0 %3702
        %v3704 = vsel %vm738, %v3674, 0.0
        %3705 = vadd.xlane.f32.xlu0 %v3704
        %v3706 = vpop.xlane.xlu0 %3705
        %v3707 = vsel %vm738, %v3675, 0.0
        %3708 = vadd.xlane.f32.xlu0 %v3707
        %v3709 = vpop.xlane.xlu0 %3708
        %v3710 = vsel %vm738, %v3676, 0.0
        %3711 = vadd.xlane.f32.xlu0 %v3710
        %v3712 = vpop.xlane.xlu0 %3711
        %v3713 = vsel %vm738, %v3677, 0.0
        %3714 = vadd.xlane.f32.xlu0 %v3713
        %v3715 = vpop.xlane.xlu0 %3714
        %v3716 = vsel %vm738, %v3678, 0.0
        %3717 = vadd.xlane.f32.xlu0 %v3716
        %v3718 = vpop.xlane.xlu0 %3717
        %v3719 = vsel %vm738, %v3679, 0.0
        %3720 = vadd.xlane.f32.xlu0 %v3719
        %v3721 = vpop.xlane.xlu0 %3720
        %v3722 = vsel %vm738, %v3680, 0.0
        %3723 = vadd.xlane.f32.xlu0 %v3722
        %v3724 = vpop.xlane.xlu0 %3723
        %v3725 = vsel %vm738, %v3681, 0.0
        %3726 = vadd.xlane.f32.xlu0 %v3725
        %v3727 = vpop.xlane.xlu0 %3726
        %v3728 = vsel %vm738, %v3682, 0.0
        %3729 = vadd.xlane.f32.xlu0 %v3728
        %v3730 = vpop.xlane.xlu0 %3729
        %v3731 = vmul.f32 %v3685, %v1006
        %v3732 = vmul.f32 %v3688, %v1006
        %v3733 = vmul.f32 %v3691, %v1006
        %v3734 = vmul.f32 %v3694, %v1006
        %v3735 = vmul.f32 %v3697, %v1006
        %v3736 = vmul.f32 %v3700, %v1006
        %v3737 = vmul.f32 %v3703, %v1006
        %v3738 = vmul.f32 %v3706, %v1006
        %v3739 = vmul.f32 %v3709, %v1006
        %v3740 = vmul.f32 %v3712, %v1006
        %v3741 = vmul.f32 %v3715, %v1006
        %v3742 = vmul.f32 %v3718, %v1006
        %v3743 = vmul.f32 %v3721, %v1006
        %v3744 = vmul.f32 %v3724, %v1006
        %v3745 = vmul.f32 %v3727, %v1006
        %v3746 = vmul.f32 %v3730, %v1006
        %v3747 = vsub.f32 %v3667, %v3731
        %v3748 = vsub.f32 %v3668, %v3732
        %v3749 = vsub.f32 %v3669, %v3733
        %v3750 = vsub.f32 %v3670, %v3734
        %v3751 = vsub.f32 %v3671, %v3735
        %v3752 = vsub.f32 %v3672, %v3736
        %v3753 = vsub.f32 %v3673, %v3737
        %v3754 = vsub.f32 %v3674, %v3738
        %v3755 = vsub.f32 %v3675, %v3739
        %v3756 = vsub.f32 %v3676, %v3740
        %v3757 = vsub.f32 %v3677, %v3741
        %v3758 = vsub.f32 %v3678, %v3742
        %v3759 = vsub.f32 %v3679, %v3743
        %v3760 = vsub.f32 %v3680, %v3744
        %v3761 = vsub.f32 %v3681, %v3745
        %v3762 = vsub.f32 %v3682, %v3746
        %v3763 = vmul.f32 %v3747, %v3747
        %v3764 = vmul.f32 %v3748, %v3748
        %v3765 = vmul.f32 %v3749, %v3749
        %v3766 = vmul.f32 %v3750, %v3750
        %v3767 = vmul.f32 %v3751, %v3751
        %v3768 = vmul.f32 %v3752, %v3752
        %v3769 = vmul.f32 %v3753, %v3753
        %v3770 = vmul.f32 %v3754, %v3754
        %v3771 = vmul.f32 %v3755, %v3755
        %v3772 = vmul.f32 %v3756, %v3756
        %v3773 = vmul.f32 %v3757, %v3757
        %v3774 = vmul.f32 %v3758, %v3758
        %v3775 = vmul.f32 %v3759, %v3759
        %v3776 = vmul.f32 %v3760, %v3760
        %v3777 = vmul.f32 %v3761, %v3761
        %v3778 = vmul.f32 %v3762, %v3762
        %v3779 = vsel %vm738, %v3763, 0.0
        %3780 = vadd.xlane.f32.xlu0 %v3779
        %v3781 = vpop.xlane.xlu0 %3780
        %v3782 = vsel %vm738, %v3764, 0.0
        %3783 = vadd.xlane.f32.xlu0 %v3782
        %v3784 = vpop.xlane.xlu0 %3783
        %v3785 = vsel %vm738, %v3765, 0.0
        %3786 = vadd.xlane.f32.xlu0 %v3785
        %v3787 = vpop.xlane.xlu0 %3786
        %v3788 = vsel %vm738, %v3766, 0.0
        %3789 = vadd.xlane.f32.xlu0 %v3788
        %v3790 = vpop.xlane.xlu0 %3789
        %v3791 = vsel %vm738, %v3767, 0.0
        %3792 = vadd.xlane.f32.xlu0 %v3791
        %v3793 = vpop.xlane.xlu0 %3792
        %v3794 = vsel %vm738, %v3768, 0.0
        %3795 = vadd.xlane.f32.xlu0 %v3794
        %v3796 = vpop.xlane.xlu0 %3795
        %v3797 = vsel %vm738, %v3769, 0.0
        %3798 = vadd.xlane.f32.xlu0 %v3797
        %v3799 = vpop.xlane.xlu0 %3798
        %v3800 = vsel %vm738, %v3770, 0.0
        %3801 = vadd.xlane.f32.xlu0 %v3800
        %v3802 = vpop.xlane.xlu0 %3801
        %v3803 = vsel %vm738, %v3771, 0.0
        %3804 = vadd.xlane.f32.xlu0 %v3803
        %v3805 = vpop.xlane.xlu0 %3804
        %v3806 = vsel %vm738, %v3772, 0.0
        %3807 = vadd.xlane.f32.xlu0 %v3806
        %v3808 = vpop.xlane.xlu0 %3807
        %v3809 = vsel %vm738, %v3773, 0.0
        %3810 = vadd.xlane.f32.xlu0 %v3809
        %v3811 = vpop.xlane.xlu0 %3810
        %v3812 = vsel %vm738, %v3774, 0.0
        %3813 = vadd.xlane.f32.xlu0 %v3812
        %v3814 = vpop.xlane.xlu0 %3813
        %v3815 = vsel %vm738, %v3775, 0.0
        %3816 = vadd.xlane.f32.xlu0 %v3815
        %v3817 = vpop.xlane.xlu0 %3816
        %v3818 = vsel %vm738, %v3776, 0.0
        %3819 = vadd.xlane.f32.xlu0 %v3818
        %v3820 = vpop.xlane.xlu0 %3819
        %v3821 = vsel %vm738, %v3777, 0.0
        %3822 = vadd.xlane.f32.xlu0 %v3821
        %v3823 = vpop.xlane.xlu0 %3822
        %v3824 = vsel %vm738, %v3778, 0.0
        %3825 = vadd.xlane.f32.xlu0 %v3824
        %v3826 = vpop.xlane.xlu0 %3825
        %v3827 = vmul.f32 %v3781, %v1006
        %v3828 = vmul.f32 %v3784, %v1006
        %v3829 = vmul.f32 %v3787, %v1006
        %v3830 = vmul.f32 %v3790, %v1006
        %v3831 = vmul.f32 %v3793, %v1006
        %v3832 = vmul.f32 %v3796, %v1006
        %v3833 = vmul.f32 %v3799, %v1006
        %v3834 = vmul.f32 %v3802, %v1006
        %v3835 = vmul.f32 %v3805, %v1006
        %v3836 = vmul.f32 %v3808, %v1006
        %v3837 = vmul.f32 %v3811, %v1006
        %v3838 = vmul.f32 %v3814, %v1006
        %v3839 = vmul.f32 %v3817, %v1006
        %v3840 = vmul.f32 %v3820, %v1006
        %v3841 = vmul.f32 %v3823, %v1006
        %v3842 = vmul.f32 %v3826, %v1006
        %v3843 = vadd.f32 %v3827, 1e-05
        %v3844 = vadd.f32 %v3828, 1e-05
        %v3845 = vadd.f32 %v3829, 1e-05
        %v3846 = vadd.f32 %v3830, 1e-05
        %v3847 = vadd.f32 %v3831, 1e-05
        %v3848 = vadd.f32 %v3832, 1e-05
        %v3849 = vadd.f32 %v3833, 1e-05
        %v3850 = vadd.f32 %v3834, 1e-05
        %v3851 = vadd.f32 %v3835, 1e-05
        %v3852 = vadd.f32 %v3836, 1e-05
        %v3853 = vadd.f32 %v3837, 1e-05
        %v3854 = vadd.f32 %v3838, 1e-05
        %v3855 = vadd.f32 %v3839, 1e-05
        %v3856 = vadd.f32 %v3840, 1e-05
        %v3857 = vadd.f32 %v3841, 1e-05
        %v3858 = vadd.f32 %v3842, 1e-05
        %v3859 = vrsqrt.pop %v3843
        %v3860 = vrsqrt.pop %v3844
        %v3861 = vrsqrt.pop %v3845
        %v3862 = vrsqrt.pop %v3846
        %v3863 = vrsqrt.pop %v3847
        %v3864 = vrsqrt.pop %v3848
        %v3865 = vrsqrt.pop %v3849
        %v3866 = vrsqrt.pop %v3850
        %v3867 = vrsqrt.pop %v3851
        %v3868 = vrsqrt.pop %v3852
        %v3869 = vrsqrt.pop %v3853
        %v3870 = vrsqrt.pop %v3854
        %v3871 = vrsqrt.pop %v3855
        %v3872 = vrsqrt.pop %v3856
        %v3873 = vrsqrt.pop %v3857
        %v3874 = vrsqrt.pop %v3858
        %v3875 = vmul.f32 %v3747, %v3859
        %v3876 = vmul.f32 %v3748, %v3860
        %v3877 = vmul.f32 %v3749, %v3861
        %v3878 = vmul.f32 %v3750, %v3862
        %v3879 = vmul.f32 %v3751, %v3863
        %v3880 = vmul.f32 %v3752, %v3864
        %v3881 = vmul.f32 %v3753, %v3865
        %v3882 = vmul.f32 %v3754, %v3866
        %v3883 = vmul.f32 %v3755, %v3867
        %v3884 = vmul.f32 %v3756, %v3868
        %v3885 = vmul.f32 %v3757, %v3869
        %v3886 = vmul.f32 %v3758, %v3870
        %v3887 = vmul.f32 %v3759, %v3871
        %v3888 = vmul.f32 %v3760, %v3872
        %v3889 = vmul.f32 %v3761, %v3873
        %v3890 = vmul.f32 %v3762, %v3874
        %v3891 = vlaneseq
        %v3892 = vshrl.u32 %v3891, 7
        %v3893 = vsub.s32 4, %v3892
        %v3894 = vrot.slane %v2528, %v3893
        %v3895 = vmul.f32 %v3875, %v3894
        %v3896 = vmul.f32 %v3876, %v3894
        %v3897 = vmul.f32 %v3877, %v3894
        %v3898 = vmul.f32 %v3878, %v3894
        %v3899 = vmul.f32 %v3879, %v3894
        %v3900 = vmul.f32 %v3880, %v3894
        %v3901 = vmul.f32 %v3881, %v3894
        %v3902 = vmul.f32 %v3882, %v3894
        %v3903 = vmul.f32 %v3883, %v3894
        %v3904 = vmul.f32 %v3884, %v3894
        %v3905 = vmul.f32 %v3885, %v3894
        %v3906 = vmul.f32 %v3886, %v3894
        %v3907 = vmul.f32 %v3887, %v3894
        %v3908 = vmul.f32 %v3888, %v3894
        %v3909 = vmul.f32 %v3889, %v3894
        %v3910 = vmul.f32 %v3890, %v3894
        %v3911 = vlaneseq
        %v3912 = vshrl.u32 %v3911, 7
        %v3913 = vsub.s32 5, %v3912
        %v3914 = vrot.slane %v2528, %v3913
        %v3915 = vadd.f32 %v3895, %v3914
        %v3916 = vadd.f32 %v3896, %v3914
        %v3917 = vadd.f32 %v3897, %v3914
        %v3918 = vadd.f32 %v3898, %v3914
        %v3919 = vadd.f32 %v3899, %v3914
        %v3920 = vadd.f32 %v3900, %v3914
        %v3921 = vadd.f32 %v3901, %v3914
        %v3922 = vadd.f32 %v3902, %v3914
        %v3923 = vadd.f32 %v3903, %v3914
        %v3924 = vadd.f32 %v3904, %v3914
        %v3925 = vadd.f32 %v3905, %v3914
        %v3926 = vadd.f32 %v3906, %v3914
        %v3927 = vadd.f32 %v3907, %v3914
        %v3928 = vadd.f32 %v3908, %v3914
        %v3929 = vadd.f32 %v3909, %v3914
        %v3930 = vadd.f32 %v3910, %v3914
        %v3931 = vlaneseq
        %v3932 = vshrl.u32 %v3931, 7
        %v3933 = vsub.s32 6, %v3932
        %v3934 = vrot.slane %v2528, %v3933
        %v3935 = vmul.f32 %v3915, %v3934
        %v3936 = vmul.f32 %v3916, %v3934
        %v3937 = vmul.f32 %v3917, %v3934
        %v3938 = vmul.f32 %v3918, %v3934
        %v3939 = vmul.f32 %v3919, %v3934
        %v3940 = vmul.f32 %v3920, %v3934
        %v3941 = vmul.f32 %v3921, %v3934
        %v3942 = vmul.f32 %v3922, %v3934
        %v3943 = vmul.f32 %v3923, %v3934
        %v3944 = vmul.f32 %v3924, %v3934
        %v3945 = vmul.f32 %v3925, %v3934
        %v3946 = vmul.f32 %v3926, %v3934
        %v3947 = vmul.f32 %v3927, %v3934
        %v3948 = vmul.f32 %v3928, %v3934
        %v3949 = vmul.f32 %v3929, %v3934
        %v3950 = vmul.f32 %v3930, %v3934
        %v3951 = vsel %vm738, %v3935, 0.0
        %3952 = vadd.xlane.f32.xlu0 %v3951
        %v3953 = vpop.xlane.xlu0 %3952
        %v3954 = vsel %vm738, %v3936, 0.0
        %3955 = vadd.xlane.f32.xlu0 %v3954
        %v3956 = vpop.xlane.xlu0 %3955
        %v3957 = vsel %vm738, %v3937, 0.0
        %3958 = vadd.xlane.f32.xlu0 %v3957
        %v3959 = vpop.xlane.xlu0 %3958
        %v3960 = vsel %vm738, %v3938, 0.0
        %3961 = vadd.xlane.f32.xlu0 %v3960
        %v3962 = vpop.xlane.xlu0 %3961
        %v3963 = vsel %vm738, %v3939, 0.0
        %3964 = vadd.xlane.f32.xlu0 %v3963
        %v3965 = vpop.xlane.xlu0 %3964
        %v3966 = vsel %vm738, %v3940, 0.0
        %3967 = vadd.xlane.f32.xlu0 %v3966
        %v3968 = vpop.xlane.xlu0 %3967
        %v3969 = vsel %vm738, %v3941, 0.0
        %3970 = vadd.xlane.f32.xlu0 %v3969
        %v3971 = vpop.xlane.xlu0 %3970
        %v3972 = vsel %vm738, %v3942, 0.0
        %3973 = vadd.xlane.f32.xlu0 %v3972
        %v3974 = vpop.xlane.xlu0 %3973
        %v3975 = vsel %vm738, %v3943, 0.0
        %3976 = vadd.xlane.f32.xlu0 %v3975
        %v3977 = vpop.xlane.xlu0 %3976
        %v3978 = vsel %vm738, %v3944, 0.0
        %3979 = vadd.xlane.f32.xlu0 %v3978
        %v3980 = vpop.xlane.xlu0 %3979
        %v3981 = vsel %vm738, %v3945, 0.0
        %3982 = vadd.xlane.f32.xlu0 %v3981
        %v3983 = vpop.xlane.xlu0 %3982
        %v3984 = vsel %vm738, %v3946, 0.0
        %3985 = vadd.xlane.f32.xlu0 %v3984
        %v3986 = vpop.xlane.xlu0 %3985
        %v3987 = vsel %vm738, %v3947, 0.0
        %3988 = vadd.xlane.f32.xlu0 %v3987
        %v3989 = vpop.xlane.xlu0 %3988
        %v3990 = vsel %vm738, %v3948, 0.0
        %3991 = vadd.xlane.f32.xlu0 %v3990
        %v3992 = vpop.xlane.xlu0 %3991
        %v3993 = vsel %vm738, %v3949, 0.0
        %3994 = vadd.xlane.f32.xlu0 %v3993
        %v3995 = vpop.xlane.xlu0 %3994
        %v3996 = vsel %vm738, %v3950, 0.0
        %3997 = vadd.xlane.f32.xlu0 %v3996
        %v3998 = vpop.xlane.xlu0 %3997
        %v3999 = vlaneseq
        %v4000 = vshrl.u32 %v3999, 7
        %v4001 = vsub.s32 7, %v4000
        %v4002 = vrot.slane %v2528, %v4001
        %v4003 = vadd.f32 %v3953, %v4002
        %v4004 = vadd.f32 %v3956, %v4002
        %v4005 = vadd.f32 %v3959, %v4002
        %v4006 = vadd.f32 %v3962, %v4002
        %v4007 = vadd.f32 %v3965, %v4002
        %v4008 = vadd.f32 %v3968, %v4002
        %v4009 = vadd.f32 %v3971, %v4002
        %v4010 = vadd.f32 %v3974, %v4002
        %v4011 = vadd.f32 %v3977, %v4002
        %v4012 = vadd.f32 %v3980, %v4002
        %v4013 = vadd.f32 %v3983, %v4002
        %v4014 = vadd.f32 %v3986, %v4002
        %v4015 = vadd.f32 %v3989, %v4002
        %v4016 = vadd.f32 %v3992, %v4002
        %v4017 = vadd.f32 %v3995, %v4002
        %v4018 = vadd.f32 %v3998, %v4002
        %v4019 = vsel %vm403, %v4003, 0.0
        %v4020 = vsel %vm404, %v4004, 0.0
        %v4021 = vsel %vm405, %v4005, 0.0
        %v4022 = vsel %vm406, %v4006, 0.0
        %v4023 = vsel %vm407, %v4007, 0.0
        %v4024 = vsel %vm408, %v4008, 0.0
        %v4025 = vsel %vm409, %v4009, 0.0
        %v4026 = vsel %vm410, %v4010, 0.0
        %v4027 = vsel %vm411, %v4011, 0.0
        %v4028 = vsel %vm412, %v4012, 0.0
        %v4029 = vsel %vm413, %v4013, 0.0
        %v4030 = vsel %vm414, %v4014, 0.0
        %v4031 = vsel %vm415, %v4015, 0.0
        %v4032 = vsel %vm416, %v4016, 0.0
        %v4033 = vsel %vm417, %v4017, 0.0
        %v4034 = vsel %vm418, %v4018, 0.0
        %v4035 = vld [vmem:[%s6 + $0x1] sm:$0x1]
        %v4036 = vlaneseq
        %v4037 = vshrl.u32 %v4036, 7
        %v4038 = vsub.s32 0, %v4037
        %v4039 = vrot.slane %v4035, %v4038
        %4041 = vset.pattern.permute.xlu0 0
        %4042 = vperm.xlu0 %4041, %v4019
        %v4043 = vpop.permute.xlu0 %4042
        %4046 = vset.pattern.permute.xlu0 0
        %4047 = vperm.xlu0 %4046, %v4020
        %v4048 = vpop.permute.xlu0 %4047
        %4051 = vset.pattern.permute.xlu0 0
        %4052 = vperm.xlu0 %4051, %v4021
        %v4053 = vpop.permute.xlu0 %4052
        %4056 = vset.pattern.permute.xlu0 0
        %4057 = vperm.xlu0 %4056, %v4022
        %v4058 = vpop.permute.xlu0 %4057
        %4061 = vset.pattern.permute.xlu0 0
        %4062 = vperm.xlu0 %4061, %v4023
        %v4063 = vpop.permute.xlu0 %4062
        %4066 = vset.pattern.permute.xlu0 0
        %4067 = vperm.xlu0 %4066, %v4024
        %v4068 = vpop.permute.xlu0 %4067
        %4071 = vset.pattern.permute.xlu0 0
        %4072 = vperm.xlu0 %4071, %v4025
        %v4073 = vpop.permute.xlu0 %4072
        %4076 = vset.pattern.permute.xlu0 0
        %4077 = vperm.xlu0 %4076, %v4026
        %v4078 = vpop.permute.xlu0 %4077
        %4081 = vset.pattern.permute.xlu0 0
        %4082 = vperm.xlu0 %4081, %v4027
        %v4083 = vpop.permute.xlu0 %4082
        %4086 = vset.pattern.permute.xlu0 0
        %4087 = vperm.xlu0 %4086, %v4028
        %v4088 = vpop.permute.xlu0 %4087
        %4091 = vset.pattern.permute.xlu0 0
        %4092 = vperm.xlu0 %4091, %v4029
        %v4093 = vpop.permute.xlu0 %4092
        %4096 = vset.pattern.permute.xlu0 0
        %4097 = vperm.xlu0 %4096, %v4030
        %v4098 = vpop.permute.xlu0 %4097
        %4101 = vset.pattern.permute.xlu0 0
        %4102 = vperm.xlu0 %4101, %v4031
        %v4103 = vpop.permute.xlu0 %4102
        %4106 = vset.pattern.permute.xlu0 0
        %4107 = vperm.xlu0 %4106, %v4032
        %v4108 = vpop.permute.xlu0 %4107
        %4111 = vset.pattern.permute.xlu0 0
        %4112 = vperm.xlu0 %4111, %v4033
        %v4113 = vpop.permute.xlu0 %4112
        %4116 = vset.pattern.permute.xlu0 0
        %4117 = vperm.xlu0 %4116, %v4034
        %v4118 = vpop.permute.xlu0 %4117
        %vm4120 = vcmp.lt.f32.partialorder %v4039, %v4043
        %vm4121 = vcmp.lt.f32.partialorder %v4039, %v4048
        %vm4122 = vcmp.lt.f32.partialorder %v4039, %v4053
        %vm4123 = vcmp.lt.f32.partialorder %v4039, %v4058
        %vm4124 = vcmp.lt.f32.partialorder %v4039, %v4063
        %vm4125 = vcmp.lt.f32.partialorder %v4039, %v4068
        %vm4126 = vcmp.lt.f32.partialorder %v4039, %v4073
        %vm4127 = vcmp.lt.f32.partialorder %v4039, %v4078
        %vm4128 = vcmp.lt.f32.partialorder %v4039, %v4083
        %vm4129 = vcmp.lt.f32.partialorder %v4039, %v4088
        %vm4130 = vcmp.lt.f32.partialorder %v4039, %v4093
        %vm4131 = vcmp.lt.f32.partialorder %v4039, %v4098
        %vm4132 = vcmp.lt.f32.partialorder %v4039, %v4103
        %vm4133 = vcmp.lt.f32.partialorder %v4039, %v4108
        %vm4134 = vcmp.lt.f32.partialorder %v4039, %v4113
        %vm4135 = vcmp.lt.f32.partialorder %v4039, %v4118
        %v4136 = vsel %vm4120, 1, 0
        %v4137 = vsel %vm4121, 1, 0
        %v4138 = vsel %vm4122, 1, 0
        %v4139 = vsel %vm4123, 1, 0
        %v4140 = vsel %vm4124, 1, 0
        %v4141 = vsel %vm4125, 1, 0
        %v4142 = vsel %vm4126, 1, 0
        %v4143 = vsel %vm4127, 1, 0
        %v4144 = vsel %vm4128, 1, 0
        %v4145 = vsel %vm4129, 1, 0
        %v4146 = vsel %vm4130, 1, 0
        %v4147 = vsel %vm4131, 1, 0
        %v4148 = vsel %vm4132, 1, 0
        %v4149 = vsel %vm4133, 1, 0
        %v4150 = vsel %vm4134, 1, 0
        %v4151 = vsel %vm4135, 1, 0
        %v4152 = vand.u32 %v4136, 65535
        %v4153 = vshrl.u32 %v4136, 16
        %v4154 = vcvt.s32.f32 %v4152
        %v4155 = vcvt.s32.f32 %v4153
        %4156 = vadd.xlane.f32.xlu0 %v4154
        %v4157 = vpop.xlane.xlu0 %4156
        %4158 = vadd.xlane.f32.xlu0 %v4155
        %v4159 = vpop.xlane.xlu0 %4158
        %v4160 = vcvt.f32.s32 %v4157
        %v4161 = vcvt.f32.s32 %v4159
        %v4162 = vshll.u32 %v4161, 16
        %v4163 = vadd.s32 %v4162, %v4160
        %v4164 = vand.u32 %v4137, 65535
        %v4165 = vshrl.u32 %v4137, 16
        %v4166 = vcvt.s32.f32 %v4164
        %v4167 = vcvt.s32.f32 %v4165
        %4168 = vadd.xlane.f32.xlu0 %v4166
        %v4169 = vpop.xlane.xlu0 %4168
        %4170 = vadd.xlane.f32.xlu0 %v4167
        %v4171 = vpop.xlane.xlu0 %4170
        %v4172 = vcvt.f32.s32 %v4169
        %v4173 = vcvt.f32.s32 %v4171
        %v4174 = vshll.u32 %v4173, 16
        %v4175 = vadd.s32 %v4174, %v4172
        %v4176 = vand.u32 %v4138, 65535
        %v4177 = vshrl.u32 %v4138, 16
        %v4178 = vcvt.s32.f32 %v4176
        %v4179 = vcvt.s32.f32 %v4177
        %4180 = vadd.xlane.f32.xlu0 %v4178
        %v4181 = vpop.xlane.xlu0 %4180
        %4182 = vadd.xlane.f32.xlu0 %v4179
        %v4183 = vpop.xlane.xlu0 %4182
        %v4184 = vcvt.f32.s32 %v4181
        %v4185 = vcvt.f32.s32 %v4183
        %v4186 = vshll.u32 %v4185, 16
        %v4187 = vadd.s32 %v4186, %v4184
        %v4188 = vand.u32 %v4139, 65535
        %v4189 = vshrl.u32 %v4139, 16
        %v4190 = vcvt.s32.f32 %v4188
        %v4191 = vcvt.s32.f32 %v4189
        %4192 = vadd.xlane.f32.xlu0 %v4190
        %v4193 = vpop.xlane.xlu0 %4192
        %4194 = vadd.xlane.f32.xlu0 %v4191
        %v4195 = vpop.xlane.xlu0 %4194
        %v4196 = vcvt.f32.s32 %v4193
        %v4197 = vcvt.f32.s32 %v4195
        %v4198 = vshll.u32 %v4197, 16
        %v4199 = vadd.s32 %v4198, %v4196
        %v4200 = vand.u32 %v4140, 65535
        %v4201 = vshrl.u32 %v4140, 16
        %v4202 = vcvt.s32.f32 %v4200
        %v4203 = vcvt.s32.f32 %v4201
        %4204 = vadd.xlane.f32.xlu0 %v4202
        %v4205 = vpop.xlane.xlu0 %4204
        %4206 = vadd.xlane.f32.xlu0 %v4203
        %v4207 = vpop.xlane.xlu0 %4206
        %v4208 = vcvt.f32.s32 %v4205
        %v4209 = vcvt.f32.s32 %v4207
        %v4210 = vshll.u32 %v4209, 16
        %v4211 = vadd.s32 %v4210, %v4208
        %v4212 = vand.u32 %v4141, 65535
        %v4213 = vshrl.u32 %v4141, 16
        %v4214 = vcvt.s32.f32 %v4212
        %v4215 = vcvt.s32.f32 %v4213
        %4216 = vadd.xlane.f32.xlu0 %v4214
        %v4217 = vpop.xlane.xlu0 %4216
        %4218 = vadd.xlane.f32.xlu0 %v4215
        %v4219 = vpop.xlane.xlu0 %4218
        %v4220 = vcvt.f32.s32 %v4217
        %v4221 = vcvt.f32.s32 %v4219
        %v4222 = vshll.u32 %v4221, 16
        %v4223 = vadd.s32 %v4222, %v4220
        %v4224 = vand.u32 %v4142, 65535
        %v4225 = vshrl.u32 %v4142, 16
        %v4226 = vcvt.s32.f32 %v4224
        %v4227 = vcvt.s32.f32 %v4225
        %4228 = vadd.xlane.f32.xlu0 %v4226
        %v4229 = vpop.xlane.xlu0 %4228
        %4230 = vadd.xlane.f32.xlu0 %v4227
        %v4231 = vpop.xlane.xlu0 %4230
        %v4232 = vcvt.f32.s32 %v4229
        %v4233 = vcvt.f32.s32 %v4231
        %v4234 = vshll.u32 %v4233, 16
        %v4235 = vadd.s32 %v4234, %v4232
        %v4236 = vand.u32 %v4143, 65535
        %v4237 = vshrl.u32 %v4143, 16
        %v4238 = vcvt.s32.f32 %v4236
        %v4239 = vcvt.s32.f32 %v4237
        %4240 = vadd.xlane.f32.xlu0 %v4238
        %v4241 = vpop.xlane.xlu0 %4240
        %4242 = vadd.xlane.f32.xlu0 %v4239
        %v4243 = vpop.xlane.xlu0 %4242
        %v4244 = vcvt.f32.s32 %v4241
        %v4245 = vcvt.f32.s32 %v4243
        %v4246 = vshll.u32 %v4245, 16
        %v4247 = vadd.s32 %v4246, %v4244
        %v4248 = vand.u32 %v4144, 65535
        %v4249 = vshrl.u32 %v4144, 16
        %v4250 = vcvt.s32.f32 %v4248
        %v4251 = vcvt.s32.f32 %v4249
        %4252 = vadd.xlane.f32.xlu0 %v4250
        %v4253 = vpop.xlane.xlu0 %4252
        %4254 = vadd.xlane.f32.xlu0 %v4251
        %v4255 = vpop.xlane.xlu0 %4254
        %v4256 = vcvt.f32.s32 %v4253
        %v4257 = vcvt.f32.s32 %v4255
        %v4258 = vshll.u32 %v4257, 16
        %v4259 = vadd.s32 %v4258, %v4256
        %v4260 = vand.u32 %v4145, 65535
        %v4261 = vshrl.u32 %v4145, 16
        %v4262 = vcvt.s32.f32 %v4260
        %v4263 = vcvt.s32.f32 %v4261
        %4264 = vadd.xlane.f32.xlu0 %v4262
        %v4265 = vpop.xlane.xlu0 %4264
        %4266 = vadd.xlane.f32.xlu0 %v4263
        %v4267 = vpop.xlane.xlu0 %4266
        %v4268 = vcvt.f32.s32 %v4265
        %v4269 = vcvt.f32.s32 %v4267
        %v4270 = vshll.u32 %v4269, 16
        %v4271 = vadd.s32 %v4270, %v4268
        %v4272 = vand.u32 %v4146, 65535
        %v4273 = vshrl.u32 %v4146, 16
        %v4274 = vcvt.s32.f32 %v4272
        %v4275 = vcvt.s32.f32 %v4273
        %4276 = vadd.xlane.f32.xlu0 %v4274
        %v4277 = vpop.xlane.xlu0 %4276
        %4278 = vadd.xlane.f32.xlu0 %v4275
        %v4279 = vpop.xlane.xlu0 %4278
        %v4280 = vcvt.f32.s32 %v4277
        %v4281 = vcvt.f32.s32 %v4279
        %v4282 = vshll.u32 %v4281, 16
        %v4283 = vadd.s32 %v4282, %v4280
        %v4284 = vand.u32 %v4147, 65535
        %v4285 = vshrl.u32 %v4147, 16
        %v4286 = vcvt.s32.f32 %v4284
        %v4287 = vcvt.s32.f32 %v4285
        %4288 = vadd.xlane.f32.xlu0 %v4286
        %v4289 = vpop.xlane.xlu0 %4288
        %4290 = vadd.xlane.f32.xlu0 %v4287
        %v4291 = vpop.xlane.xlu0 %4290
        %v4292 = vcvt.f32.s32 %v4289
        %v4293 = vcvt.f32.s32 %v4291
        %v4294 = vshll.u32 %v4293, 16
        %v4295 = vadd.s32 %v4294, %v4292
        %v4296 = vand.u32 %v4148, 65535
        %v4297 = vshrl.u32 %v4148, 16
        %v4298 = vcvt.s32.f32 %v4296
        %v4299 = vcvt.s32.f32 %v4297
        %4300 = vadd.xlane.f32.xlu0 %v4298
        %v4301 = vpop.xlane.xlu0 %4300
        %4302 = vadd.xlane.f32.xlu0 %v4299
        %v4303 = vpop.xlane.xlu0 %4302
        %v4304 = vcvt.f32.s32 %v4301
        %v4305 = vcvt.f32.s32 %v4303
        %v4306 = vshll.u32 %v4305, 16
        %v4307 = vadd.s32 %v4306, %v4304
        %v4308 = vand.u32 %v4149, 65535
        %v4309 = vshrl.u32 %v4149, 16
        %v4310 = vcvt.s32.f32 %v4308
        %v4311 = vcvt.s32.f32 %v4309
        %4312 = vadd.xlane.f32.xlu0 %v4310
        %v4313 = vpop.xlane.xlu0 %4312
        %4314 = vadd.xlane.f32.xlu0 %v4311
        %v4315 = vpop.xlane.xlu0 %4314
        %v4316 = vcvt.f32.s32 %v4313
        %v4317 = vcvt.f32.s32 %v4315
        %v4318 = vshll.u32 %v4317, 16
        %v4319 = vadd.s32 %v4318, %v4316
        %v4320 = vand.u32 %v4150, 65535
        %v4321 = vshrl.u32 %v4150, 16
        %v4322 = vcvt.s32.f32 %v4320
        %v4323 = vcvt.s32.f32 %v4321
        %4324 = vadd.xlane.f32.xlu0 %v4322
        %v4325 = vpop.xlane.xlu0 %4324
        %4326 = vadd.xlane.f32.xlu0 %v4323
        %v4327 = vpop.xlane.xlu0 %4326
        %v4328 = vcvt.f32.s32 %v4325
        %v4329 = vcvt.f32.s32 %v4327
        %v4330 = vshll.u32 %v4329, 16
        %v4331 = vadd.s32 %v4330, %v4328
        %v4332 = vand.u32 %v4151, 65535
        %v4333 = vshrl.u32 %v4151, 16
        %v4334 = vcvt.s32.f32 %v4332
        %v4335 = vcvt.s32.f32 %v4333
        %4336 = vadd.xlane.f32.xlu0 %v4334
        %v4337 = vpop.xlane.xlu0 %4336
        %4338 = vadd.xlane.f32.xlu0 %v4335
        %v4339 = vpop.xlane.xlu0 %4338
        %v4340 = vcvt.f32.s32 %v4337
        %v4341 = vcvt.f32.s32 %v4339
        %v4342 = vshll.u32 %v4341, 16
        %v4343 = vadd.s32 %v4342, %v4340
        %vm4344 = vcmp.eq.s32.totalorder %v2310, %v4163
        %vm4345 = vcmp.eq.s32.totalorder %v2310, %v4175
        %vm4346 = vcmp.eq.s32.totalorder %v2310, %v4187
        %vm4347 = vcmp.eq.s32.totalorder %v2310, %v4199
        %vm4348 = vcmp.eq.s32.totalorder %v2310, %v4211
        %vm4349 = vcmp.eq.s32.totalorder %v2310, %v4223
        %vm4350 = vcmp.eq.s32.totalorder %v2310, %v4235
        %vm4351 = vcmp.eq.s32.totalorder %v2310, %v4247
        %vm4352 = vcmp.eq.s32.totalorder %v2310, %v4259
        %vm4353 = vcmp.eq.s32.totalorder %v2310, %v4271
        %vm4354 = vcmp.eq.s32.totalorder %v2310, %v4283
        %vm4355 = vcmp.eq.s32.totalorder %v2310, %v4295
        %vm4356 = vcmp.eq.s32.totalorder %v2310, %v4307
        %vm4357 = vcmp.eq.s32.totalorder %v2310, %v4319
        %vm4358 = vcmp.eq.s32.totalorder %v2310, %v4331
        %vm4359 = vcmp.eq.s32.totalorder %v2310, %v4343
        %v4360 = vsel %vm4344, 1, 0
        %v4361 = vsel %vm4345, 1, 0
        %v4362 = vsel %vm4346, 1, 0
        %v4363 = vsel %vm4347, 1, 0
        %v4364 = vsel %vm4348, 1, 0
        %v4365 = vsel %vm4349, 1, 0
        %v4366 = vsel %vm4350, 1, 0
        %v4367 = vsel %vm4351, 1, 0
        %v4368 = vsel %vm4352, 1, 0
        %v4369 = vsel %vm4353, 1, 0
        %v4370 = vsel %vm4354, 1, 0
        %v4371 = vsel %vm4355, 1, 0
        %v4372 = vsel %vm4356, 1, 0
        %v4373 = vsel %vm4357, 1, 0
        %v4374 = vsel %vm4358, 1, 0
        %v4375 = vsel %vm4359, 1, 0
        %v4376 = vcvt.s32.f32 %v4360
        %v4377 = vcvt.s32.f32 %v4361
        %v4378 = vcvt.s32.f32 %v4362
        %v4379 = vcvt.s32.f32 %v4363
        %v4380 = vcvt.s32.f32 %v4364
        %v4381 = vcvt.s32.f32 %v4365
        %v4382 = vcvt.s32.f32 %v4366
        %v4383 = vcvt.s32.f32 %v4367
        %v4384 = vcvt.s32.f32 %v4368
        %v4385 = vcvt.s32.f32 %v4369
        %v4386 = vcvt.s32.f32 %v4370
        %v4387 = vcvt.s32.f32 %v4371
        %v4388 = vcvt.s32.f32 %v4372
        %v4389 = vcvt.s32.f32 %v4373
        %v4390 = vcvt.s32.f32 %v4374
        %v4391 = vcvt.s32.f32 %v4375
        %v4392 = vpack.c.bf16 %v4377, %v4376
        %v4393 = vpack.c.bf16 %v4379, %v4378
        %v4394 = vpack.c.bf16 %v4381, %v4380
        %v4395 = vpack.c.bf16 %v4383, %v4382
        %v4396 = vpack.c.bf16 %v4385, %v4384
        %v4397 = vpack.c.bf16 %v4387, %v4386
        %v4398 = vpack.c.bf16 %v4389, %v4388
        %v4399 = vpack.c.bf16 %v4391, %v4390
        %4400 = vmatprep.subr.bf16.mxu0 0
        %4401 = vmatpush1.bf16.msra.mxu0 %v2399
        %4402 = vmatprep.subr.bf16.mxu0 0
        %4403 = vmatpush1.bf16.msra.mxu0 %v2400
        %4404 = vmatprep.subr.bf16.mxu0 0
        %4405 = vmatpush1.bf16.msra.mxu0 %v2401
        %4406 = vmatprep.subr.bf16.mxu0 0
        %4407 = vmatpush1.bf16.msra.mxu0 %v2402
        %4408 = vmatprep.subr.bf16.mxu0 0
        %4409 = vmatpush1.bf16.msra.mxu0 %v2403
        %4410 = vmatprep.subr.bf16.mxu0 0
        %4411 = vmatpush1.bf16.msra.mxu0 %v2404
        %4412 = vmatprep.subr.bf16.mxu0 0
        %4413 = vmatpush1.bf16.msra.mxu0 %v2405
        %4414 = vmatprep.subr.bf16.mxu0 0
        %4415 = vmatpush1.bf16.msra.mxu0 %v2406
        %4416 = vmatprep.subr.bf16.mxu0 0
        %4417 = vmatpush1.bf16.msra.mxu0 0
        %4418 = vmatprep.subr.bf16.mxu0 0
        %4419 = vmatpush1.bf16.msra.mxu0 0
        %4420 = vmatprep.subr.bf16.mxu0 0
        %4421 = vmatpush1.bf16.msra.mxu0 0
        %4422 = vmatprep.subr.bf16.mxu0 0
        %4423 = vmatpush1.bf16.msra.mxu0 0
        %4424 = vmatprep.subr.bf16.mxu0 0
        %4425 = vmatpush1.bf16.msra.mxu0 0
        %4426 = vmatprep.subr.bf16.mxu0 0
        %4427 = vmatpush1.bf16.msra.mxu0 0
        %4428 = vmatprep.subr.bf16.mxu0 0
        %4429 = vmatpush1.bf16.msra.mxu0 0
        %4430 = vmatprep.subr.bf16.mxu0 0
        %4431 = vmatpush1.bf16.msra.mxu0 0
        %4432 = vmatprep.mubr.bf16.mxu0 0
        %4433 = vmatmul.mubr.bf16.gmra.mrb[0].mxu0 %v4392
        %v4434 = vpop.f32.mrb[0].mxu0
        %v4435 = vadd.f32 0.0, %v4434
        %v4436 = vpop.f32.mrb[0].mxu0
        %v4437 = vpop.f32.mrb[0].mxu0
        %v4438 = vadd.f32 0.0, %v4437
        %v4439 = vpop.f32.mrb[0].mxu0
        %4440 = vmatprep.mubr.bf16.mxu0 0
        %4441 = vmatmul.mubr.bf16.gmra.mrb[0].mxu0 %v4393
        %v4442 = vpop.f32.mrb[0].mxu0
        %v4443 = vadd.f32 0.0, %v4442
        %v4444 = vpop.f32.mrb[0].mxu0
        %v4445 = vpop.f32.mrb[0].mxu0
        %v4446 = vadd.f32 0.0, %v4445
        %v4447 = vpop.f32.mrb[0].mxu0
        %4448 = vmatprep.mubr.bf16.mxu0 0
        %4449 = vmatmul.mubr.bf16.gmra.mrb[0].mxu0 %v4394
        %v4450 = vpop.f32.mrb[0].mxu0
        %v4451 = vadd.f32 0.0, %v4450
        %v4452 = vpop.f32.mrb[0].mxu0
        %v4453 = vpop.f32.mrb[0].mxu0
        %v4454 = vadd.f32 0.0, %v4453
        %v4455 = vpop.f32.mrb[0].mxu0
        %4456 = vmatprep.mubr.bf16.mxu0 0
        %4457 = vmatmul.mubr.bf16.gmra.mrb[0].mxu0 %v4395
        %v4458 = vpop.f32.mrb[0].mxu0
        %v4459 = vadd.f32 0.0, %v4458
        %v4460 = vpop.f32.mrb[0].mxu0
        %v4461 = vpop.f32.mrb[0].mxu0
        %v4462 = vadd.f32 0.0, %v4461
        %v4463 = vpop.f32.mrb[0].mxu0
        %4464 = vmatprep.mubr.bf16.mxu0 0
        %4465 = vmatmul.mubr.bf16.gmra.mrb[0].mxu0 %v4396
        %v4466 = vpop.f32.mrb[0].mxu0
        %v4467 = vadd.f32 0.0, %v4466
        %v4468 = vpop.f32.mrb[0].mxu0
        %v4469 = vpop.f32.mrb[0].mxu0
        %v4470 = vadd.f32 0.0, %v4469
        %v4471 = vpop.f32.mrb[0].mxu0
        %4472 = vmatprep.mubr.bf16.mxu0 0
        %4473 = vmatmul.mubr.bf16.gmra.mrb[0].mxu0 %v4397
        %v4474 = vpop.f32.mrb[0].mxu0
        %v4475 = vadd.f32 0.0, %v4474
        %v4476 = vpop.f32.mrb[0].mxu0
        %v4477 = vpop.f32.mrb[0].mxu0
        %v4478 = vadd.f32 0.0, %v4477
        %v4479 = vpop.f32.mrb[0].mxu0
        %4480 = vmatprep.mubr.bf16.mxu0 0
        %4481 = vmatmul.mubr.bf16.gmra.mrb[0].mxu0 %v4398
        %v4482 = vpop.f32.mrb[0].mxu0
        %v4483 = vadd.f32 0.0, %v4482
        %v4484 = vpop.f32.mrb[0].mxu0
        %v4485 = vpop.f32.mrb[0].mxu0
        %v4486 = vadd.f32 0.0, %v4485
        %v4487 = vpop.f32.mrb[0].mxu0
        %4488 = vmatprep.mubr.bf16.mxu0 0
        %4489 = vmatmul.mubr.bf16.gmra.mrb[0].mxu0 %v4399
        %v4490 = vpop.f32.mrb[0].mxu0
        %v4491 = vadd.f32 0.0, %v4490
        %v4492 = vpop.f32.mrb[0].mxu0
        %v4493 = vpop.f32.mrb[0].mxu0
        %v4494 = vadd.f32 0.0, %v4493
        %v4495 = vpop.f32.mrb[0].mxu0
        %4496 = vdwg.mxu0
        %v4497 = vadd.f32 %v2512, %v4435
        %v4498 = vadd.f32 %v2513, %v4438
        %v4499 = vadd.f32 %v2514, %v4443
        %v4500 = vadd.f32 %v2515, %v4446
        %v4501 = vadd.f32 %v2516, %v4451
        %v4502 = vadd.f32 %v2517, %v4454
        %v4503 = vadd.f32 %v2518, %v4459
        %v4504 = vadd.f32 %v2519, %v4462
        %v4505 = vadd.f32 %v2520, %v4467
        %v4506 = vadd.f32 %v2521, %v4470
        %v4507 = vadd.f32 %v2522, %v4475
        %v4508 = vadd.f32 %v2523, %v4478
        %v4509 = vadd.f32 %v2524, %v4483
        %v4510 = vadd.f32 %v2525, %v4486
        %v4511 = vadd.f32 %v2526, %v4491
        %v4512 = vadd.f32 %v2527, %v4494
        %4513 = vst.msk [vmem:[%s336] sm:$0xff] %vm738, %v4497
        %4514 = vst.msk [vmem:[%s336 + $0x8] sm:$0xff] %vm738, %v4498
        %4515 = vst.msk [vmem:[%s336 + $0x10] sm:$0xff] %vm738, %v4499
        %4516 = vst.msk [vmem:[%s336 + $0x18] sm:$0xff] %vm738, %v4500
        %4517 = vst.msk [vmem:[%s336 + $0x20] sm:$0xff] %vm738, %v4501
        %4518 = vst.msk [vmem:[%s336 + $0x28] sm:$0xff] %vm738, %v4502
        %4519 = vst.msk [vmem:[%s336 + $0x30] sm:$0xff] %vm738, %v4503
        %4520 = vst.msk [vmem:[%s336 + $0x38] sm:$0xff] %vm738, %v4504
        %4521 = vst.msk [vmem:[%s336 + $0x40] sm:$0xff] %vm738, %v4505
        %4522 = vst.msk [vmem:[%s336 + $0x48] sm:$0xff] %vm738, %v4506
        %4523 = vst.msk [vmem:[%s336 + $0x50] sm:$0xff] %vm738, %v4507
        %4524 = vst.msk [vmem:[%s336 + $0x58] sm:$0xff] %vm738, %v4508
        %4525 = vst.msk [vmem:[%s336 + $0x60] sm:$0xff] %vm738, %v4509
        %4526 = vst.msk [vmem:[%s336 + $0x68] sm:$0xff] %vm738, %v4510
        %4527 = vst.msk [vmem:[%s336 + $0x70] sm:$0xff] %vm738, %v4511
        %4528 = vst.msk [vmem:[%s336 + $0x78] sm:$0xff] %vm738, %v4512
        %vm4529 = vcmask 7168
        %4530 = vst.msk [vmem:[%s366] sm:$0xff] %vm4529, %v1984
        %4531 = vst.msk [vmem:[%s366 + $0x8] sm:$0xff] %vm4529, %v1985
        %4532 = vst.msk [vmem:[%s366 + $0x10] sm:$0xff] %vm4529, %v1986
        %4533 = vst.msk [vmem:[%s366 + $0x18] sm:$0xff] %vm4529, %v1987
        %4534 = vst.msk [vmem:[%s366 + $0x20] sm:$0xff] %vm4529, %v1988
        %4535 = vst.msk [vmem:[%s366 + $0x28] sm:$0xff] %vm4529, %v1989
        %4536 = vst.msk [vmem:[%s366 + $0x30] sm:$0xff] %vm4529, %v1990
        %4537 = vst.msk [vmem:[%s366 + $0x38] sm:$0xff] %vm4529, %v1991
        %4538 = vst.msk [vmem:[%s366 + $0x40] sm:$0xff] %vm4529, %v1992
        %4539 = vst.msk [vmem:[%s366 + $0x48] sm:$0xff] %vm4529, %v1993
        %4540 = vst.msk [vmem:[%s366 + $0x50] sm:$0xff] %vm4529, %v1994
        %4541 = vst.msk [vmem:[%s366 + $0x58] sm:$0xff] %vm4529, %v1995
        %4542 = vst.msk [vmem:[%s366 + $0x60] sm:$0xff] %vm4529, %v1996
        %4543 = vst.msk [vmem:[%s366 + $0x68] sm:$0xff] %vm4529, %v1997
        %4544 = vst.msk [vmem:[%s366 + $0x70] sm:$0xff] %vm4529, %v1998
        %4545 = vst.msk [vmem:[%s366 + $0x78] sm:$0xff] %vm4529, %v1999
        %4546 = vst.msk [vmem:[%s373] sm:$0xff] %vm4529, %v4019
        %4547 = vst.msk [vmem:[%s373 + $0x8] sm:$0xff] %vm4529, %v4020
        %4548 = vst.msk [vmem:[%s373 + $0x10] sm:$0xff] %vm4529, %v4021
        %4549 = vst.msk [vmem:[%s373 + $0x18] sm:$0xff] %vm4529, %v4022
        %4550 = vst.msk [vmem:[%s373 + $0x20] sm:$0xff] %vm4529, %v4023
        %4551 = vst.msk [vmem:[%s373 + $0x28] sm:$0xff] %vm4529, %v4024
        %4552 = vst.msk [vmem:[%s373 + $0x30] sm:$0xff] %vm4529, %v4025
        %4553 = vst.msk [vmem:[%s373 + $0x38] sm:$0xff] %vm4529, %v4026
        %4554 = vst.msk [vmem:[%s373 + $0x40] sm:$0xff] %vm4529, %v4027
        %4555 = vst.msk [vmem:[%s373 + $0x48] sm:$0xff] %vm4529, %v4028
        %4556 = vst.msk [vmem:[%s373 + $0x50] sm:$0xff] %vm4529, %v4029
        %4557 = vst.msk [vmem:[%s373 + $0x58] sm:$0xff] %vm4529, %v4030
        %4558 = vst.msk [vmem:[%s373 + $0x60] sm:$0xff] %vm4529, %v4031
        %4559 = vst.msk [vmem:[%s373 + $0x68] sm:$0xff] %vm4529, %v4032
        %4560 = vst.msk [vmem:[%s373 + $0x70] sm:$0xff] %vm4529, %v4033
        %4561 = vst.msk [vmem:[%s373 + $0x78] sm:$0xff] %vm4529, %v4034
        %s4562 = sand.u32 %s191, 1
        %s4563 = scalar_lea.sflag [#allocation5], %s4562
        %s4564 = sand.u32 %s191, 1
        %s4565 = smul.addr %s4564, 128
        %s4566 = scalar_lea.vmem [#allocation4], %s4565
        %s4567 = smul.u32 8, %s31
        %p4568 = scmp.lt.s32.totalorder %s4567, 15
        %s4569 = scalar_select %p4568, %s4567, 15
        %s4570 = smul.addr %s4569, 2
        %s4571 = smul.addr %s4570, 8
        %s4572 = scalar_lea.vmem %s9, %s4571
        %s4573 = smul.u32 8, %s31
        %p4574 = scmp.lt.s32.totalorder %s4573, 15
        %s4575 = scalar_select %p4574, %s4573, 15
        %s4576 = smul.addr %s4575, 2
        %s4577 = smul.addr %s4576, 8
        %s4578 = scalar_lea.vmem %s10, %s4577
        // Predicated region
        $region49: #{tpu_custom_call.1} parent=47 // pred_check
          %p4579 = pneg %p201
        $region50: #{tpu_custom_call.1} parent=47 // pred_check_branch
          %4581 = sbr.rel (%p4579) target = $region52
        $region51: #{tpu_custom_call.1} parent=47 // pred_region
          %s4582 = smul.u32 8, %s31
          %s4584 = ssub.s32 2048, 2048
          %4585 = vsyncadd %s4563, %s4584
          %s4586 = smul.addr %s4582, 2
          %s4587 = smul.addr %s4586, 128
          %s4588 = scalar_lea.hbm %s8, %s4587
          %s4589 = sshll.u32 %s4566, 4
          %s4590 = int_to_ptr.vmem [resolvable:$true] %s4589
          %4595 = dma.vmem_to_hbm [thread:$0]  %s4590, 2048, %s4588, %s4563, 128, 128, 8
        $region52: #{tpu_custom_call.1} parent=47 // pred_fallthru
          _
        // Predicated region
        $region53: #{tpu_custom_call.1} parent=47 // pred_check
          %p4596 = pneg %p227
        $region54: #{tpu_custom_call.1} parent=47 // pred_check_branch
          %4598 = sbr.rel (%p4596) target = $region56
        $region55: #{tpu_custom_call.1} parent=47 // pred_region
          %s4599 = smul.u32 8, %s31
        $region56: #{tpu_custom_call.1} parent=47 // pred_fallthru
          _
        // Predicated region
        $region57: #{tpu_custom_call.1} parent=47 // pred_check
          %p4600 = pneg %p253
        $region58: #{tpu_custom_call.1} parent=47 // pred_check_branch
          %4602 = sbr.rel (%p4600) target = $region60
        $region59: #{tpu_custom_call.1} parent=47 // pred_region
          %s4603 = smul.u32 8, %s31
        $region60: #{tpu_custom_call.1} parent=47 // pred_fallthru
          _
      $region48: #{tpu_custom_call.1} parent=5 // pred_fallthru
        _
      %p4604 = scmp.le.s32.totalorder 2, %s26
      // Predicated region
      $region61: #{tpu_custom_call.1} parent=5 // pred_check
        %p4605 = pneg %p4604
      $region62: #{tpu_custom_call.1} parent=5 // pred_check_branch
        %4607 = sbr.rel (%p4605) target = $region64
      $region63: #{tpu_custom_call.1} parent=5 // pred_region
        %s4608 = ssub.s32 %s26, 2
        // Predicated region
        $region65: #{tpu_custom_call.1} parent=63 // pred_check
          %p4609 = pneg %p207
        $region66: #{tpu_custom_call.1} parent=63 // pred_check_branch
          %4611 = sbr.rel (%p4609) target = $region68
        $region67: #{tpu_custom_call.1} parent=63 // pred_region
          %s4612 = sand.u32 %s192, 1
          %s4613 = scalar_lea.sflag [#allocation5], %s4612
          %s4614 = sand.u32 %s192, 1
          %s4615 = smul.addr %s4614, 128
          %s4616 = scalar_lea.vmem [#allocation4], %s4615
          %4617 = dma.done %s4613, 2048
        $region68: #{tpu_custom_call.1} parent=63 // pred_fallthru
          _
        // Predicated region
        $region69: #{tpu_custom_call.1} parent=63 // pred_check
          %p4618 = pneg %p233
        $region70: #{tpu_custom_call.1} parent=63 // pred_check_branch
          %4620 = sbr.rel (%p4618) target = $region72
        $region71: #{tpu_custom_call.1} parent=63 // pred_region
          %s4621 = smul.u32 8, %s32
          %p4622 = scmp.lt.s32.totalorder %s4621, 15
          %s4623 = scalar_select %p4622, %s4621, 15
          %s4624 = smul.addr %s4623, 2
          %s4625 = smul.addr %s4624, 8
          %s4626 = scalar_lea.vmem %s9, %s4625
        $region72: #{tpu_custom_call.1} parent=63 // pred_fallthru
          _
        // Predicated region
        $region73: #{tpu_custom_call.1} parent=63 // pred_check
          %p4627 = pneg %p259
        $region74: #{tpu_custom_call.1} parent=63 // pred_check_branch
          %4629 = sbr.rel (%p4627) target = $region76
        $region75: #{tpu_custom_call.1} parent=63 // pred_region
          %s4630 = smul.u32 8, %s32
          %p4631 = scmp.lt.s32.totalorder %s4630, 15
          %s4632 = scalar_select %p4631, %s4630, 15
          %s4633 = smul.addr %s4632, 2
          %s4634 = smul.addr %s4633, 8
          %s4635 = scalar_lea.vmem %s10, %s4634
        $region76: #{tpu_custom_call.1} parent=63 // pred_fallthru
          _
      $region64: #{tpu_custom_call.1} parent=5 // pred_fallthru
        _
    $region6: #{tpu_custom_call.1} parent=1 // loop_footer
      %s30 = sadd.s32 1, %s26
    $region7: #{tpu_custom_call.1} parent=1 // loop_footer_branch
      %25 = sbr.rel target = $region3
    $region8: #{tpu_custom_call.1} parent=1 // loop_exit
      _
    %4636 = vsyncpa [#allocation5], 1
    %s4637 = scalar_lea.sflag [#allocation5], 1
    %4638 = vsyncpa %s4637, 1

</llo_original>
